<compile_context>
chip_gen: v6e
topology: v6e:2x2x1
jax: 0.10.0
libtpu: 0.0.40
codegen_flags: <defaults>
</compile_context>

<pallas_src>
import math
import jax
import jax.numpy as jnp
from jax.experimental import pallas as pl
from jax.experimental.pallas import tpu as pltpu

# ---------------- problem constants ---------------------------------------------
DELTA_CLIP = 50.0
EPSILON = 1e-6             # module's EPSILON (BatchNorm eps)

D = 4                      # bsde.dim
H = 16                     # hidden width
B = 512                    # Monte-Carlo paths (lane-dense last axis inside kernel)
NUM_TIME_INTERVAL = 4      # bsde.num_time_interval
TOTAL_TIME = 1.0           # bsde.total_time
DELTA_T = TOTAL_TIME / NUM_TIME_INTERVAL
SIGMA = math.sqrt(2.0)
LAMBD = 1.0
NUM_HIDDENS = [D, H, H, D]         # config.num_hiddens
Y_INIT_RANGE = (0.0, 1.0)          # config.y_init_range

_VMEM = pl.BlockSpec(memory_space=pltpu.MemorySpace.VMEM)
_SMEM = pl.BlockSpec(memory_space=pltpu.MemorySpace.SMEM)


# ---------------- fused Pallas kernel --------------------------------------------
def _bn_train(h, gamma, beta):
    """BatchNorm1d (training mode) on (features, batch): biased batch stats.

    Single-pass statistics: var = E[h^2] - E[h]^2 (the two lane reductions are
    independent, unlike mean((h-mu)^2) which serializes on mu).
    """
    mu = jnp.mean(h, axis=1, keepdims=True)
    var = jnp.maximum(jnp.mean(h * h, axis=1, keepdims=True) - mu * mu, 0.0)
    return (h - mu) * jax.lax.rsqrt(var + EPSILON) * gamma + beta


def fused_forward_kernel(yz_ref, dw_ref, w_ref, c_ref, loss_ref):
    """Whole deep-BSDE forward in one kernel; state stays on-chip.

    yz_ref : SMEM (1+D,)         [y_init, z_init[0..D-1]]
    dw_ref : VMEM (T, D, B)      Brownian increments, lane-dense batch
    w_ref  : VMEM (T-1, 3, H, H) zero-padded Dense weights [w1 | w2 | w3]
    c_ref  : VMEM (T-1, 8, H, 1) BN columns [g0,b0,g1,be1,g2,be2,g3,be3]
    loss_ref: VMEM (1, 1)        scalar loss
    """
    nb = dw_ref.shape[-1]
    n_t = dw_ref.shape[0]

    def subnet(t, h):
        # input BN -> Dense(D,H)+BN+ReLU -> Dense(H,H)+BN+ReLU -> Dense(H,D)+BN
        # NOTE: Linear biases are omitted — training-mode BN cancels them exactly.
        h = _bn_train(h, c_ref[t, 0][:D], c_ref[t, 1][:D])
        h = jnp.dot(w_ref[t, 0][:, :D], h, preferred_element_type=jnp.float32)
        h = jnp.maximum(_bn_train(h, c_ref[t, 2], c_ref[t, 3]), 0.0)
        h = jnp.dot(w_ref[t, 1], h, preferred_element_type=jnp.float32)
        h = jnp.maximum(_bn_train(h, c_ref[t, 4], c_ref[t, 5]), 0.0)
        h = jnp.dot(w_ref[t, 2][:D, :], h, preferred_element_type=jnp.float32)
        h = _bn_train(h, c_ref[t, 6][:D], c_ref[t, 7][:D])   # last Dense: activate=False
        return h * (1.0 / D)                                 # z = subnet(x) / dim

    # ---- phase 1: whole x path (depends only on dw; h_th == 0, x_init == 0) ----
    x = SIGMA * dw_ref[0]
    xs = [x]
    for t in range(1, n_t):
        x = x + SIGMA * dw_ref[t]
        xs.append(x)                      # xs[t] == x_{t+1}

    # ---- phase 2: step 0 of the y recursion ------------------------------------
    # z_0 = all_one_vec @ z_init is constant across the batch, so ||z_0||^2 is a
    # scalar and z_0 . dw_0 is a scalar-weighted row sum of dw_0.
    dw0 = dw_ref[0]
    zz0 = yz_ref[1] * yz_ref[1]
    zdw0 = yz_ref[1] * dw0[0:1, :]
    for j in range(1, D):
        zz0 = zz0 + yz_ref[1 + j] * yz_ref[1 + j]
        zdw0 = zdw0 + yz_ref[1 + j] * dw0[j:j + 1, :]
    y = (yz_ref[0] + DELTA_T * LAMBD * zz0) + zdw0            # (1, B)

    # ---- phase 3: remaining steps ----------------------------------------------
    # The T-1 subnets depend only on xs (not on y or each other), so their
    # MXU/XLU work can overlap within this single basic block.
    for t in range(1, n_t):
        z = subnet(t - 1, xs[t - 1])
        y = (y
             + DELTA_T * LAMBD * jnp.sum(z * z, axis=0, keepdims=True)
             + jnp.sum(z * dw_ref[t], axis=0, keepdims=True))

    # ---- terminal condition g_th + clipped-quadratic loss ------------------------
    x_T = xs[-1]
    g = jnp.log(0.5 * (1.0 + jnp.sum(x_T * x_T, axis=0, keepdims=True)))
    delta = y - g
    ad = jnp.abs(delta)
    per = jnp.where(ad < DELTA_CLIP,
                    delta * delta,
                    2.0 * DELTA_CLIP * ad - DELTA_CLIP * DELTA_CLIP)
    loss_ref[...] = jnp.sum(per, axis=1, keepdims=True) * (1.0 / nb)


# ---------------- wrapper ---------------------------------------------------------
@jax.jit
def forward(xs, dw, y_init, z_init, wslab, pcols):
    """Mirrors FeedForwardModel.forward; returns (loss, y_init).

    `dw` must already be in the kernel's (T, D, B) float32 layout (the sampler
    produces it that way), so the wrapper issues no relayout dispatch. `xs` is
    only part of the interface (it fixes the batch size); x starts at zeros
    inside the kernel.
    """
    del xs
    yz = jnp.concatenate([jnp.reshape(y_init, (1,)),
                          jnp.reshape(z_init, (D,))]).astype(jnp.float32)
    loss = pl.pallas_call(
        fused_forward_kernel,
        out_shape=jax.ShapeDtypeStruct((1, 1), jnp.float32),
        in_specs=[_SMEM, _VMEM, _VMEM, _VMEM],
        out_specs=_VMEM,
    )(yz, dw, wslab, pcols)
    return loss[0, 0], y_init


# ---------------- deterministic parameter init + packing ---------------------------
def init_subnetwork(key):
    """One timestep's subnet params (PyTorch-layout weights (cout, cin)).

    Dense biases are intentionally not created: each Linear is immediately
    followed by training-mode BatchNorm, which cancels a per-feature bias.
    """
    keys = jax.random.split(key, len(NUM_HIDDENS) - 1)
    p = {"g0": jnp.ones((D,), jnp.float32),      # input BN gamma
         "b0": jnp.zeros((D,), jnp.float32)}     # input BN beta
    for i in range(1, len(NUM_HIDDENS)):
        cin, cout = NUM_HIDDENS[i - 1], NUM_HIDDENS[i]
        p[f"w{i}"] = (jax.random.normal(keys[i - 1], (cout, cin), jnp.float32)
                      * (5.0 / math.sqrt(cin + cout)))
        p[f"g{i}"] = jnp.ones((cout,), jnp.float32)
        p[f"be{i}"] = jnp.zeros((cout,), jnp.float32)
    return p


def pack_params(per_step):
    """Pack per-timestep subnet params into two VMEM slabs (2 DMAs, not 14+).

    wslab: (T-1, 3, H, H) zero-padded Dense weights [w1 | w2 | w3]
    pcols: (T-1, 8, H, 1) BN columns [g0,b0,g1,be1,g2,be2,g3,be3], padded to H
    """
    def wpad(w):
        r, c = w.shape
        return jnp.pad(w, ((0, H - r), (0, H - c)))

    def cpad(v):
        return jnp.pad(v, (0, H - v.shape[0]))[:, None]

    wslab = jnp.stack([jnp.stack([wpad(p["w1"]), wpad(p["w2"]), wpad(p["w3"])])
                       for p in per_step])
    pcols = jnp.stack([jnp.stack([cpad(p["g0"]), cpad(p["b0"]),
                                  cpad(p["g1"]), cpad(p["be1"]),
                                  cpad(p["g2"]), cpad(p["be2"]),
                                  cpad(p["g3"]), cpad(p["be3"])])
                       for p in per_step])
    return wslab, pcols


# ---------------- main -------------------------------------------------------------
if __name__ == "__main__":
    key = jax.random.PRNGKey(0)
    k_xs, k_dw, k_y, k_z, k_net = jax.random.split(key, 5)

    # bsde.sample(): dw ~ N(0, dt), generated directly in the kernel's (T, D, B)
    # layout; xs kept only for interface fidelity (shape / batch size).
    xs = jax.random.normal(k_xs, (B, D, NUM_TIME_INTERVAL + 1), jnp.float32)
    dw = (jax.random.normal(k_dw, (NUM_TIME_INTERVAL, D, B), jnp.float32)
          * math.sqrt(DELTA_T))

    # Deterministic replacements for the module's random init:
    #   _y_init ~ U(y_init_range), z_init ~ U(-0.1, 0.1).
    y_init = jax.random.uniform(k_y, (), jnp.float32, Y_INIT_RANGE[0], Y_INIT_RANGE[1])
    z_init = jax.random.uniform(k_z, (1, D), jnp.float32, -0.1, 0.1)

    per_step = [init_subnetwork(k)
                for k in jax.random.split(k_net, NUM_TIME_INTERVAL - 1)]
    wslab, pcols = pack_params(per_step)

    loss, y0 = forward(xs, dw, y_init, z_init, wslab, pcols)
    jax.block_until_ready(loss)
    print("KERNEL_OK")
</pallas_src>

<mosaic_0001>
module attributes {stable_mosaic.version = 11 : i64} {
  func.func @fused_forward_kernel(%arg0: memref<5xf32, #tpu.memory_space<smem>>, %arg1: memref<4x4x512xf32, #tpu.memory_space<vmem>>, %arg2: memref<3x3x16x16xf32, #tpu.memory_space<vmem>>, %arg3: memref<3x8x16x1xf32, #tpu.memory_space<vmem>>, %arg4: memref<1x1xf32, #tpu.memory_space<vmem>>) attributes {dimension_semantics = [], scalar_prefetch = 0 : i64, scratch_operands = 0 : i64, tpu.core_type = #tpu.core_type<tc>} {
    %c0 = arith.constant 0 : index
    %c0_0 = arith.constant 0 : index
    %c0_1 = arith.constant 0 : index
    %0 = vector.load %arg1[%c0, %c0_0, %c0_1] : memref<4x4x512xf32, #tpu.memory_space<vmem>>, vector<1x4x512xf32>
    %1 = vector.shape_cast %0 : vector<1x4x512xf32> to vector<4x512xf32>
    %cst = arith.constant 1.41421354 : f32
    %2 = vector.broadcast %cst : f32 to vector<4x512xf32>
    %3 = arith.mulf %2, %1 : vector<4x512xf32>
    %c1 = arith.constant 1 : index
    %c0_2 = arith.constant 0 : index
    %c0_3 = arith.constant 0 : index
    %4 = vector.load %arg1[%c1, %c0_2, %c0_3] : memref<4x4x512xf32, #tpu.memory_space<vmem>>, vector<1x4x512xf32>
    %5 = vector.shape_cast %4 : vector<1x4x512xf32> to vector<4x512xf32>
    %cst_4 = arith.constant 1.41421354 : f32
    %6 = vector.broadcast %cst_4 : f32 to vector<4x512xf32>
    %7 = arith.mulf %6, %5 : vector<4x512xf32>
    %8 = arith.addf %3, %7 : vector<4x512xf32>
    %c2 = arith.constant 2 : index
    %c0_5 = arith.constant 0 : index
    %c0_6 = arith.constant 0 : index
    %9 = vector.load %arg1[%c2, %c0_5, %c0_6] : memref<4x4x512xf32, #tpu.memory_space<vmem>>, vector<1x4x512xf32>
    %10 = vector.shape_cast %9 : vector<1x4x512xf32> to vector<4x512xf32>
    %cst_7 = arith.constant 1.41421354 : f32
    %11 = vector.broadcast %cst_7 : f32 to vector<4x512xf32>
    %12 = arith.mulf %11, %10 : vector<4x512xf32>
    %13 = arith.addf %8, %12 : vector<4x512xf32>
    %c3 = arith.constant 3 : index
    %c0_8 = arith.constant 0 : index
    %c0_9 = arith.constant 0 : index
    %14 = vector.load %arg1[%c3, %c0_8, %c0_9] : memref<4x4x512xf32, #tpu.memory_space<vmem>>, vector<1x4x512xf32>
    %15 = vector.shape_cast %14 : vector<1x4x512xf32> to vector<4x512xf32>
    %cst_10 = arith.constant 1.41421354 : f32
    %16 = vector.broadcast %cst_10 : f32 to vector<4x512xf32>
    %17 = arith.mulf %16, %15 : vector<4x512xf32>
    %18 = arith.addf %13, %17 : vector<4x512xf32>
    %c0_11 = arith.constant 0 : index
    %c0_12 = arith.constant 0 : index
    %c0_13 = arith.constant 0 : index
    %19 = vector.load %arg1[%c0_11, %c0_12, %c0_13] : memref<4x4x512xf32, #tpu.memory_space<vmem>>, vector<1x4x512xf32>
    %20 = vector.shape_cast %19 : vector<1x4x512xf32> to vector<4x512xf32>
    %c1_14 = arith.constant 1 : index
    %21 = memref.load %arg0[%c1_14] : memref<5xf32, #tpu.memory_space<smem>>
    %c1_15 = arith.constant 1 : index
    %22 = memref.load %arg0[%c1_15] : memref<5xf32, #tpu.memory_space<smem>>
    %23 = arith.mulf %21, %22 : f32
    %c1_16 = arith.constant 1 : index
    %24 = memref.load %arg0[%c1_16] : memref<5xf32, #tpu.memory_space<smem>>
    %25 = vector.extract_strided_slice %20 {offsets = [0, 0], sizes = [1, 512], strides = [1, 1]} : vector<4x512xf32> to vector<1x512xf32>
    %26 = vector.broadcast %24 : f32 to vector<1x512xf32>
    %27 = arith.mulf %26, %25 : vector<1x512xf32>
    %c2_17 = arith.constant 2 : index
    %28 = memref.load %arg0[%c2_17] : memref<5xf32, #tpu.memory_space<smem>>
    %c2_18 = arith.constant 2 : index
    %29 = memref.load %arg0[%c2_18] : memref<5xf32, #tpu.memory_space<smem>>
    %30 = arith.mulf %28, %29 : f32
    %31 = arith.addf %23, %30 : f32
    %c2_19 = arith.constant 2 : index
    %32 = memref.load %arg0[%c2_19] : memref<5xf32, #tpu.memory_space<smem>>
    %33 = vector.extract_strided_slice %20 {offsets = [1, 0], sizes = [1, 512], strides = [1, 1]} : vector<4x512xf32> to vector<1x512xf32>
    %34 = vector.broadcast %32 : f32 to vector<1x512xf32>
    %35 = arith.mulf %34, %33 : vector<1x512xf32>
    %36 = arith.addf %27, %35 : vector<1x512xf32>
    %c3_20 = arith.constant 3 : index
    %37 = memref.load %arg0[%c3_20] : memref<5xf32, #tpu.memory_space<smem>>
    %c3_21 = arith.constant 3 : index
    %38 = memref.load %arg0[%c3_21] : memref<5xf32, #tpu.memory_space<smem>>
    %39 = arith.mulf %37, %38 : f32
    %40 = arith.addf %31, %39 : f32
    %c3_22 = arith.constant 3 : index
    %41 = memref.load %arg0[%c3_22] : memref<5xf32, #tpu.memory_space<smem>>
    %42 = vector.extract_strided_slice %20 {offsets = [2, 0], sizes = [1, 512], strides = [1, 1]} : vector<4x512xf32> to vector<1x512xf32>
    %43 = vector.broadcast %41 : f32 to vector<1x512xf32>
    %44 = arith.mulf %43, %42 : vector<1x512xf32>
    %45 = arith.addf %36, %44 : vector<1x512xf32>
    %c4 = arith.constant 4 : index
    %46 = memref.load %arg0[%c4] : memref<5xf32, #tpu.memory_space<smem>>
    %c4_23 = arith.constant 4 : index
    %47 = memref.load %arg0[%c4_23] : memref<5xf32, #tpu.memory_space<smem>>
    %48 = arith.mulf %46, %47 : f32
    %49 = arith.addf %40, %48 : f32
    %c4_24 = arith.constant 4 : index
    %50 = memref.load %arg0[%c4_24] : memref<5xf32, #tpu.memory_space<smem>>
    %51 = vector.extract_strided_slice %20 {offsets = [3, 0], sizes = [1, 512], strides = [1, 1]} : vector<4x512xf32> to vector<1x512xf32>
    %52 = vector.broadcast %50 : f32 to vector<1x512xf32>
    %53 = arith.mulf %52, %51 : vector<1x512xf32>
    %54 = arith.addf %45, %53 : vector<1x512xf32>
    %c0_25 = arith.constant 0 : index
    %55 = memref.load %arg0[%c0_25] : memref<5xf32, #tpu.memory_space<smem>>
    %cst_26 = arith.constant 2.500000e-01 : f32
    %56 = arith.mulf %cst_26, %49 : f32
    %57 = arith.addf %55, %56 : f32
    %58 = vector.broadcast %57 : f32 to vector<1x512xf32>
    %59 = arith.addf %58, %54 : vector<1x512xf32>
    %c0_27 = arith.constant 0 : index
    %c0_28 = arith.constant 0 : index
    %c0_29 = arith.constant 0 : index
    %c0_30 = arith.constant 0 : index
    %60 = vector.load %arg3[%c0_27, %c0_28, %c0_29, %c0_30] : memref<3x8x16x1xf32, #tpu.memory_space<vmem>>, vector<1x1x16x1xf32>
    %61 = vector.shape_cast %60 : vector<1x1x16x1xf32> to vector<16x1xf32>
    %62 = vector.extract_strided_slice %61 {offsets = [0, 0], sizes = [4, 1], strides = [1, 1]} : vector<16x1xf32> to vector<4x1xf32>
    %c0_31 = arith.constant 0 : index
    %c1_32 = arith.constant 1 : index
    %c0_33 = arith.constant 0 : index
    %c0_34 = arith.constant 0 : index
    %63 = vector.load %arg3[%c0_31, %c1_32, %c0_33, %c0_34] : memref<3x8x16x1xf32, #tpu.memory_space<vmem>>, vector<1x1x16x1xf32>
    %64 = vector.shape_cast %63 : vector<1x1x16x1xf32> to vector<16x1xf32>
    %65 = vector.extract_strided_slice %64 {offsets = [0, 0], sizes = [4, 1], strides = [1, 1]} : vector<16x1xf32> to vector<4x1xf32>
    %cst_35 = arith.constant dense<0.000000e+00> : vector<4xf32>
    %66 = vector.multi_reduction <add>, %3, %cst_35 [1] : vector<4x512xf32> to vector<4xf32>
    %67 = vector.shape_cast %66 : vector<4xf32> to vector<4x1xf32>
    %cst_36 = arith.constant 5.120000e+02 : f32
    %68 = vector.broadcast %cst_36 : f32 to vector<4x1xf32>
    %69 = arith.divf %67, %68 : vector<4x1xf32>
    %70 = arith.mulf %3, %3 : vector<4x512xf32>
    %cst_37 = arith.constant dense<0.000000e+00> : vector<4xf32>
    %71 = vector.multi_reduction <add>, %70, %cst_37 [1] : vector<4x512xf32> to vector<4xf32>
    %72 = vector.shape_cast %71 : vector<4xf32> to vector<4x1xf32>
    %cst_38 = arith.constant 5.120000e+02 : f32
    %73 = vector.broadcast %cst_38 : f32 to vector<4x1xf32>
    %74 = arith.divf %72, %73 : vector<4x1xf32>
    %75 = arith.mulf %69, %69 : vector<4x1xf32>
    %76 = arith.subf %74, %75 : vector<4x1xf32>
    %cst_39 = arith.constant 0.000000e+00 : f32
    %77 = vector.broadcast %cst_39 : f32 to vector<4x1xf32>
    %78 = arith.maximumf %76, %77 : vector<4x1xf32>
    %79 = vector.broadcast %69 : vector<4x1xf32> to vector<4x512xf32>
    %80 = arith.subf %3, %79 : vector<4x512xf32>
    %cst_40 = arith.constant 9.99999997E-7 : f32
    %81 = vector.broadcast %cst_40 : f32 to vector<4x1xf32>
    %82 = arith.addf %78, %81 : vector<4x1xf32>
    %83 = math.rsqrt %82 : vector<4x1xf32>
    %84 = vector.broadcast %83 : vector<4x1xf32> to vector<4x512xf32>
    %85 = arith.mulf %80, %84 : vector<4x512xf32>
    %86 = vector.broadcast %62 : vector<4x1xf32> to vector<4x512xf32>
    %87 = arith.mulf %85, %86 : vector<4x512xf32>
    %88 = vector.broadcast %65 : vector<4x1xf32> to vector<4x512xf32>
    %89 = arith.addf %87, %88 : vector<4x512xf32>
    %c0_41 = arith.constant 0 : index
    %c0_42 = arith.constant 0 : index
    %c0_43 = arith.constant 0 : index
    %c0_44 = arith.constant 0 : index
    %90 = vector.load %arg2[%c0_41, %c0_42, %c0_43, %c0_44] : memref<3x3x16x16xf32, #tpu.memory_space<vmem>>, vector<1x1x16x16xf32>
    %91 = vector.shape_cast %90 : vector<1x1x16x16xf32> to vector<16x16xf32>
    %92 = vector.extract_strided_slice %91 {offsets = [0, 0], sizes = [16, 4], strides = [1, 1]} : vector<16x16xf32> to vector<16x4xf32>
    %cst_45 = arith.constant dense<0.000000e+00> : vector<16x512xf32>
    %93 = tpu.matmul %92, %89, %cst_45 {dimension_numbers = #tpu.dot_dimension_numbers<[1], [0], [0], [1], [0, 0, 1, 1], [], []>} : vector<16x4xf32>, vector<4x512xf32>, vector<16x512xf32> -> vector<16x512xf32>
    %c0_46 = arith.constant 0 : index
    %c2_47 = arith.constant 2 : index
    %c0_48 = arith.constant 0 : index
    %c0_49 = arith.constant 0 : index
    %94 = vector.load %arg3[%c0_46, %c2_47, %c0_48, %c0_49] : memref<3x8x16x1xf32, #tpu.memory_space<vmem>>, vector<1x1x16x1xf32>
    %95 = vector.shape_cast %94 : vector<1x1x16x1xf32> to vector<16x1xf32>
    %c0_50 = arith.constant 0 : index
    %c3_51 = arith.constant 3 : index
    %c0_52 = arith.constant 0 : index
    %c0_53 = arith.constant 0 : index
    %96 = vector.load %arg3[%c0_50, %c3_51, %c0_52, %c0_53] : memref<3x8x16x1xf32, #tpu.memory_space<vmem>>, vector<1x1x16x1xf32>
    %97 = vector.shape_cast %96 : vector<1x1x16x1xf32> to vector<16x1xf32>
    %cst_54 = arith.constant dense<0.000000e+00> : vector<16xf32>
    %98 = vector.multi_reduction <add>, %93, %cst_54 [1] : vector<16x512xf32> to vector<16xf32>
    %99 = vector.shape_cast %98 : vector<16xf32> to vector<16x1xf32>
    %cst_55 = arith.constant 5.120000e+02 : f32
    %100 = vector.broadcast %cst_55 : f32 to vector<16x1xf32>
    %101 = arith.divf %99, %100 : vector<16x1xf32>
    %102 = arith.mulf %93, %93 : vector<16x512xf32>
    %cst_56 = arith.constant dense<0.000000e+00> : vector<16xf32>
    %103 = vector.multi_reduction <add>, %102, %cst_56 [1] : vector<16x512xf32> to vector<16xf32>
    %104 = vector.shape_cast %103 : vector<16xf32> to vector<16x1xf32>
    %cst_57 = arith.constant 5.120000e+02 : f32
    %105 = vector.broadcast %cst_57 : f32 to vector<16x1xf32>
    %106 = arith.divf %104, %105 : vector<16x1xf32>
    %107 = arith.mulf %101, %101 : vector<16x1xf32>
    %108 = arith.subf %106, %107 : vector<16x1xf32>
    %cst_58 = arith.constant 0.000000e+00 : f32
    %109 = vector.broadcast %cst_58 : f32 to vector<16x1xf32>
    %110 = arith.maximumf %108, %109 : vector<16x1xf32>
    %111 = vector.broadcast %101 : vector<16x1xf32> to vector<16x512xf32>
    %112 = arith.subf %93, %111 : vector<16x512xf32>
    %cst_59 = arith.constant 9.99999997E-7 : f32
    %113 = vector.broadcast %cst_59 : f32 to vector<16x1xf32>
    %114 = arith.addf %110, %113 : vector<16x1xf32>
    %115 = math.rsqrt %114 : vector<16x1xf32>
    %116 = vector.broadcast %115 : vector<16x1xf32> to vector<16x512xf32>
    %117 = arith.mulf %112, %116 : vector<16x512xf32>
    %118 = vector.broadcast %95 : vector<16x1xf32> to vector<16x512xf32>
    %119 = arith.mulf %117, %118 : vector<16x512xf32>
    %120 = vector.broadcast %97 : vector<16x1xf32> to vector<16x512xf32>
    %121 = arith.addf %119, %120 : vector<16x512xf32>
    %cst_60 = arith.constant 0.000000e+00 : f32
    %122 = vector.broadcast %cst_60 : f32 to vector<16x512xf32>
    %123 = arith.maximumf %121, %122 : vector<16x512xf32>
    %c0_61 = arith.constant 0 : index
    %c1_62 = arith.constant 1 : index
    %c0_63 = arith.constant 0 : index
    %c0_64 = arith.constant 0 : index
    %124 = vector.load %arg2[%c0_61, %c1_62, %c0_63, %c0_64] : memref<3x3x16x16xf32, #tpu.memory_space<vmem>>, vector<1x1x16x16xf32>
    %125 = vector.shape_cast %124 : vector<1x1x16x16xf32> to vector<16x16xf32>
    %cst_65 = arith.constant dense<0.000000e+00> : vector<16x512xf32>
    %126 = tpu.matmul %125, %123, %cst_65 {dimension_numbers = #tpu.dot_dimension_numbers<[1], [0], [0], [1], [0, 0, 1, 1], [], []>} : vector<16x16xf32>, vector<16x512xf32>, vector<16x512xf32> -> vector<16x512xf32>
    %c0_66 = arith.constant 0 : index
    %c4_67 = arith.constant 4 : index
    %c0_68 = arith.constant 0 : index
    %c0_69 = arith.constant 0 : index
    %127 = vector.load %arg3[%c0_66, %c4_67, %c0_68, %c0_69] : memref<3x8x16x1xf32, #tpu.memory_space<vmem>>, vector<1x1x16x1xf32>
    %128 = vector.shape_cast %127 : vector<1x1x16x1xf32> to vector<16x1xf32>
    %c0_70 = arith.constant 0 : index
    %c5 = arith.constant 5 : index
    %c0_71 = arith.constant 0 : index
    %c0_72 = arith.constant 0 : index
    %129 = vector.load %arg3[%c0_70, %c5, %c0_71, %c0_72] : memref<3x8x16x1xf32, #tpu.memory_space<vmem>>, vector<1x1x16x1xf32>
    %130 = vector.shape_cast %129 : vector<1x1x16x1xf32> to vector<16x1xf32>
    %cst_73 = arith.constant dense<0.000000e+00> : vector<16xf32>
    %131 = vector.multi_reduction <add>, %126, %cst_73 [1] : vector<16x512xf32> to vector<16xf32>
    %132 = vector.shape_cast %131 : vector<16xf32> to vector<16x1xf32>
    %cst_74 = arith.constant 5.120000e+02 : f32
    %133 = vector.broadcast %cst_74 : f32 to vector<16x1xf32>
    %134 = arith.divf %132, %133 : vector<16x1xf32>
    %135 = arith.mulf %126, %126 : vector<16x512xf32>
    %cst_75 = arith.constant dense<0.000000e+00> : vector<16xf32>
    %136 = vector.multi_reduction <add>, %135, %cst_75 [1] : vector<16x512xf32> to vector<16xf32>
    %137 = vector.shape_cast %136 : vector<16xf32> to vector<16x1xf32>
    %cst_76 = arith.constant 5.120000e+02 : f32
    %138 = vector.broadcast %cst_76 : f32 to vector<16x1xf32>
    %139 = arith.divf %137, %138 : vector<16x1xf32>
    %140 = arith.mulf %134, %134 : vector<16x1xf32>
    %141 = arith.subf %139, %140 : vector<16x1xf32>
    %cst_77 = arith.constant 0.000000e+00 : f32
    %142 = vector.broadcast %cst_77 : f32 to vector<16x1xf32>
    %143 = arith.maximumf %141, %142 : vector<16x1xf32>
    %144 = vector.broadcast %134 : vector<16x1xf32> to vector<16x512xf32>
    %145 = arith.subf %126, %144 : vector<16x512xf32>
    %cst_78 = arith.constant 9.99999997E-7 : f32
    %146 = vector.broadcast %cst_78 : f32 to vector<16x1xf32>
    %147 = arith.addf %143, %146 : vector<16x1xf32>
    %148 = math.rsqrt %147 : vector<16x1xf32>
    %149 = vector.broadcast %148 : vector<16x1xf32> to vector<16x512xf32>
    %150 = arith.mulf %145, %149 : vector<16x512xf32>
    %151 = vector.broadcast %128 : vector<16x1xf32> to vector<16x512xf32>
    %152 = arith.mulf %150, %151 : vector<16x512xf32>
    %153 = vector.broadcast %130 : vector<16x1xf32> to vector<16x512xf32>
    %154 = arith.addf %152, %153 : vector<16x512xf32>
    %cst_79 = arith.constant 0.000000e+00 : f32
    %155 = vector.broadcast %cst_79 : f32 to vector<16x512xf32>
    %156 = arith.maximumf %154, %155 : vector<16x512xf32>
    %c0_80 = arith.constant 0 : index
    %c2_81 = arith.constant 2 : index
    %c0_82 = arith.constant 0 : index
    %c0_83 = arith.constant 0 : index
    %157 = vector.load %arg2[%c0_80, %c2_81, %c0_82, %c0_83] : memref<3x3x16x16xf32, #tpu.memory_space<vmem>>, vector<1x1x16x16xf32>
    %158 = vector.shape_cast %157 : vector<1x1x16x16xf32> to vector<16x16xf32>
    %159 = vector.extract_strided_slice %158 {offsets = [0, 0], sizes = [4, 16], strides = [1, 1]} : vector<16x16xf32> to vector<4x16xf32>
    %cst_84 = arith.constant dense<0.000000e+00> : vector<4x512xf32>
    %160 = tpu.matmul %159, %156, %cst_84 {dimension_numbers = #tpu.dot_dimension_numbers<[1], [0], [0], [1], [0, 0, 1, 1], [], []>} : vector<4x16xf32>, vector<16x512xf32>, vector<4x512xf32> -> vector<4x512xf32>
    %c0_85 = arith.constant 0 : index
    %c6 = arith.constant 6 : index
    %c0_86 = arith.constant 0 : index
    %c0_87 = arith.constant 0 : index
    %161 = vector.load %arg3[%c0_85, %c6, %c0_86, %c0_87] : memref<3x8x16x1xf32, #tpu.memory_space<vmem>>, vector<1x1x16x1xf32>
    %162 = vector.shape_cast %161 : vector<1x1x16x1xf32> to vector<16x1xf32>
    %163 = vector.extract_strided_slice %162 {offsets = [0, 0], sizes = [4, 1], strides = [1, 1]} : vector<16x1xf32> to vector<4x1xf32>
    %c0_88 = arith.constant 0 : index
    %c7 = arith.constant 7 : index
    %c0_89 = arith.constant 0 : index
    %c0_90 = arith.constant 0 : index
    %164 = vector.load %arg3[%c0_88, %c7, %c0_89, %c0_90] : memref<3x8x16x1xf32, #tpu.memory_space<vmem>>, vector<1x1x16x1xf32>
    %165 = vector.shape_cast %164 : vector<1x1x16x1xf32> to vector<16x1xf32>
    %166 = vector.extract_strided_slice %165 {offsets = [0, 0], sizes = [4, 1], strides = [1, 1]} : vector<16x1xf32> to vector<4x1xf32>
    %cst_91 = arith.constant dense<0.000000e+00> : vector<4xf32>
    %167 = vector.multi_reduction <add>, %160, %cst_91 [1] : vector<4x512xf32> to vector<4xf32>
    %168 = vector.shape_cast %167 : vector<4xf32> to vector<4x1xf32>
    %cst_92 = arith.constant 5.120000e+02 : f32
    %169 = vector.broadcast %cst_92 : f32 to vector<4x1xf32>
    %170 = arith.divf %168, %169 : vector<4x1xf32>
    %171 = arith.mulf %160, %160 : vector<4x512xf32>
    %cst_93 = arith.constant dense<0.000000e+00> : vector<4xf32>
    %172 = vector.multi_reduction <add>, %171, %cst_93 [1] : vector<4x512xf32> to vector<4xf32>
    %173 = vector.shape_cast %172 : vector<4xf32> to vector<4x1xf32>
    %cst_94 = arith.constant 5.120000e+02 : f32
    %174 = vector.broadcast %cst_94 : f32 to vector<4x1xf32>
    %175 = arith.divf %173, %174 : vector<4x1xf32>
    %176 = arith.mulf %170, %170 : vector<4x1xf32>
    %177 = arith.subf %175, %176 : vector<4x1xf32>
    %cst_95 = arith.constant 0.000000e+00 : f32
    %178 = vector.broadcast %cst_95 : f32 to vector<4x1xf32>
    %179 = arith.maximumf %177, %178 : vector<4x1xf32>
    %180 = vector.broadcast %170 : vector<4x1xf32> to vector<4x512xf32>
    %181 = arith.subf %160, %180 : vector<4x512xf32>
    %cst_96 = arith.constant 9.99999997E-7 : f32
    %182 = vector.broadcast %cst_96 : f32 to vector<4x1xf32>
    %183 = arith.addf %179, %182 : vector<4x1xf32>
    %184 = math.rsqrt %183 : vector<4x1xf32>
    %185 = vector.broadcast %184 : vector<4x1xf32> to vector<4x512xf32>
    %186 = arith.mulf %181, %185 : vector<4x512xf32>
    %187 = vector.broadcast %163 : vector<4x1xf32> to vector<4x512xf32>
    %188 = arith.mulf %186, %187 : vector<4x512xf32>
    %189 = vector.broadcast %166 : vector<4x1xf32> to vector<4x512xf32>
    %190 = arith.addf %188, %189 : vector<4x512xf32>
    %cst_97 = arith.constant 2.500000e-01 : f32
    %191 = vector.broadcast %cst_97 : f32 to vector<4x512xf32>
    %192 = arith.mulf %190, %191 : vector<4x512xf32>
    %193 = arith.mulf %192, %192 : vector<4x512xf32>
    %cst_98 = arith.constant dense<0.000000e+00> : vector<512xf32>
    %194 = vector.multi_reduction <add>, %193, %cst_98 [0] : vector<4x512xf32> to vector<512xf32>
    %195 = vector.shape_cast %194 : vector<512xf32> to vector<1x512xf32>
    %cst_99 = arith.constant 2.500000e-01 : f32
    %196 = vector.broadcast %cst_99 : f32 to vector<1x512xf32>
    %197 = arith.mulf %196, %195 : vector<1x512xf32>
    %198 = arith.addf %59, %197 : vector<1x512xf32>
    %c1_100 = arith.constant 1 : index
    %c0_101 = arith.constant 0 : index
    %c0_102 = arith.constant 0 : index
    %199 = vector.load %arg1[%c1_100, %c0_101, %c0_102] : memref<4x4x512xf32, #tpu.memory_space<vmem>>, vector<1x4x512xf32>
    %200 = vector.shape_cast %199 : vector<1x4x512xf32> to vector<4x512xf32>
    %201 = arith.mulf %192, %200 : vector<4x512xf32>
    %cst_103 = arith.constant dense<0.000000e+00> : vector<512xf32>
    %202 = vector.multi_reduction <add>, %201, %cst_103 [0] : vector<4x512xf32> to vector<512xf32>
    %203 = vector.shape_cast %202 : vector<512xf32> to vector<1x512xf32>
    %204 = arith.addf %198, %203 : vector<1x512xf32>
    %c1_104 = arith.constant 1 : index
    %c0_105 = arith.constant 0 : index
    %c0_106 = arith.constant 0 : index
    %c0_107 = arith.constant 0 : index
    %205 = vector.load %arg3[%c1_104, %c0_105, %c0_106, %c0_107] : memref<3x8x16x1xf32, #tpu.memory_space<vmem>>, vector<1x1x16x1xf32>
    %206 = vector.shape_cast %205 : vector<1x1x16x1xf32> to vector<16x1xf32>
    %207 = vector.extract_strided_slice %206 {offsets = [0, 0], sizes = [4, 1], strides = [1, 1]} : vector<16x1xf32> to vector<4x1xf32>
    %c1_108 = arith.constant 1 : index
    %c1_109 = arith.constant 1 : index
    %c0_110 = arith.constant 0 : index
    %c0_111 = arith.constant 0 : index
    %208 = vector.load %arg3[%c1_108, %c1_109, %c0_110, %c0_111] : memref<3x8x16x1xf32, #tpu.memory_space<vmem>>, vector<1x1x16x1xf32>
    %209 = vector.shape_cast %208 : vector<1x1x16x1xf32> to vector<16x1xf32>
    %210 = vector.extract_strided_slice %209 {offsets = [0, 0], sizes = [4, 1], strides = [1, 1]} : vector<16x1xf32> to vector<4x1xf32>
    %cst_112 = arith.constant dense<0.000000e+00> : vector<4xf32>
    %211 = vector.multi_reduction <add>, %8, %cst_112 [1] : vector<4x512xf32> to vector<4xf32>
    %212 = vector.shape_cast %211 : vector<4xf32> to vector<4x1xf32>
    %cst_113 = arith.constant 5.120000e+02 : f32
    %213 = vector.broadcast %cst_113 : f32 to vector<4x1xf32>
    %214 = arith.divf %212, %213 : vector<4x1xf32>
    %215 = arith.mulf %8, %8 : vector<4x512xf32>
    %cst_114 = arith.constant dense<0.000000e+00> : vector<4xf32>
    %216 = vector.multi_reduction <add>, %215, %cst_114 [1] : vector<4x512xf32> to vector<4xf32>
    %217 = vector.shape_cast %216 : vector<4xf32> to vector<4x1xf32>
    %cst_115 = arith.constant 5.120000e+02 : f32
    %218 = vector.broadcast %cst_115 : f32 to vector<4x1xf32>
    %219 = arith.divf %217, %218 : vector<4x1xf32>
    %220 = arith.mulf %214, %214 : vector<4x1xf32>
    %221 = arith.subf %219, %220 : vector<4x1xf32>
    %cst_116 = arith.constant 0.000000e+00 : f32
    %222 = vector.broadcast %cst_116 : f32 to vector<4x1xf32>
    %223 = arith.maximumf %221, %222 : vector<4x1xf32>
    %224 = vector.broadcast %214 : vector<4x1xf32> to vector<4x512xf32>
    %225 = arith.subf %8, %224 : vector<4x512xf32>
    %cst_117 = arith.constant 9.99999997E-7 : f32
    %226 = vector.broadcast %cst_117 : f32 to vector<4x1xf32>
    %227 = arith.addf %223, %226 : vector<4x1xf32>
    %228 = math.rsqrt %227 : vector<4x1xf32>
    %229 = vector.broadcast %228 : vector<4x1xf32> to vector<4x512xf32>
    %230 = arith.mulf %225, %229 : vector<4x512xf32>
    %231 = vector.broadcast %207 : vector<4x1xf32> to vector<4x512xf32>
    %232 = arith.mulf %230, %231 : vector<4x512xf32>
    %233 = vector.broadcast %210 : vector<4x1xf32> to vector<4x512xf32>
    %234 = arith.addf %232, %233 : vector<4x512xf32>
    %c1_118 = arith.constant 1 : index
    %c0_119 = arith.constant 0 : index
    %c0_120 = arith.constant 0 : index
    %c0_121 = arith.constant 0 : index
    %235 = vector.load %arg2[%c1_118, %c0_119, %c0_120, %c0_121] : memref<3x3x16x16xf32, #tpu.memory_space<vmem>>, vector<1x1x16x16xf32>
    %236 = vector.shape_cast %235 : vector<1x1x16x16xf32> to vector<16x16xf32>
    %237 = vector.extract_strided_slice %236 {offsets = [0, 0], sizes = [16, 4], strides = [1, 1]} : vector<16x16xf32> to vector<16x4xf32>
    %cst_122 = arith.constant dense<0.000000e+00> : vector<16x512xf32>
    %238 = tpu.matmul %237, %234, %cst_122 {dimension_numbers = #tpu.dot_dimension_numbers<[1], [0], [0], [1], [0, 0, 1, 1], [], []>} : vector<16x4xf32>, vector<4x512xf32>, vector<16x512xf32> -> vector<16x512xf32>
    %c1_123 = arith.constant 1 : index
    %c2_124 = arith.constant 2 : index
    %c0_125 = arith.constant 0 : index
    %c0_126 = arith.constant 0 : index
    %239 = vector.load %arg3[%c1_123, %c2_124, %c0_125, %c0_126] : memref<3x8x16x1xf32, #tpu.memory_space<vmem>>, vector<1x1x16x1xf32>
    %240 = vector.shape_cast %239 : vector<1x1x16x1xf32> to vector<16x1xf32>
    %c1_127 = arith.constant 1 : index
    %c3_128 = arith.constant 3 : index
    %c0_129 = arith.constant 0 : index
    %c0_130 = arith.constant 0 : index
    %241 = vector.load %arg3[%c1_127, %c3_128, %c0_129, %c0_130] : memref<3x8x16x1xf32, #tpu.memory_space<vmem>>, vector<1x1x16x1xf32>
    %242 = vector.shape_cast %241 : vector<1x1x16x1xf32> to vector<16x1xf32>
    %cst_131 = arith.constant dense<0.000000e+00> : vector<16xf32>
    %243 = vector.multi_reduction <add>, %238, %cst_131 [1] : vector<16x512xf32> to vector<16xf32>
    %244 = vector.shape_cast %243 : vector<16xf32> to vector<16x1xf32>
    %cst_132 = arith.constant 5.120000e+02 : f32
    %245 = vector.broadcast %cst_132 : f32 to vector<16x1xf32>
    %246 = arith.divf %244, %245 : vector<16x1xf32>
    %247 = arith.mulf %238, %238 : vector<16x512xf32>
    %cst_133 = arith.constant dense<0.000000e+00> : vector<16xf32>
    %248 = vector.multi_reduction <add>, %247, %cst_133 [1] : vector<16x512xf32> to vector<16xf32>
    %249 = vector.shape_cast %248 : vector<16xf32> to vector<16x1xf32>
    %cst_134 = arith.constant 5.120000e+02 : f32
    %250 = vector.broadcast %cst_134 : f32 to vector<16x1xf32>
    %251 = arith.divf %249, %250 : vector<16x1xf32>
    %252 = arith.mulf %246, %246 : vector<16x1xf32>
    %253 = arith.subf %251, %252 : vector<16x1xf32>
    %cst_135 = arith.constant 0.000000e+00 : f32
    %254 = vector.broadcast %cst_135 : f32 to vector<16x1xf32>
    %255 = arith.maximumf %253, %254 : vector<16x1xf32>
    %256 = vector.broadcast %246 : vector<16x1xf32> to vector<16x512xf32>
    %257 = arith.subf %238, %256 : vector<16x512xf32>
    %cst_136 = arith.constant 9.99999997E-7 : f32
    %258 = vector.broadcast %cst_136 : f32 to vector<16x1xf32>
    %259 = arith.addf %255, %258 : vector<16x1xf32>
    %260 = math.rsqrt %259 : vector<16x1xf32>
    %261 = vector.broadcast %260 : vector<16x1xf32> to vector<16x512xf32>
    %262 = arith.mulf %257, %261 : vector<16x512xf32>
    %263 = vector.broadcast %240 : vector<16x1xf32> to vector<16x512xf32>
    %264 = arith.mulf %262, %263 : vector<16x512xf32>
    %265 = vector.broadcast %242 : vector<16x1xf32> to vector<16x512xf32>
    %266 = arith.addf %264, %265 : vector<16x512xf32>
    %cst_137 = arith.constant 0.000000e+00 : f32
    %267 = vector.broadcast %cst_137 : f32 to vector<16x512xf32>
    %268 = arith.maximumf %266, %267 : vector<16x512xf32>
    %c1_138 = arith.constant 1 : index
    %c1_139 = arith.constant 1 : index
    %c0_140 = arith.constant 0 : index
    %c0_141 = arith.constant 0 : index
    %269 = vector.load %arg2[%c1_138, %c1_139, %c0_140, %c0_141] : memref<3x3x16x16xf32, #tpu.memory_space<vmem>>, vector<1x1x16x16xf32>
    %270 = vector.shape_cast %269 : vector<1x1x16x16xf32> to vector<16x16xf32>
    %cst_142 = arith.constant dense<0.000000e+00> : vector<16x512xf32>
    %271 = tpu.matmul %270, %268, %cst_142 {dimension_numbers = #tpu.dot_dimension_numbers<[1], [0], [0], [1], [0, 0, 1, 1], [], []>} : vector<16x16xf32>, vector<16x512xf32>, vector<16x512xf32> -> vector<16x512xf32>
    %c1_143 = arith.constant 1 : index
    %c4_144 = arith.constant 4 : index
    %c0_145 = arith.constant 0 : index
    %c0_146 = arith.constant 0 : index
    %272 = vector.load %arg3[%c1_143, %c4_144, %c0_145, %c0_146] : memref<3x8x16x1xf32, #tpu.memory_space<vmem>>, vector<1x1x16x1xf32>
    %273 = vector.shape_cast %272 : vector<1x1x16x1xf32> to vector<16x1xf32>
    %c1_147 = arith.constant 1 : index
    %c5_148 = arith.constant 5 : index
    %c0_149 = arith.constant 0 : index
    %c0_150 = arith.constant 0 : index
    %274 = vector.load %arg3[%c1_147, %c5_148, %c0_149, %c0_150] : memref<3x8x16x1xf32, #tpu.memory_space<vmem>>, vector<1x1x16x1xf32>
    %275 = vector.shape_cast %274 : vector<1x1x16x1xf32> to vector<16x1xf32>
    %cst_151 = arith.constant dense<0.000000e+00> : vector<16xf32>
    %276 = vector.multi_reduction <add>, %271, %cst_151 [1] : vector<16x512xf32> to vector<16xf32>
    %277 = vector.shape_cast %276 : vector<16xf32> to vector<16x1xf32>
    %cst_152 = arith.constant 5.120000e+02 : f32
    %278 = vector.broadcast %cst_152 : f32 to vector<16x1xf32>
    %279 = arith.divf %277, %278 : vector<16x1xf32>
    %280 = arith.mulf %271, %271 : vector<16x512xf32>
    %cst_153 = arith.constant dense<0.000000e+00> : vector<16xf32>
    %281 = vector.multi_reduction <add>, %280, %cst_153 [1] : vector<16x512xf32> to vector<16xf32>
    %282 = vector.shape_cast %281 : vector<16xf32> to vector<16x1xf32>
    %cst_154 = arith.constant 5.120000e+02 : f32
    %283 = vector.broadcast %cst_154 : f32 to vector<16x1xf32>
    %284 = arith.divf %282, %283 : vector<16x1xf32>
    %285 = arith.mulf %279, %279 : vector<16x1xf32>
    %286 = arith.subf %284, %285 : vector<16x1xf32>
    %cst_155 = arith.constant 0.000000e+00 : f32
    %287 = vector.broadcast %cst_155 : f32 to vector<16x1xf32>
    %288 = arith.maximumf %286, %287 : vector<16x1xf32>
    %289 = vector.broadcast %279 : vector<16x1xf32> to vector<16x512xf32>
    %290 = arith.subf %271, %289 : vector<16x512xf32>
    %cst_156 = arith.constant 9.99999997E-7 : f32
    %291 = vector.broadcast %cst_156 : f32 to vector<16x1xf32>
    %292 = arith.addf %288, %291 : vector<16x1xf32>
    %293 = math.rsqrt %292 : vector<16x1xf32>
    %294 = vector.broadcast %293 : vector<16x1xf32> to vector<16x512xf32>
    %295 = arith.mulf %290, %294 : vector<16x512xf32>
    %296 = vector.broadcast %273 : vector<16x1xf32> to vector<16x512xf32>
    %297 = arith.mulf %295, %296 : vector<16x512xf32>
    %298 = vector.broadcast %275 : vector<16x1xf32> to vector<16x512xf32>
    %299 = arith.addf %297, %298 : vector<16x512xf32>
    %cst_157 = arith.constant 0.000000e+00 : f32
    %300 = vector.broadcast %cst_157 : f32 to vector<16x512xf32>
    %301 = arith.maximumf %299, %300 : vector<16x512xf32>
    %c1_158 = arith.constant 1 : index
    %c2_159 = arith.constant 2 : index
    %c0_160 = arith.constant 0 : index
    %c0_161 = arith.constant 0 : index
    %302 = vector.load %arg2[%c1_158, %c2_159, %c0_160, %c0_161] : memref<3x3x16x16xf32, #tpu.memory_space<vmem>>, vector<1x1x16x16xf32>
    %303 = vector.shape_cast %302 : vector<1x1x16x16xf32> to vector<16x16xf32>
    %304 = vector.extract_strided_slice %303 {offsets = [0, 0], sizes = [4, 16], strides = [1, 1]} : vector<16x16xf32> to vector<4x16xf32>
    %cst_162 = arith.constant dense<0.000000e+00> : vector<4x512xf32>
    %305 = tpu.matmul %304, %301, %cst_162 {dimension_numbers = #tpu.dot_dimension_numbers<[1], [0], [0], [1], [0, 0, 1, 1], [], []>} : vector<4x16xf32>, vector<16x512xf32>, vector<4x512xf32> -> vector<4x512xf32>
    %c1_163 = arith.constant 1 : index
    %c6_164 = arith.constant 6 : index
    %c0_165 = arith.constant 0 : index
    %c0_166 = arith.constant 0 : index
    %306 = vector.load %arg3[%c1_163, %c6_164, %c0_165, %c0_166] : memref<3x8x16x1xf32, #tpu.memory_space<vmem>>, vector<1x1x16x1xf32>
    %307 = vector.shape_cast %306 : vector<1x1x16x1xf32> to vector<16x1xf32>
    %308 = vector.extract_strided_slice %307 {offsets = [0, 0], sizes = [4, 1], strides = [1, 1]} : vector<16x1xf32> to vector<4x1xf32>
    %c1_167 = arith.constant 1 : index
    %c7_168 = arith.constant 7 : index
    %c0_169 = arith.constant 0 : index
    %c0_170 = arith.constant 0 : index
    %309 = vector.load %arg3[%c1_167, %c7_168, %c0_169, %c0_170] : memref<3x8x16x1xf32, #tpu.memory_space<vmem>>, vector<1x1x16x1xf32>
    %310 = vector.shape_cast %309 : vector<1x1x16x1xf32> to vector<16x1xf32>
    %311 = vector.extract_strided_slice %310 {offsets = [0, 0], sizes = [4, 1], strides = [1, 1]} : vector<16x1xf32> to vector<4x1xf32>
    %cst_171 = arith.constant dense<0.000000e+00> : vector<4xf32>
    %312 = vector.multi_reduction <add>, %305, %cst_171 [1] : vector<4x512xf32> to vector<4xf32>
    %313 = vector.shape_cast %312 : vector<4xf32> to vector<4x1xf32>
    %cst_172 = arith.constant 5.120000e+02 : f32
    %314 = vector.broadcast %cst_172 : f32 to vector<4x1xf32>
    %315 = arith.divf %313, %314 : vector<4x1xf32>
    %316 = arith.mulf %305, %305 : vector<4x512xf32>
    %cst_173 = arith.constant dense<0.000000e+00> : vector<4xf32>
    %317 = vector.multi_reduction <add>, %316, %cst_173 [1] : vector<4x512xf32> to vector<4xf32>
    %318 = vector.shape_cast %317 : vector<4xf32> to vector<4x1xf32>
    %cst_174 = arith.constant 5.120000e+02 : f32
    %319 = vector.broadcast %cst_174 : f32 to vector<4x1xf32>
    %320 = arith.divf %318, %319 : vector<4x1xf32>
    %321 = arith.mulf %315, %315 : vector<4x1xf32>
    %322 = arith.subf %320, %321 : vector<4x1xf32>
    %cst_175 = arith.constant 0.000000e+00 : f32
    %323 = vector.broadcast %cst_175 : f32 to vector<4x1xf32>
    %324 = arith.maximumf %322, %323 : vector<4x1xf32>
    %325 = vector.broadcast %315 : vector<4x1xf32> to vector<4x512xf32>
    %326 = arith.subf %305, %325 : vector<4x512xf32>
    %cst_176 = arith.constant 9.99999997E-7 : f32
    %327 = vector.broadcast %cst_176 : f32 to vector<4x1xf32>
    %328 = arith.addf %324, %327 : vector<4x1xf32>
    %329 = math.rsqrt %328 : vector<4x1xf32>
    %330 = vector.broadcast %329 : vector<4x1xf32> to vector<4x512xf32>
    %331 = arith.mulf %326, %330 : vector<4x512xf32>
    %332 = vector.broadcast %308 : vector<4x1xf32> to vector<4x512xf32>
    %333 = arith.mulf %331, %332 : vector<4x512xf32>
    %334 = vector.broadcast %311 : vector<4x1xf32> to vector<4x512xf32>
    %335 = arith.addf %333, %334 : vector<4x512xf32>
    %cst_177 = arith.constant 2.500000e-01 : f32
    %336 = vector.broadcast %cst_177 : f32 to vector<4x512xf32>
    %337 = arith.mulf %335, %336 : vector<4x512xf32>
    %338 = arith.mulf %337, %337 : vector<4x512xf32>
    %cst_178 = arith.constant dense<0.000000e+00> : vector<512xf32>
    %339 = vector.multi_reduction <add>, %338, %cst_178 [0] : vector<4x512xf32> to vector<512xf32>
    %340 = vector.shape_cast %339 : vector<512xf32> to vector<1x512xf32>
    %cst_179 = arith.constant 2.500000e-01 : f32
    %341 = vector.broadcast %cst_179 : f32 to vector<1x512xf32>
    %342 = arith.mulf %341, %340 : vector<1x512xf32>
    %343 = arith.addf %204, %342 : vector<1x512xf32>
    %c2_180 = arith.constant 2 : index
    %c0_181 = arith.constant 0 : index
    %c0_182 = arith.constant 0 : index
    %344 = vector.load %arg1[%c2_180, %c0_181, %c0_182] : memref<4x4x512xf32, #tpu.memory_space<vmem>>, vector<1x4x512xf32>
    %345 = vector.shape_cast %344 : vector<1x4x512xf32> to vector<4x512xf32>
    %346 = arith.mulf %337, %345 : vector<4x512xf32>
    %cst_183 = arith.constant dense<0.000000e+00> : vector<512xf32>
    %347 = vector.multi_reduction <add>, %346, %cst_183 [0] : vector<4x512xf32> to vector<512xf32>
    %348 = vector.shape_cast %347 : vector<512xf32> to vector<1x512xf32>
    %349 = arith.addf %343, %348 : vector<1x512xf32>
    %c2_184 = arith.constant 2 : index
    %c0_185 = arith.constant 0 : index
    %c0_186 = arith.constant 0 : index
    %c0_187 = arith.constant 0 : index
    %350 = vector.load %arg3[%c2_184, %c0_185, %c0_186, %c0_187] : memref<3x8x16x1xf32, #tpu.memory_space<vmem>>, vector<1x1x16x1xf32>
    %351 = vector.shape_cast %350 : vector<1x1x16x1xf32> to vector<16x1xf32>
    %352 = vector.extract_strided_slice %351 {offsets = [0, 0], sizes = [4, 1], strides = [1, 1]} : vector<16x1xf32> to vector<4x1xf32>
    %c2_188 = arith.constant 2 : index
    %c1_189 = arith.constant 1 : index
    %c0_190 = arith.constant 0 : index
    %c0_191 = arith.constant 0 : index
    %353 = vector.load %arg3[%c2_188, %c1_189, %c0_190, %c0_191] : memref<3x8x16x1xf32, #tpu.memory_space<vmem>>, vector<1x1x16x1xf32>
    %354 = vector.shape_cast %353 : vector<1x1x16x1xf32> to vector<16x1xf32>
    %355 = vector.extract_strided_slice %354 {offsets = [0, 0], sizes = [4, 1], strides = [1, 1]} : vector<16x1xf32> to vector<4x1xf32>
    %cst_192 = arith.constant dense<0.000000e+00> : vector<4xf32>
    %356 = vector.multi_reduction <add>, %13, %cst_192 [1] : vector<4x512xf32> to vector<4xf32>
    %357 = vector.shape_cast %356 : vector<4xf32> to vector<4x1xf32>
    %cst_193 = arith.constant 5.120000e+02 : f32
    %358 = vector.broadcast %cst_193 : f32 to vector<4x1xf32>
    %359 = arith.divf %357, %358 : vector<4x1xf32>
    %360 = arith.mulf %13, %13 : vector<4x512xf32>
    %cst_194 = arith.constant dense<0.000000e+00> : vector<4xf32>
    %361 = vector.multi_reduction <add>, %360, %cst_194 [1] : vector<4x512xf32> to vector<4xf32>
    %362 = vector.shape_cast %361 : vector<4xf32> to vector<4x1xf32>
    %cst_195 = arith.constant 5.120000e+02 : f32
    %363 = vector.broadcast %cst_195 : f32 to vector<4x1xf32>
    %364 = arith.divf %362, %363 : vector<4x1xf32>
    %365 = arith.mulf %359, %359 : vector<4x1xf32>
    %366 = arith.subf %364, %365 : vector<4x1xf32>
    %cst_196 = arith.constant 0.000000e+00 : f32
    %367 = vector.broadcast %cst_196 : f32 to vector<4x1xf32>
    %368 = arith.maximumf %366, %367 : vector<4x1xf32>
    %369 = vector.broadcast %359 : vector<4x1xf32> to vector<4x512xf32>
    %370 = arith.subf %13, %369 : vector<4x512xf32>
    %cst_197 = arith.constant 9.99999997E-7 : f32
    %371 = vector.broadcast %cst_197 : f32 to vector<4x1xf32>
    %372 = arith.addf %368, %371 : vector<4x1xf32>
    %373 = math.rsqrt %372 : vector<4x1xf32>
    %374 = vector.broadcast %373 : vector<4x1xf32> to vector<4x512xf32>
    %375 = arith.mulf %370, %374 : vector<4x512xf32>
    %376 = vector.broadcast %352 : vector<4x1xf32> to vector<4x512xf32>
    %377 = arith.mulf %375, %376 : vector<4x512xf32>
    %378 = vector.broadcast %355 : vector<4x1xf32> to vector<4x512xf32>
    %379 = arith.addf %377, %378 : vector<4x512xf32>
    %c2_198 = arith.constant 2 : index
    %c0_199 = arith.constant 0 : index
    %c0_200 = arith.constant 0 : index
    %c0_201 = arith.constant 0 : index
    %380 = vector.load %arg2[%c2_198, %c0_199, %c0_200, %c0_201] : memref<3x3x16x16xf32, #tpu.memory_space<vmem>>, vector<1x1x16x16xf32>
    %381 = vector.shape_cast %380 : vector<1x1x16x16xf32> to vector<16x16xf32>
    %382 = vector.extract_strided_slice %381 {offsets = [0, 0], sizes = [16, 4], strides = [1, 1]} : vector<16x16xf32> to vector<16x4xf32>
    %cst_202 = arith.constant dense<0.000000e+00> : vector<16x512xf32>
    %383 = tpu.matmul %382, %379, %cst_202 {dimension_numbers = #tpu.dot_dimension_numbers<[1], [0], [0], [1], [0, 0, 1, 1], [], []>} : vector<16x4xf32>, vector<4x512xf32>, vector<16x512xf32> -> vector<16x512xf32>
    %c2_203 = arith.constant 2 : index
    %c2_204 = arith.constant 2 : index
    %c0_205 = arith.constant 0 : index
    %c0_206 = arith.constant 0 : index
    %384 = vector.load %arg3[%c2_203, %c2_204, %c0_205, %c0_206] : memref<3x8x16x1xf32, #tpu.memory_space<vmem>>, vector<1x1x16x1xf32>
    %385 = vector.shape_cast %384 : vector<1x1x16x1xf32> to vector<16x1xf32>
    %c2_207 = arith.constant 2 : index
    %c3_208 = arith.constant 3 : index
    %c0_209 = arith.constant 0 : index
    %c0_210 = arith.constant 0 : index
    %386 = vector.load %arg3[%c2_207, %c3_208, %c0_209, %c0_210] : memref<3x8x16x1xf32, #tpu.memory_space<vmem>>, vector<1x1x16x1xf32>
    %387 = vector.shape_cast %386 : vector<1x1x16x1xf32> to vector<16x1xf32>
    %cst_211 = arith.constant dense<0.000000e+00> : vector<16xf32>
    %388 = vector.multi_reduction <add>, %383, %cst_211 [1] : vector<16x512xf32> to vector<16xf32>
    %389 = vector.shape_cast %388 : vector<16xf32> to vector<16x1xf32>
    %cst_212 = arith.constant 5.120000e+02 : f32
    %390 = vector.broadcast %cst_212 : f32 to vector<16x1xf32>
    %391 = arith.divf %389, %390 : vector<16x1xf32>
    %392 = arith.mulf %383, %383 : vector<16x512xf32>
    %cst_213 = arith.constant dense<0.000000e+00> : vector<16xf32>
    %393 = vector.multi_reduction <add>, %392, %cst_213 [1] : vector<16x512xf32> to vector<16xf32>
    %394 = vector.shape_cast %393 : vector<16xf32> to vector<16x1xf32>
    %cst_214 = arith.constant 5.120000e+02 : f32
    %395 = vector.broadcast %cst_214 : f32 to vector<16x1xf32>
    %396 = arith.divf %394, %395 : vector<16x1xf32>
    %397 = arith.mulf %391, %391 : vector<16x1xf32>
    %398 = arith.subf %396, %397 : vector<16x1xf32>
    %cst_215 = arith.constant 0.000000e+00 : f32
    %399 = vector.broadcast %cst_215 : f32 to vector<16x1xf32>
    %400 = arith.maximumf %398, %399 : vector<16x1xf32>
    %401 = vector.broadcast %391 : vector<16x1xf32> to vector<16x512xf32>
    %402 = arith.subf %383, %401 : vector<16x512xf32>
    %cst_216 = arith.constant 9.99999997E-7 : f32
    %403 = vector.broadcast %cst_216 : f32 to vector<16x1xf32>
    %404 = arith.addf %400, %403 : vector<16x1xf32>
    %405 = math.rsqrt %404 : vector<16x1xf32>
    %406 = vector.broadcast %405 : vector<16x1xf32> to vector<16x512xf32>
    %407 = arith.mulf %402, %406 : vector<16x512xf32>
    %408 = vector.broadcast %385 : vector<16x1xf32> to vector<16x512xf32>
    %409 = arith.mulf %407, %408 : vector<16x512xf32>
    %410 = vector.broadcast %387 : vector<16x1xf32> to vector<16x512xf32>
    %411 = arith.addf %409, %410 : vector<16x512xf32>
    %cst_217 = arith.constant 0.000000e+00 : f32
    %412 = vector.broadcast %cst_217 : f32 to vector<16x512xf32>
    %413 = arith.maximumf %411, %412 : vector<16x512xf32>
    %c2_218 = arith.constant 2 : index
    %c1_219 = arith.constant 1 : index
    %c0_220 = arith.constant 0 : index
    %c0_221 = arith.constant 0 : index
    %414 = vector.load %arg2[%c2_218, %c1_219, %c0_220, %c0_221] : memref<3x3x16x16xf32, #tpu.memory_space<vmem>>, vector<1x1x16x16xf32>
    %415 = vector.shape_cast %414 : vector<1x1x16x16xf32> to vector<16x16xf32>
    %cst_222 = arith.constant dense<0.000000e+00> : vector<16x512xf32>
    %416 = tpu.matmul %415, %413, %cst_222 {dimension_numbers = #tpu.dot_dimension_numbers<[1], [0], [0], [1], [0, 0, 1, 1], [], []>} : vector<16x16xf32>, vector<16x512xf32>, vector<16x512xf32> -> vector<16x512xf32>
    %c2_223 = arith.constant 2 : index
    %c4_224 = arith.constant 4 : index
    %c0_225 = arith.constant 0 : index
    %c0_226 = arith.constant 0 : index
    %417 = vector.load %arg3[%c2_223, %c4_224, %c0_225, %c0_226] : memref<3x8x16x1xf32, #tpu.memory_space<vmem>>, vector<1x1x16x1xf32>
    %418 = vector.shape_cast %417 : vector<1x1x16x1xf32> to vector<16x1xf32>
    %c2_227 = arith.constant 2 : index
    %c5_228 = arith.constant 5 : index
    %c0_229 = arith.constant 0 : index
    %c0_230 = arith.constant 0 : index
    %419 = vector.load %arg3[%c2_227, %c5_228, %c0_229, %c0_230] : memref<3x8x16x1xf32, #tpu.memory_space<vmem>>, vector<1x1x16x1xf32>
    %420 = vector.shape_cast %419 : vector<1x1x16x1xf32> to vector<16x1xf32>
    %cst_231 = arith.constant dense<0.000000e+00> : vector<16xf32>
    %421 = vector.multi_reduction <add>, %416, %cst_231 [1] : vector<16x512xf32> to vector<16xf32>
    %422 = vector.shape_cast %421 : vector<16xf32> to vector<16x1xf32>
    %cst_232 = arith.constant 5.120000e+02 : f32
    %423 = vector.broadcast %cst_232 : f32 to vector<16x1xf32>
    %424 = arith.divf %422, %423 : vector<16x1xf32>
    %425 = arith.mulf %416, %416 : vector<16x512xf32>
    %cst_233 = arith.constant dense<0.000000e+00> : vector<16xf32>
    %426 = vector.multi_reduction <add>, %425, %cst_233 [1] : vector<16x512xf32> to vector<16xf32>
    %427 = vector.shape_cast %426 : vector<16xf32> to vector<16x1xf32>
    %cst_234 = arith.constant 5.120000e+02 : f32
    %428 = vector.broadcast %cst_234 : f32 to vector<16x1xf32>
    %429 = arith.divf %427, %428 : vector<16x1xf32>
    %430 = arith.mulf %424, %424 : vector<16x1xf32>
    %431 = arith.subf %429, %430 : vector<16x1xf32>
    %cst_235 = arith.constant 0.000000e+00 : f32
    %432 = vector.broadcast %cst_235 : f32 to vector<16x1xf32>
    %433 = arith.maximumf %431, %432 : vector<16x1xf32>
    %434 = vector.broadcast %424 : vector<16x1xf32> to vector<16x512xf32>
    %435 = arith.subf %416, %434 : vector<16x512xf32>
    %cst_236 = arith.constant 9.99999997E-7 : f32
    %436 = vector.broadcast %cst_236 : f32 to vector<16x1xf32>
    %437 = arith.addf %433, %436 : vector<16x1xf32>
    %438 = math.rsqrt %437 : vector<16x1xf32>
    %439 = vector.broadcast %438 : vector<16x1xf32> to vector<16x512xf32>
    %440 = arith.mulf %435, %439 : vector<16x512xf32>
    %441 = vector.broadcast %418 : vector<16x1xf32> to vector<16x512xf32>
    %442 = arith.mulf %440, %441 : vector<16x512xf32>
    %443 = vector.broadcast %420 : vector<16x1xf32> to vector<16x512xf32>
    %444 = arith.addf %442, %443 : vector<16x512xf32>
    %cst_237 = arith.constant 0.000000e+00 : f32
    %445 = vector.broadcast %cst_237 : f32 to vector<16x512xf32>
    %446 = arith.maximumf %444, %445 : vector<16x512xf32>
    %c2_238 = arith.constant 2 : index
    %c2_239 = arith.constant 2 : index
    %c0_240 = arith.constant 0 : index
    %c0_241 = arith.constant 0 : index
    %447 = vector.load %arg2[%c2_238, %c2_239, %c0_240, %c0_241] : memref<3x3x16x16xf32, #tpu.memory_space<vmem>>, vector<1x1x16x16xf32>
    %448 = vector.shape_cast %447 : vector<1x1x16x16xf32> to vector<16x16xf32>
    %449 = vector.extract_strided_slice %448 {offsets = [0, 0], sizes = [4, 16], strides = [1, 1]} : vector<16x16xf32> to vector<4x16xf32>
    %cst_242 = arith.constant dense<0.000000e+00> : vector<4x512xf32>
    %450 = tpu.matmul %449, %446, %cst_242 {dimension_numbers = #tpu.dot_dimension_numbers<[1], [0], [0], [1], [0, 0, 1, 1], [], []>} : vector<4x16xf32>, vector<16x512xf32>, vector<4x512xf32> -> vector<4x512xf32>
    %c2_243 = arith.constant 2 : index
    %c6_244 = arith.constant 6 : index
    %c0_245 = arith.constant 0 : index
    %c0_246 = arith.constant 0 : index
    %451 = vector.load %arg3[%c2_243, %c6_244, %c0_245, %c0_246] : memref<3x8x16x1xf32, #tpu.memory_space<vmem>>, vector<1x1x16x1xf32>
    %452 = vector.shape_cast %451 : vector<1x1x16x1xf32> to vector<16x1xf32>
    %453 = vector.extract_strided_slice %452 {offsets = [0, 0], sizes = [4, 1], strides = [1, 1]} : vector<16x1xf32> to vector<4x1xf32>
    %c2_247 = arith.constant 2 : index
    %c7_248 = arith.constant 7 : index
    %c0_249 = arith.constant 0 : index
    %c0_250 = arith.constant 0 : index
    %454 = vector.load %arg3[%c2_247, %c7_248, %c0_249, %c0_250] : memref<3x8x16x1xf32, #tpu.memory_space<vmem>>, vector<1x1x16x1xf32>
    %455 = vector.shape_cast %454 : vector<1x1x16x1xf32> to vector<16x1xf32>
    %456 = vector.extract_strided_slice %455 {offsets = [0, 0], sizes = [4, 1], strides = [1, 1]} : vector<16x1xf32> to vector<4x1xf32>
    %cst_251 = arith.constant dense<0.000000e+00> : vector<4xf32>
    %457 = vector.multi_reduction <add>, %450, %cst_251 [1] : vector<4x512xf32> to vector<4xf32>
    %458 = vector.shape_cast %457 : vector<4xf32> to vector<4x1xf32>
    %cst_252 = arith.constant 5.120000e+02 : f32
    %459 = vector.broadcast %cst_252 : f32 to vector<4x1xf32>
    %460 = arith.divf %458, %459 : vector<4x1xf32>
    %461 = arith.mulf %450, %450 : vector<4x512xf32>
    %cst_253 = arith.constant dense<0.000000e+00> : vector<4xf32>
    %462 = vector.multi_reduction <add>, %461, %cst_253 [1] : vector<4x512xf32> to vector<4xf32>
    %463 = vector.shape_cast %462 : vector<4xf32> to vector<4x1xf32>
    %cst_254 = arith.constant 5.120000e+02 : f32
    %464 = vector.broadcast %cst_254 : f32 to vector<4x1xf32>
    %465 = arith.divf %463, %464 : vector<4x1xf32>
    %466 = arith.mulf %460, %460 : vector<4x1xf32>
    %467 = arith.subf %465, %466 : vector<4x1xf32>
    %cst_255 = arith.constant 0.000000e+00 : f32
    %468 = vector.broadcast %cst_255 : f32 to vector<4x1xf32>
    %469 = arith.maximumf %467, %468 : vector<4x1xf32>
    %470 = vector.broadcast %460 : vector<4x1xf32> to vector<4x512xf32>
    %471 = arith.subf %450, %470 : vector<4x512xf32>
    %cst_256 = arith.constant 9.99999997E-7 : f32
    %472 = vector.broadcast %cst_256 : f32 to vector<4x1xf32>
    %473 = arith.addf %469, %472 : vector<4x1xf32>
    %474 = math.rsqrt %473 : vector<4x1xf32>
    %475 = vector.broadcast %474 : vector<4x1xf32> to vector<4x512xf32>
    %476 = arith.mulf %471, %475 : vector<4x512xf32>
    %477 = vector.broadcast %453 : vector<4x1xf32> to vector<4x512xf32>
    %478 = arith.mulf %476, %477 : vector<4x512xf32>
    %479 = vector.broadcast %456 : vector<4x1xf32> to vector<4x512xf32>
    %480 = arith.addf %478, %479 : vector<4x512xf32>
    %cst_257 = arith.constant 2.500000e-01 : f32
    %481 = vector.broadcast %cst_257 : f32 to vector<4x512xf32>
    %482 = arith.mulf %480, %481 : vector<4x512xf32>
    %483 = arith.mulf %482, %482 : vector<4x512xf32>
    %cst_258 = arith.constant dense<0.000000e+00> : vector<512xf32>
    %484 = vector.multi_reduction <add>, %483, %cst_258 [0] : vector<4x512xf32> to vector<512xf32>
    %485 = vector.shape_cast %484 : vector<512xf32> to vector<1x512xf32>
    %cst_259 = arith.constant 2.500000e-01 : f32
    %486 = vector.broadcast %cst_259 : f32 to vector<1x512xf32>
    %487 = arith.mulf %486, %485 : vector<1x512xf32>
    %488 = arith.addf %349, %487 : vector<1x512xf32>
    %c3_260 = arith.constant 3 : index
    %c0_261 = arith.constant 0 : index
    %c0_262 = arith.constant 0 : index
    %489 = vector.load %arg1[%c3_260, %c0_261, %c0_262] : memref<4x4x512xf32, #tpu.memory_space<vmem>>, vector<1x4x512xf32>
    %490 = vector.shape_cast %489 : vector<1x4x512xf32> to vector<4x512xf32>
    %491 = arith.mulf %482, %490 : vector<4x512xf32>
    %cst_263 = arith.constant dense<0.000000e+00> : vector<512xf32>
    %492 = vector.multi_reduction <add>, %491, %cst_263 [0] : vector<4x512xf32> to vector<512xf32>
    %493 = vector.shape_cast %492 : vector<512xf32> to vector<1x512xf32>
    %494 = arith.addf %488, %493 : vector<1x512xf32>
    %495 = arith.mulf %18, %18 : vector<4x512xf32>
    %cst_264 = arith.constant dense<0.000000e+00> : vector<512xf32>
    %496 = vector.multi_reduction <add>, %495, %cst_264 [0] : vector<4x512xf32> to vector<512xf32>
    %497 = vector.shape_cast %496 : vector<512xf32> to vector<1x512xf32>
    %cst_265 = arith.constant 1.000000e+00 : f32
    %498 = vector.broadcast %cst_265 : f32 to vector<1x512xf32>
    %499 = arith.addf %498, %497 : vector<1x512xf32>
    %cst_266 = arith.constant 5.000000e-01 : f32
    %500 = vector.broadcast %cst_266 : f32 to vector<1x512xf32>
    %501 = arith.mulf %500, %499 : vector<1x512xf32>
    %502 = math.log %501 : vector<1x512xf32>
    %503 = arith.subf %494, %502 : vector<1x512xf32>
    %504 = math.absf %503 : vector<1x512xf32>
    %cst_267 = arith.constant 5.000000e+01 : f32
    %505 = vector.broadcast %cst_267 : f32 to vector<1x512xf32>
    %506 = arith.cmpf olt, %504, %505 : vector<1x512xf32>
    %507 = arith.mulf %503, %503 : vector<1x512xf32>
    %cst_268 = arith.constant 1.000000e+02 : f32
    %508 = vector.broadcast %cst_268 : f32 to vector<1x512xf32>
    %509 = arith.mulf %508, %504 : vector<1x512xf32>
    %cst_269 = arith.constant 2.500000e+03 : f32
    %510 = vector.broadcast %cst_269 : f32 to vector<1x512xf32>
    %511 = arith.subf %509, %510 : vector<1x512xf32>
    %512 = arith.select %506, %507, %511 : vector<1x512xi1>, vector<1x512xf32>
    %cst_270 = arith.constant dense<0.000000e+00> : vector<1xf32>
    %513 = vector.multi_reduction <add>, %512, %cst_270 [1] : vector<1x512xf32> to vector<1xf32>
    %514 = vector.shape_cast %513 : vector<1xf32> to vector<1x1xf32>
    %cst_271 = arith.constant 0.001953125 : f32
    %515 = vector.broadcast %cst_271 : f32 to vector<1x1xf32>
    %516 = arith.mulf %514, %515 : vector<1x1xf32>
    %c0_272 = arith.constant 0 : index
    %c0_273 = arith.constant 0 : index
    %517 = vector.load %arg4[%c0_272, %c0_273] : memref<1x1xf32, #tpu.memory_space<vmem>>, vector<1x1xf32>
    tpu.vector_store %arg4[%c0_272, %c0_273], %516 {strides = array<i32>} : memref<1x1xf32, #tpu.memory_space<vmem>>, vector<1x1xf32>,
    return
  }
}

</mosaic_0001>

<llo_original>
// kernel: forward.1
$region0: #{forward.1}
  #allocation0 [shape = 'u32[]', space=smem, size = 0x4, offset = 0x4, fixed_abs, tag = 'smem constant byte address 0x4 - core index']
  #allocation1 [shape = 'u32[144,128]{1,0:T(1,128)}', space=vmem, size = 0x12000, scoped, tag = 'internal scratch']
  %s0 = inlined_call_operand.vmem [shape: f32[5], index: 0, kind: input, shape index: {}]
  %s1 = inlined_call_operand.vmem [shape: f32[4,4,512], index: 1, kind: input, shape index: {}]
  %s2 = inlined_call_operand.vmem [shape: f32[3,3,16,16], index: 2, kind: input, shape index: {}]
  %s3 = inlined_call_operand.vmem [shape: f32[3,8,16,1], index: 3, kind: input, shape index: {}]
  %s4 = inlined_call_operand.hbm [shape: f32[1,1], index: 4, kind: output, shape index: {}]
  %s5 = sld [smem:[#allocation0]]
  $region30: #{forward.1} parent=0
    _
  %s7 = ssub.s32 1, %s5
  %s8 = scalar_select 0, %s7, %s5
  $region1: #{forward.1} parent=0
    #allocation2 [shape = 'u8[512]{0}', space=smem, size = 0x200, scoped, tag = 'input window, operand 0, single buffered']
    #allocation3 [shape = 's32[1]{0}', space=sflag, size = 0x4, scoped, tag = 'scoped memory for forward.1']
    #allocation4 [shape = 's32[1]{0}', space=sflag, size = 0x4, scoped, tag = 'scoped memory for forward.1']
    #allocation5 [shape = 'u8[512]{0}', space=vmem, size = 0x400, scoped, tag = 'output window, operand 0, single buffered']
    %9 = vsyncpa [#allocation4], 0
    %10 = vsyncpa [#allocation3], 0
    // Predicated region
    $region2: #{forward.1} parent=1 // pred_check
      _
    $region3: #{forward.1} parent=1 // pred_check_branch
      %12 = sbr.rel (0) target = $region5
    $region4: #{forward.1} parent=1 // pred_region
      %s14 = ssub.s32 16, 16
      %15 = vsyncadd [#allocation4], %s14
      %s17 = sshll.u32 %s0, 4
      %s18 = int_to_ptr.vmem [resolvable:$true] %s17
      %20 = dma.vmem_to_smem %s18, 16, [#allocation2], [#allocation4]
    $region5: #{forward.1} parent=1 // pred_fallthru
      _
    // Predicated region
    $region6: #{forward.1} parent=1 // pred_check
      _
    $region7: #{forward.1} parent=1 // pred_check_branch
      %22 = sbr.rel (0) target = $region9
    $region8: #{forward.1} parent=1 // pred_region
      _
    $region9: #{forward.1} parent=1 // pred_fallthru
      _
    // Predicated region
    $region10: #{forward.1} parent=1 // pred_check
      _
    $region11: #{forward.1} parent=1 // pred_check_branch
      %24 = sbr.rel (0) target = $region13
    $region12: #{forward.1} parent=1 // pred_region
      _
    $region13: #{forward.1} parent=1 // pred_fallthru
      _
    // Predicated region
    $region14: #{forward.1} parent=1 // pred_check
      _
    $region15: #{forward.1} parent=1 // pred_check_branch
      %26 = sbr.rel (0) target = $region17
    $region16: #{forward.1} parent=1 // pred_region
      _
    $region17: #{forward.1} parent=1 // pred_fallthru
      _
    // Predicated region
    $region18: #{forward.1} parent=1 // pred_check
      _
    $region19: #{forward.1} parent=1 // pred_check_branch
      %28 = sbr.rel (0) target = $region21
    $region20: #{forward.1} parent=1 // pred_region
      %29 = dma.done [#allocation4], 16
    $region21: #{forward.1} parent=1 // pred_fallthru
      _
    %30 = sfence
    %v31 = vld [vmem:[%s1] sm:$0xff]
    %v32 = vld [vmem:[%s1 + $0x8] sm:$0xff]
    %v33 = vmul.f32 %v31, 1.4142135
    %v34 = vmul.f32 %v32, 1.4142135
    %s35 = scalar_lea.vmem %s1, 16
    %v36 = vld [vmem:[%s35] sm:$0xff]
    %v37 = vld [vmem:[%s35 + $0x8] sm:$0xff]
    %v38 = vmul.f32 %v36, 1.4142135
    %v39 = vmul.f32 %v37, 1.4142135
    %v40 = vadd.f32 %v33, %v38
    %v41 = vadd.f32 %v34, %v39
    %s42 = scalar_lea.vmem %s1, 32
    %v43 = vld [vmem:[%s42] sm:$0xff]
    %v44 = vld [vmem:[%s42 + $0x8] sm:$0xff]
    %v45 = vmul.f32 %v43, 1.4142135
    %v46 = vmul.f32 %v44, 1.4142135
    %v47 = vadd.f32 %v40, %v45
    %v48 = vadd.f32 %v41, %v46
    %s49 = scalar_lea.vmem %s1, 48
    %v50 = vld [vmem:[%s49] sm:$0xff]
    %v51 = vld [vmem:[%s49 + $0x8] sm:$0xff]
    %v52 = vmul.f32 %v50, 1.4142135
    %v53 = vmul.f32 %v51, 1.4142135
    %v54 = vadd.f32 %v47, %v52
    %v55 = vadd.f32 %v48, %v53
    %s56 = sld [smem:[#allocation2 + $0x1]]
    %s57 = smul.f32 %s56, %s56
    %v58 = vstv %s56
    %v59 = vmul.f32 %v58, %v31
    %v60 = vmul.f32 %v58, %v32
    %s61 = sld [smem:[#allocation2 + $0x2]]
    %s62 = smul.f32 %s61, %s61
    %s63 = sadd.f32 %s57, %s62
    %v64 = vstv %s61
    %v65 = vmul.f32 %v64, %v31
    %v66 = vmul.f32 %v64, %v32
    %v69 = vrot.slane %v65, 5
    %v70 = vrot.slane %v69, 4
    %v71 = vrot.slane %v66, 5
    %v72 = vrot.slane %v71, 4
    %v75 = vadd.f32 %v59, %v70
    %v76 = vadd.f32 %v60, %v72
    %s77 = sld [smem:[#allocation2 + $0x3]]
    %s78 = smul.f32 %s77, %s77
    %s79 = sadd.f32 %s63, %s78
    %v80 = vstv %s77
    %v81 = vmul.f32 %v80, %v31
    %v82 = vmul.f32 %v80, %v32
    %v85 = vrot.slane %v81, 6
    %v86 = vrot.slane %v85, 4
    %v87 = vrot.slane %v82, 6
    %v88 = vrot.slane %v87, 4
    %v91 = vadd.f32 %v75, %v86
    %v92 = vadd.f32 %v76, %v88
    %s93 = sld [smem:[#allocation2 + $0x4]]
    %s94 = smul.f32 %s93, %s93
    %s95 = sadd.f32 %s79, %s94
    %v96 = vstv %s93
    %v97 = vmul.f32 %v96, %v31
    %v98 = vmul.f32 %v96, %v32
    %v101 = vrot.slane %v97, 7
    %v102 = vrot.slane %v101, 4
    %v103 = vrot.slane %v98, 7
    %v104 = vrot.slane %v103, 4
    %v107 = vadd.f32 %v91, %v102
    %v108 = vadd.f32 %v92, %v104
    %s109 = sld [smem:[#allocation2]]
    %s110 = smul.f32 %s95, 0.25
    %s111 = sadd.f32 %s109, %s110
    %v112 = vstv %s111
    %v113 = vadd.f32 %v112, %v107
    %v114 = vadd.f32 %v112, %v108
    %v115 = vld [vmem:[%s3] sm:$0xff]
    %s116 = scalar_lea.vmem %s3, 16
    %v117 = vld [vmem:[%s116] sm:$0xff]
    %v120 = vcombine.high %v33, %v33
    %v121 = vcombine.high %v34, %v34
    %vm124 = vcmask 1043456
    %v125 = vsel %vm124, %v33, 0.0
    %v126 = vsel %vm124, %v120, 0.0
    %v127 = vadd.f32 %v125, %v126
    %v128 = vsel %vm124, %v34, 0.0
    %v129 = vadd.f32 %v127, %v128
    %v130 = vsel %vm124, %v121, 0.0
    %v131 = vadd.f32 %v129, %v130
    %132 = vadd.xlane.f32.xlu0 %v131
    %v133 = vpop.xlane.xlu0 %132
    %v134 = vrcp.pop 512.0
    %v135 = vmul.f32 %v133, %v134
    %v136 = vmul.f32 %v33, %v33
    %v137 = vmul.f32 %v34, %v34
    %v140 = vcombine.high %v136, %v136
    %v141 = vcombine.high %v137, %v137
    %v144 = vsel %vm124, %v136, 0.0
    %v145 = vsel %vm124, %v140, 0.0
    %v146 = vadd.f32 %v144, %v145
    %v147 = vsel %vm124, %v137, 0.0
    %v148 = vadd.f32 %v146, %v147
    %v149 = vsel %vm124, %v141, 0.0
    %v150 = vadd.f32 %v148, %v149
    %151 = vadd.xlane.f32.xlu0 %v150
    %v152 = vpop.xlane.xlu0 %151
    %v153 = vmul.f32 %v152, %v134
    %v154 = vmul.f32 %v135, %v135
    %v155 = vsub.f32 %v153, %v154
    %v156 = vmax.f32 %v155, 0.0
    %v159 = vunpack.c.l.s4 839922192
    %v160 = vunpack.c.0.s8 %v159
    %v161 = vlaneseq
    %v162 = vshrl.u32 %v161, 7
    %v163 = vsub.s32 %v160, %v162
    %v164 = vrot.slane %v135, %v163
    %v166 = vsub.f32 %v33, %v164
    %v167 = vsub.f32 %v34, %v164
    %v168 = vadd.f32 %v156, 1e-06
    %v169 = vrsqrt.pop %v168
    %v172 = vunpack.c.l.s4 839922192
    %v173 = vunpack.c.0.s8 %v172
    %v174 = vlaneseq
    %v175 = vshrl.u32 %v174, 7
    %v176 = vsub.s32 %v173, %v175
    %v177 = vrot.slane %v169, %v176
    %v179 = vmul.f32 %v166, %v177
    %v180 = vmul.f32 %v167, %v177
    %182 = vset.pattern.permute.xlu0 0
    %183 = vperm.xlu0 %182, %v115
    %v184 = vpop.permute.xlu0 %183
    %v186 = vunpack.c.l.s4 839922192
    %v187 = vunpack.c.0.s8 %v186
    %v188 = vlaneseq
    %v189 = vshrl.u32 %v188, 7
    %v190 = vsub.s32 %v187, %v189
    %v191 = vrot.slane %v184, %v190
    %v193 = vmul.f32 %v179, %v191
    %v194 = vmul.f32 %v180, %v191
    %196 = vset.pattern.permute.xlu0 0
    %197 = vperm.xlu0 %196, %v117
    %v198 = vpop.permute.xlu0 %197
    %v200 = vunpack.c.l.s4 839922192
    %v201 = vunpack.c.0.s8 %v200
    %v202 = vlaneseq
    %v203 = vshrl.u32 %v202, 7
    %v204 = vsub.s32 %v201, %v203
    %v205 = vrot.slane %v198, %v204
    %v207 = vadd.f32 %v193, %v205
    %v208 = vadd.f32 %v194, %v205
    %v209 = vld [vmem:[%s2] sm:$0xff]
    %v210 = vld [vmem:[%s2 + $0x8] sm:$0xff]
    %v213 = vcombine.high %v207, %v207
    %v214 = vcombine.high %v208, %v208
    %vm215 = vcmask 31744
    %v217 = vsel %vm215, %v209, 0
    %v220 = vsel %vm215, %v210, 0
    %v222 = vsel %vm124, %v207, 0
    %v224 = vsel %vm124, %v213, 0
    %v226 = vsel %vm124, %v208, 0
    %v228 = vsel %vm124, %v214, 0
    %230 = vmatprep.subr.mxu0 0.0
    %231 = vmatpush1.msra.mxu0 0.0
    %232 = vmatprep.subr.mxu0 0.0
    %233 = vmatpush1.msra.mxu0 0.0
    %234 = vmatprep.subr.mxu0 0.0
    %235 = vmatpush1.msra.mxu0 0.0
    %236 = vmatprep.subr.mxu0 0.0
    %237 = vmatpush1.msra.mxu0 0.0
    %238 = vmatprep.subr.mxu0 0.0
    %239 = vmatpush1.msra.mxu0 0.0
    %240 = vmatprep.subr.mxu0 0.0
    %241 = vmatpush1.msra.mxu0 0.0
    %242 = vmatprep.subr.mxu0 0.0
    %243 = vmatpush1.msra.mxu0 0.0
    %244 = vmatprep.subr.mxu0 0.0
    %245 = vmatpush1.msra.mxu0 0.0
    %246 = vmatprep.subr.mxu0 0.0
    %247 = vmatpush1.msra.mxu0 0.0
    %248 = vmatprep.subr.mxu0 0.0
    %249 = vmatpush1.msra.mxu0 0.0
    %250 = vmatprep.subr.mxu0 0.0
    %251 = vmatpush1.msra.mxu0 0.0
    %252 = vmatprep.subr.mxu0 0.0
    %253 = vmatpush1.msra.mxu0 0.0
    %254 = vmatprep.subr.mxu0 0.0
    %255 = vmatpush1.msra.mxu0 0.0
    %256 = vmatprep.subr.mxu0 0.0
    %257 = vmatpush1.msra.mxu0 0.0
    %258 = vmatprep.subr.mxu0 0.0
    %259 = vmatpush1.msra.mxu0 0.0
    %260 = vmatprep.subr.mxu0 %v224
    %261 = vmatpush1.msra.mxu0 %v222
    %262 = vmatprep.subr.mxu0 0.0
    %263 = vmatpush2.msra.mxu0 0.0
    %264 = vmatprep.subr.mxu0 0.0
    %265 = vmatpush2.msra.mxu0 0.0
    %266 = vmatprep.subr.mxu0 0.0
    %267 = vmatpush2.msra.mxu0 0.0
    %268 = vmatprep.subr.mxu0 0.0
    %269 = vmatpush2.msra.mxu0 0.0
    %270 = vmatprep.subr.mxu0 0.0
    %271 = vmatpush2.msra.mxu0 0.0
    %272 = vmatprep.subr.mxu0 0.0
    %273 = vmatpush2.msra.mxu0 0.0
    %274 = vmatprep.subr.mxu0 0.0
    %275 = vmatpush2.msra.mxu0 0.0
    %276 = vmatprep.subr.mxu0 0.0
    %277 = vmatpush2.msra.mxu0 0.0
    %278 = vmatprep.subr.mxu0 0.0
    %279 = vmatpush2.msra.mxu0 0.0
    %280 = vmatprep.subr.mxu0 0.0
    %281 = vmatpush2.msra.mxu0 0.0
    %282 = vmatprep.subr.mxu0 0.0
    %283 = vmatpush2.msra.mxu0 0.0
    %284 = vmatprep.subr.mxu0 0.0
    %285 = vmatpush2.msra.mxu0 0.0
    %286 = vmatprep.subr.mxu0 0.0
    %287 = vmatpush2.msra.mxu0 0.0
    %288 = vmatprep.subr.mxu0 0.0
    %289 = vmatpush2.msra.mxu0 0.0
    %290 = vmatprep.subr.mxu0 0.0
    %291 = vmatpush2.msra.mxu0 0.0
    %292 = vmatprep.subr.mxu0 0.0
    %293 = vmatpush2.msra.mxu0 0.0
    %294 = vmatprep.mubr.f32.mxu0 0.0
    %295 = vmatmul.mubr.f32.gmra.mxu0 %v217
    %v296 = vpop.f32.mrf.mxu0
    %v297 = vadd.f32 0.0, %v296
    %v298 = vpop.f32.mrf.mxu0
    %v299 = vadd.f32 0.0, %v298
    %300 = vmatprep.mubr.f32.mxu0 0.0
    %301 = vmatmul.mubr.f32.gmra.mxu0 %v220
    %v302 = vpop.f32.mrf.mxu0
    %v303 = vadd.f32 0.0, %v302
    %v304 = vpop.f32.mrf.mxu0
    %v305 = vadd.f32 0.0, %v304
    %306 = vdwg.mxu0
    %307 = vmatprep.subr.mxu0 0.0
    %308 = vmatpush1.msra.mxu0 0.0
    %309 = vmatprep.subr.mxu0 0.0
    %310 = vmatpush1.msra.mxu0 0.0
    %311 = vmatprep.subr.mxu0 0.0
    %312 = vmatpush1.msra.mxu0 0.0
    %313 = vmatprep.subr.mxu0 0.0
    %314 = vmatpush1.msra.mxu0 0.0
    %315 = vmatprep.subr.mxu0 0.0
    %316 = vmatpush1.msra.mxu0 0.0
    %317 = vmatprep.subr.mxu0 0.0
    %318 = vmatpush1.msra.mxu0 0.0
    %319 = vmatprep.subr.mxu0 0.0
    %320 = vmatpush1.msra.mxu0 0.0
    %321 = vmatprep.subr.mxu0 0.0
    %322 = vmatpush1.msra.mxu0 0.0
    %323 = vmatprep.subr.mxu0 0.0
    %324 = vmatpush1.msra.mxu0 0.0
    %325 = vmatprep.subr.mxu0 0.0
    %326 = vmatpush1.msra.mxu0 0.0
    %327 = vmatprep.subr.mxu0 0.0
    %328 = vmatpush1.msra.mxu0 0.0
    %329 = vmatprep.subr.mxu0 0.0
    %330 = vmatpush1.msra.mxu0 0.0
    %331 = vmatprep.subr.mxu0 0.0
    %332 = vmatpush1.msra.mxu0 0.0
    %333 = vmatprep.subr.mxu0 0.0
    %334 = vmatpush1.msra.mxu0 0.0
    %335 = vmatprep.subr.mxu0 0.0
    %336 = vmatpush1.msra.mxu0 0.0
    %337 = vmatprep.subr.mxu0 %v228
    %338 = vmatpush1.msra.mxu0 %v226
    %339 = vmatprep.subr.mxu0 0.0
    %340 = vmatpush2.msra.mxu0 0.0
    %341 = vmatprep.subr.mxu0 0.0
    %342 = vmatpush2.msra.mxu0 0.0
    %343 = vmatprep.subr.mxu0 0.0
    %344 = vmatpush2.msra.mxu0 0.0
    %345 = vmatprep.subr.mxu0 0.0
    %346 = vmatpush2.msra.mxu0 0.0
    %347 = vmatprep.subr.mxu0 0.0
    %348 = vmatpush2.msra.mxu0 0.0
    %349 = vmatprep.subr.mxu0 0.0
    %350 = vmatpush2.msra.mxu0 0.0
    %351 = vmatprep.subr.mxu0 0.0
    %352 = vmatpush2.msra.mxu0 0.0
    %353 = vmatprep.subr.mxu0 0.0
    %354 = vmatpush2.msra.mxu0 0.0
    %355 = vmatprep.subr.mxu0 0.0
    %356 = vmatpush2.msra.mxu0 0.0
    %357 = vmatprep.subr.mxu0 0.0
    %358 = vmatpush2.msra.mxu0 0.0
    %359 = vmatprep.subr.mxu0 0.0
    %360 = vmatpush2.msra.mxu0 0.0
    %361 = vmatprep.subr.mxu0 0.0
    %362 = vmatpush2.msra.mxu0 0.0
    %363 = vmatprep.subr.mxu0 0.0
    %364 = vmatpush2.msra.mxu0 0.0
    %365 = vmatprep.subr.mxu0 0.0
    %366 = vmatpush2.msra.mxu0 0.0
    %367 = vmatprep.subr.mxu0 0.0
    %368 = vmatpush2.msra.mxu0 0.0
    %369 = vmatprep.subr.mxu0 0.0
    %370 = vmatpush2.msra.mxu0 0.0
    %371 = vmatprep.mubr.f32.mxu0 0.0
    %372 = vmatmul.mubr.f32.gmra.mxu0 %v217
    %v373 = vpop.f32.mrf.mxu0
    %v374 = vadd.f32 0.0, %v373
    %v375 = vpop.f32.mrf.mxu0
    %v376 = vadd.f32 0.0, %v375
    %377 = vmatprep.mubr.f32.mxu0 0.0
    %378 = vmatmul.mubr.f32.gmra.mxu0 %v220
    %v379 = vpop.f32.mrf.mxu0
    %v380 = vadd.f32 0.0, %v379
    %v381 = vpop.f32.mrf.mxu0
    %v382 = vadd.f32 0.0, %v381
    %383 = vdwg.mxu0
    %s384 = scalar_lea.vmem %s3, 32
    %v385 = vld [vmem:[%s384] sm:$0xff]
    %v386 = vld [vmem:[%s384 + $0x8] sm:$0xff]
    %s387 = scalar_lea.vmem %s3, 48
    %v388 = vld [vmem:[%s387] sm:$0xff]
    %v389 = vld [vmem:[%s387 + $0x8] sm:$0xff]
    %v390 = vadd.f32 %v297, %v299
    %v391 = vadd.f32 %v390, %v374
    %v392 = vadd.f32 %v391, %v376
    %393 = vadd.xlane.f32.xlu0 %v392
    %v394 = vpop.xlane.xlu0 %393
    %v395 = vadd.f32 %v303, %v305
    %v396 = vadd.f32 %v395, %v380
    %v397 = vadd.f32 %v396, %v382
    %398 = vadd.xlane.f32.xlu0 %v397
    %v399 = vpop.xlane.xlu0 %398
    %v400 = vmul.f32 %v394, %v134
    %v401 = vmul.f32 %v399, %v134
    %v402 = vmul.f32 %v297, %v297
    %v403 = vmul.f32 %v299, %v299
    %v404 = vmul.f32 %v374, %v374
    %v405 = vmul.f32 %v376, %v376
    %v406 = vmul.f32 %v303, %v303
    %v407 = vmul.f32 %v305, %v305
    %v408 = vmul.f32 %v380, %v380
    %v409 = vmul.f32 %v382, %v382
    %v410 = vadd.f32 %v402, %v403
    %v411 = vadd.f32 %v410, %v404
    %v412 = vadd.f32 %v411, %v405
    %413 = vadd.xlane.f32.xlu0 %v412
    %v414 = vpop.xlane.xlu0 %413
    %v415 = vadd.f32 %v406, %v407
    %v416 = vadd.f32 %v415, %v408
    %v417 = vadd.f32 %v416, %v409
    %418 = vadd.xlane.f32.xlu0 %v417
    %v419 = vpop.xlane.xlu0 %418
    %v420 = vmul.f32 %v414, %v134
    %v421 = vmul.f32 %v419, %v134
    %v422 = vmul.f32 %v400, %v400
    %v423 = vmul.f32 %v401, %v401
    %v424 = vsub.f32 %v420, %v422
    %v425 = vsub.f32 %v421, %v423
    %v426 = vmax.f32 %v424, 0.0
    %v427 = vmax.f32 %v425, 0.0
    %v428 = vsub.f32 %v297, %v400
    %v429 = vsub.f32 %v299, %v400
    %v430 = vsub.f32 %v374, %v400
    %v431 = vsub.f32 %v376, %v400
    %v432 = vsub.f32 %v303, %v401
    %v433 = vsub.f32 %v305, %v401
    %v434 = vsub.f32 %v380, %v401
    %v435 = vsub.f32 %v382, %v401
    %v436 = vadd.f32 %v426, 1e-06
    %v437 = vadd.f32 %v427, 1e-06
    %v438 = vrsqrt.pop %v436
    %v439 = vrsqrt.pop %v437
    %v440 = vmul.f32 %v428, %v438
    %v441 = vmul.f32 %v429, %v438
    %v442 = vmul.f32 %v430, %v438
    %v443 = vmul.f32 %v431, %v438
    %v444 = vmul.f32 %v432, %v439
    %v445 = vmul.f32 %v433, %v439
    %v446 = vmul.f32 %v434, %v439
    %v447 = vmul.f32 %v435, %v439
    %449 = vset.pattern.permute.xlu0 0
    %450 = vperm.xlu0 %449, %v385
    %v451 = vpop.permute.xlu0 %450
    %454 = vset.pattern.permute.xlu0 0
    %455 = vperm.xlu0 %454, %v386
    %v456 = vpop.permute.xlu0 %455
    %v458 = vmul.f32 %v440, %v451
    %v459 = vmul.f32 %v441, %v451
    %v460 = vmul.f32 %v442, %v451
    %v461 = vmul.f32 %v443, %v451
    %v462 = vmul.f32 %v444, %v456
    %v463 = vmul.f32 %v445, %v456
    %v464 = vmul.f32 %v446, %v456
    %v465 = vmul.f32 %v447, %v456
    %467 = vset.pattern.permute.xlu0 0
    %468 = vperm.xlu0 %467, %v388
    %v469 = vpop.permute.xlu0 %468
    %472 = vset.pattern.permute.xlu0 0
    %473 = vperm.xlu0 %472, %v389
    %v474 = vpop.permute.xlu0 %473
    %v476 = vadd.f32 %v458, %v469
    %v477 = vadd.f32 %v459, %v469
    %v478 = vadd.f32 %v460, %v469
    %v479 = vadd.f32 %v461, %v469
    %v480 = vadd.f32 %v462, %v474
    %v481 = vadd.f32 %v463, %v474
    %v482 = vadd.f32 %v464, %v474
    %v483 = vadd.f32 %v465, %v474
    %v484 = vmax.f32 %v476, 0.0
    %v485 = vmax.f32 %v477, 0.0
    %v486 = vmax.f32 %v478, 0.0
    %v487 = vmax.f32 %v479, 0.0
    %v488 = vmax.f32 %v480, 0.0
    %v489 = vmax.f32 %v481, 0.0
    %v490 = vmax.f32 %v482, 0.0
    %v491 = vmax.f32 %v483, 0.0
    %s492 = scalar_lea.vmem %s2, 16
    %v493 = vld [vmem:[%s492] sm:$0xff]
    %v494 = vld [vmem:[%s492 + $0x8] sm:$0xff]
    %vm495 = vcmask 130048
    %v497 = vsel %vm495, %v493, 0
    %v500 = vsel %vm495, %v494, 0
    %502 = vmatprep.subr.mxu0 0.0
    %503 = vmatpush1.msra.mxu0 0.0
    %504 = vmatprep.subr.mxu0 0.0
    %505 = vmatpush1.msra.mxu0 0.0
    %506 = vmatprep.subr.mxu0 0.0
    %507 = vmatpush1.msra.mxu0 0.0
    %508 = vmatprep.subr.mxu0 0.0
    %509 = vmatpush1.msra.mxu0 0.0
    %510 = vmatprep.subr.mxu0 0.0
    %511 = vmatpush1.msra.mxu0 0.0
    %512 = vmatprep.subr.mxu0 0.0
    %513 = vmatpush1.msra.mxu0 0.0
    %514 = vmatprep.subr.mxu0 0.0
    %515 = vmatpush1.msra.mxu0 0.0
    %516 = vmatprep.subr.mxu0 0.0
    %517 = vmatpush1.msra.mxu0 0.0
    %518 = vmatprep.subr.mxu0 0.0
    %519 = vmatpush1.msra.mxu0 0.0
    %520 = vmatprep.subr.mxu0 0.0
    %521 = vmatpush1.msra.mxu0 0.0
    %522 = vmatprep.subr.mxu0 0.0
    %523 = vmatpush1.msra.mxu0 0.0
    %524 = vmatprep.subr.mxu0 0.0
    %525 = vmatpush1.msra.mxu0 0.0
    %526 = vmatprep.subr.mxu0 0.0
    %527 = vmatpush1.msra.mxu0 0.0
    %528 = vmatprep.subr.mxu0 0.0
    %529 = vmatpush1.msra.mxu0 0.0
    %530 = vmatprep.subr.mxu0 %v489
    %531 = vmatpush1.msra.mxu0 %v488
    %532 = vmatprep.subr.mxu0 %v485
    %533 = vmatpush1.msra.mxu0 %v484
    %534 = vmatprep.subr.mxu0 0.0
    %535 = vmatpush2.msra.mxu0 0.0
    %536 = vmatprep.subr.mxu0 0.0
    %537 = vmatpush2.msra.mxu0 0.0
    %538 = vmatprep.subr.mxu0 0.0
    %539 = vmatpush2.msra.mxu0 0.0
    %540 = vmatprep.subr.mxu0 0.0
    %541 = vmatpush2.msra.mxu0 0.0
    %542 = vmatprep.subr.mxu0 0.0
    %543 = vmatpush2.msra.mxu0 0.0
    %544 = vmatprep.subr.mxu0 0.0
    %545 = vmatpush2.msra.mxu0 0.0
    %546 = vmatprep.subr.mxu0 0.0
    %547 = vmatpush2.msra.mxu0 0.0
    %548 = vmatprep.subr.mxu0 0.0
    %549 = vmatpush2.msra.mxu0 0.0
    %550 = vmatprep.subr.mxu0 0.0
    %551 = vmatpush2.msra.mxu0 0.0
    %552 = vmatprep.subr.mxu0 0.0
    %553 = vmatpush2.msra.mxu0 0.0
    %554 = vmatprep.subr.mxu0 0.0
    %555 = vmatpush2.msra.mxu0 0.0
    %556 = vmatprep.subr.mxu0 0.0
    %557 = vmatpush2.msra.mxu0 0.0
    %558 = vmatprep.subr.mxu0 0.0
    %559 = vmatpush2.msra.mxu0 0.0
    %560 = vmatprep.subr.mxu0 0.0
    %561 = vmatpush2.msra.mxu0 0.0
    %562 = vmatprep.subr.mxu0 0.0
    %563 = vmatpush2.msra.mxu0 0.0
    %564 = vmatprep.subr.mxu0 0.0
    %565 = vmatpush2.msra.mxu0 0.0
    %566 = vmatprep.mubr.f32.mxu0 0.0
    %567 = vmatmul.mubr.f32.gmra.mxu0 %v497
    %v568 = vpop.f32.mrf.mxu0
    %v569 = vadd.f32 0.0, %v568
    %v570 = vpop.f32.mrf.mxu0
    %v571 = vadd.f32 0.0, %v570
    %572 = vmatprep.mubr.f32.mxu0 0.0
    %573 = vmatmul.mubr.f32.gmra.mxu0 %v500
    %v574 = vpop.f32.mrf.mxu0
    %v575 = vadd.f32 0.0, %v574
    %v576 = vpop.f32.mrf.mxu0
    %v577 = vadd.f32 0.0, %v576
    %578 = vdwg.mxu0
    %579 = vmatprep.subr.mxu0 0.0
    %580 = vmatpush1.msra.mxu0 0.0
    %581 = vmatprep.subr.mxu0 0.0
    %582 = vmatpush1.msra.mxu0 0.0
    %583 = vmatprep.subr.mxu0 0.0
    %584 = vmatpush1.msra.mxu0 0.0
    %585 = vmatprep.subr.mxu0 0.0
    %586 = vmatpush1.msra.mxu0 0.0
    %587 = vmatprep.subr.mxu0 0.0
    %588 = vmatpush1.msra.mxu0 0.0
    %589 = vmatprep.subr.mxu0 0.0
    %590 = vmatpush1.msra.mxu0 0.0
    %591 = vmatprep.subr.mxu0 0.0
    %592 = vmatpush1.msra.mxu0 0.0
    %593 = vmatprep.subr.mxu0 0.0
    %594 = vmatpush1.msra.mxu0 0.0
    %595 = vmatprep.subr.mxu0 0.0
    %596 = vmatpush1.msra.mxu0 0.0
    %597 = vmatprep.subr.mxu0 0.0
    %598 = vmatpush1.msra.mxu0 0.0
    %599 = vmatprep.subr.mxu0 0.0
    %600 = vmatpush1.msra.mxu0 0.0
    %601 = vmatprep.subr.mxu0 0.0
    %602 = vmatpush1.msra.mxu0 0.0
    %603 = vmatprep.subr.mxu0 0.0
    %604 = vmatpush1.msra.mxu0 0.0
    %605 = vmatprep.subr.mxu0 0.0
    %606 = vmatpush1.msra.mxu0 0.0
    %607 = vmatprep.subr.mxu0 %v491
    %608 = vmatpush1.msra.mxu0 %v490
    %609 = vmatprep.subr.mxu0 %v487
    %610 = vmatpush1.msra.mxu0 %v486
    %611 = vmatprep.subr.mxu0 0.0
    %612 = vmatpush2.msra.mxu0 0.0
    %613 = vmatprep.subr.mxu0 0.0
    %614 = vmatpush2.msra.mxu0 0.0
    %615 = vmatprep.subr.mxu0 0.0
    %616 = vmatpush2.msra.mxu0 0.0
    %617 = vmatprep.subr.mxu0 0.0
    %618 = vmatpush2.msra.mxu0 0.0
    %619 = vmatprep.subr.mxu0 0.0
    %620 = vmatpush2.msra.mxu0 0.0
    %621 = vmatprep.subr.mxu0 0.0
    %622 = vmatpush2.msra.mxu0 0.0
    %623 = vmatprep.subr.mxu0 0.0
    %624 = vmatpush2.msra.mxu0 0.0
    %625 = vmatprep.subr.mxu0 0.0
    %626 = vmatpush2.msra.mxu0 0.0
    %627 = vmatprep.subr.mxu0 0.0
    %628 = vmatpush2.msra.mxu0 0.0
    %629 = vmatprep.subr.mxu0 0.0
    %630 = vmatpush2.msra.mxu0 0.0
    %631 = vmatprep.subr.mxu0 0.0
    %632 = vmatpush2.msra.mxu0 0.0
    %633 = vmatprep.subr.mxu0 0.0
    %634 = vmatpush2.msra.mxu0 0.0
    %635 = vmatprep.subr.mxu0 0.0
    %636 = vmatpush2.msra.mxu0 0.0
    %637 = vmatprep.subr.mxu0 0.0
    %638 = vmatpush2.msra.mxu0 0.0
    %639 = vmatprep.subr.mxu0 0.0
    %640 = vmatpush2.msra.mxu0 0.0
    %641 = vmatprep.subr.mxu0 0.0
    %642 = vmatpush2.msra.mxu0 0.0
    %643 = vmatprep.mubr.f32.mxu0 0.0
    %644 = vmatmul.mubr.f32.gmra.mxu0 %v497
    %v645 = vpop.f32.mrf.mxu0
    %v646 = vadd.f32 0.0, %v645
    %v647 = vpop.f32.mrf.mxu0
    %v648 = vadd.f32 0.0, %v647
    %649 = vmatprep.mubr.f32.mxu0 0.0
    %650 = vmatmul.mubr.f32.gmra.mxu0 %v500
    %v651 = vpop.f32.mrf.mxu0
    %v652 = vadd.f32 0.0, %v651
    %v653 = vpop.f32.mrf.mxu0
    %v654 = vadd.f32 0.0, %v653
    %655 = vdwg.mxu0
    %s656 = scalar_lea.vmem %s3, 64
    %v657 = vld [vmem:[%s656] sm:$0xff]
    %v658 = vld [vmem:[%s656 + $0x8] sm:$0xff]
    %s659 = scalar_lea.vmem %s3, 80
    %v660 = vld [vmem:[%s659] sm:$0xff]
    %v661 = vld [vmem:[%s659 + $0x8] sm:$0xff]
    %v662 = vadd.f32 %v569, %v571
    %v663 = vadd.f32 %v662, %v646
    %v664 = vadd.f32 %v663, %v648
    %665 = vadd.xlane.f32.xlu0 %v664
    %v666 = vpop.xlane.xlu0 %665
    %v667 = vadd.f32 %v575, %v577
    %v668 = vadd.f32 %v667, %v652
    %v669 = vadd.f32 %v668, %v654
    %670 = vadd.xlane.f32.xlu0 %v669
    %v671 = vpop.xlane.xlu0 %670
    %v672 = vmul.f32 %v666, %v134
    %v673 = vmul.f32 %v671, %v134
    %v674 = vmul.f32 %v569, %v569
    %v675 = vmul.f32 %v571, %v571
    %v676 = vmul.f32 %v646, %v646
    %v677 = vmul.f32 %v648, %v648
    %v678 = vmul.f32 %v575, %v575
    %v679 = vmul.f32 %v577, %v577
    %v680 = vmul.f32 %v652, %v652
    %v681 = vmul.f32 %v654, %v654
    %v682 = vadd.f32 %v674, %v675
    %v683 = vadd.f32 %v682, %v676
    %v684 = vadd.f32 %v683, %v677
    %685 = vadd.xlane.f32.xlu0 %v684
    %v686 = vpop.xlane.xlu0 %685
    %v687 = vadd.f32 %v678, %v679
    %v688 = vadd.f32 %v687, %v680
    %v689 = vadd.f32 %v688, %v681
    %690 = vadd.xlane.f32.xlu0 %v689
    %v691 = vpop.xlane.xlu0 %690
    %v692 = vmul.f32 %v686, %v134
    %v693 = vmul.f32 %v691, %v134
    %v694 = vmul.f32 %v672, %v672
    %v695 = vmul.f32 %v673, %v673
    %v696 = vsub.f32 %v692, %v694
    %v697 = vsub.f32 %v693, %v695
    %v698 = vmax.f32 %v696, 0.0
    %v699 = vmax.f32 %v697, 0.0
    %v700 = vsub.f32 %v569, %v672
    %v701 = vsub.f32 %v571, %v672
    %v702 = vsub.f32 %v646, %v672
    %v703 = vsub.f32 %v648, %v672
    %v704 = vsub.f32 %v575, %v673
    %v705 = vsub.f32 %v577, %v673
    %v706 = vsub.f32 %v652, %v673
    %v707 = vsub.f32 %v654, %v673
    %v708 = vadd.f32 %v698, 1e-06
    %v709 = vadd.f32 %v699, 1e-06
    %v710 = vrsqrt.pop %v708
    %v711 = vrsqrt.pop %v709
    %v712 = vmul.f32 %v700, %v710
    %v713 = vmul.f32 %v701, %v710
    %v714 = vmul.f32 %v702, %v710
    %v715 = vmul.f32 %v703, %v710
    %v716 = vmul.f32 %v704, %v711
    %v717 = vmul.f32 %v705, %v711
    %v718 = vmul.f32 %v706, %v711
    %v719 = vmul.f32 %v707, %v711
    %721 = vset.pattern.permute.xlu0 0
    %722 = vperm.xlu0 %721, %v657
    %v723 = vpop.permute.xlu0 %722
    %726 = vset.pattern.permute.xlu0 0
    %727 = vperm.xlu0 %726, %v658
    %v728 = vpop.permute.xlu0 %727
    %v730 = vmul.f32 %v712, %v723
    %v731 = vmul.f32 %v713, %v723
    %v732 = vmul.f32 %v714, %v723
    %v733 = vmul.f32 %v715, %v723
    %v734 = vmul.f32 %v716, %v728
    %v735 = vmul.f32 %v717, %v728
    %v736 = vmul.f32 %v718, %v728
    %v737 = vmul.f32 %v719, %v728
    %739 = vset.pattern.permute.xlu0 0
    %740 = vperm.xlu0 %739, %v660
    %v741 = vpop.permute.xlu0 %740
    %744 = vset.pattern.permute.xlu0 0
    %745 = vperm.xlu0 %744, %v661
    %v746 = vpop.permute.xlu0 %745
    %v748 = vadd.f32 %v730, %v741
    %v749 = vadd.f32 %v731, %v741
    %v750 = vadd.f32 %v732, %v741
    %v751 = vadd.f32 %v733, %v741
    %v752 = vadd.f32 %v734, %v746
    %v753 = vadd.f32 %v735, %v746
    %v754 = vadd.f32 %v736, %v746
    %v755 = vadd.f32 %v737, %v746
    %v756 = vmax.f32 %v748, 0.0
    %v757 = vmax.f32 %v749, 0.0
    %v758 = vmax.f32 %v750, 0.0
    %v759 = vmax.f32 %v751, 0.0
    %v760 = vmax.f32 %v752, 0.0
    %v761 = vmax.f32 %v753, 0.0
    %v762 = vmax.f32 %v754, 0.0
    %v763 = vmax.f32 %v755, 0.0
    %s764 = scalar_lea.vmem %s2, 32
    %v765 = vld [vmem:[%s764] sm:$0xff]
    %v767 = vsel %vm495, %v765, 0
    %769 = vmatprep.subr.mxu0 0.0
    %770 = vmatpush1.msra.mxu0 0.0
    %771 = vmatprep.subr.mxu0 0.0
    %772 = vmatpush1.msra.mxu0 0.0
    %773 = vmatprep.subr.mxu0 0.0
    %774 = vmatpush1.msra.mxu0 0.0
    %775 = vmatprep.subr.mxu0 0.0
    %776 = vmatpush1.msra.mxu0 0.0
    %777 = vmatprep.subr.mxu0 0.0
    %778 = vmatpush1.msra.mxu0 0.0
    %779 = vmatprep.subr.mxu0 0.0
    %780 = vmatpush1.msra.mxu0 0.0
    %781 = vmatprep.subr.mxu0 0.0
    %782 = vmatpush1.msra.mxu0 0.0
    %783 = vmatprep.subr.mxu0 0.0
    %784 = vmatpush1.msra.mxu0 0.0
    %785 = vmatprep.subr.mxu0 0.0
    %786 = vmatpush1.msra.mxu0 0.0
    %787 = vmatprep.subr.mxu0 0.0
    %788 = vmatpush1.msra.mxu0 0.0
    %789 = vmatprep.subr.mxu0 0.0
    %790 = vmatpush1.msra.mxu0 0.0
    %791 = vmatprep.subr.mxu0 0.0
    %792 = vmatpush1.msra.mxu0 0.0
    %793 = vmatprep.subr.mxu0 0.0
    %794 = vmatpush1.msra.mxu0 0.0
    %795 = vmatprep.subr.mxu0 0.0
    %796 = vmatpush1.msra.mxu0 0.0
    %797 = vmatprep.subr.mxu0 %v761
    %798 = vmatpush1.msra.mxu0 %v760
    %799 = vmatprep.subr.mxu0 %v757
    %800 = vmatpush1.msra.mxu0 %v756
    %801 = vmatprep.subr.mxu0 0.0
    %802 = vmatpush2.msra.mxu0 0.0
    %803 = vmatprep.subr.mxu0 0.0
    %804 = vmatpush2.msra.mxu0 0.0
    %805 = vmatprep.subr.mxu0 0.0
    %806 = vmatpush2.msra.mxu0 0.0
    %807 = vmatprep.subr.mxu0 0.0
    %808 = vmatpush2.msra.mxu0 0.0
    %809 = vmatprep.subr.mxu0 0.0
    %810 = vmatpush2.msra.mxu0 0.0
    %811 = vmatprep.subr.mxu0 0.0
    %812 = vmatpush2.msra.mxu0 0.0
    %813 = vmatprep.subr.mxu0 0.0
    %814 = vmatpush2.msra.mxu0 0.0
    %815 = vmatprep.subr.mxu0 0.0
    %816 = vmatpush2.msra.mxu0 0.0
    %817 = vmatprep.subr.mxu0 0.0
    %818 = vmatpush2.msra.mxu0 0.0
    %819 = vmatprep.subr.mxu0 0.0
    %820 = vmatpush2.msra.mxu0 0.0
    %821 = vmatprep.subr.mxu0 0.0
    %822 = vmatpush2.msra.mxu0 0.0
    %823 = vmatprep.subr.mxu0 0.0
    %824 = vmatpush2.msra.mxu0 0.0
    %825 = vmatprep.subr.mxu0 0.0
    %826 = vmatpush2.msra.mxu0 0.0
    %827 = vmatprep.subr.mxu0 0.0
    %828 = vmatpush2.msra.mxu0 0.0
    %829 = vmatprep.subr.mxu0 0.0
    %830 = vmatpush2.msra.mxu0 0.0
    %831 = vmatprep.subr.mxu0 0.0
    %832 = vmatpush2.msra.mxu0 0.0
    %833 = vmatprep.mubr.f32.mxu0 0.0
    %834 = vmatmul.mubr.f32.gmra.mxu0 %v767
    %v835 = vpop.f32.mrf.mxu0
    %v836 = vadd.f32 0.0, %v835
    %v837 = vpop.f32.mrf.mxu0
    %v838 = vadd.f32 0.0, %v837
    %839 = vdwg.mxu0
    %840 = vmatprep.subr.mxu0 0.0
    %841 = vmatpush1.msra.mxu0 0.0
    %842 = vmatprep.subr.mxu0 0.0
    %843 = vmatpush1.msra.mxu0 0.0
    %844 = vmatprep.subr.mxu0 0.0
    %845 = vmatpush1.msra.mxu0 0.0
    %846 = vmatprep.subr.mxu0 0.0
    %847 = vmatpush1.msra.mxu0 0.0
    %848 = vmatprep.subr.mxu0 0.0
    %849 = vmatpush1.msra.mxu0 0.0
    %850 = vmatprep.subr.mxu0 0.0
    %851 = vmatpush1.msra.mxu0 0.0
    %852 = vmatprep.subr.mxu0 0.0
    %853 = vmatpush1.msra.mxu0 0.0
    %854 = vmatprep.subr.mxu0 0.0
    %855 = vmatpush1.msra.mxu0 0.0
    %856 = vmatprep.subr.mxu0 0.0
    %857 = vmatpush1.msra.mxu0 0.0
    %858 = vmatprep.subr.mxu0 0.0
    %859 = vmatpush1.msra.mxu0 0.0
    %860 = vmatprep.subr.mxu0 0.0
    %861 = vmatpush1.msra.mxu0 0.0
    %862 = vmatprep.subr.mxu0 0.0
    %863 = vmatpush1.msra.mxu0 0.0
    %864 = vmatprep.subr.mxu0 0.0
    %865 = vmatpush1.msra.mxu0 0.0
    %866 = vmatprep.subr.mxu0 0.0
    %867 = vmatpush1.msra.mxu0 0.0
    %868 = vmatprep.subr.mxu0 %v763
    %869 = vmatpush1.msra.mxu0 %v762
    %870 = vmatprep.subr.mxu0 %v759
    %871 = vmatpush1.msra.mxu0 %v758
    %872 = vmatprep.subr.mxu0 0.0
    %873 = vmatpush2.msra.mxu0 0.0
    %874 = vmatprep.subr.mxu0 0.0
    %875 = vmatpush2.msra.mxu0 0.0
    %876 = vmatprep.subr.mxu0 0.0
    %877 = vmatpush2.msra.mxu0 0.0
    %878 = vmatprep.subr.mxu0 0.0
    %879 = vmatpush2.msra.mxu0 0.0
    %880 = vmatprep.subr.mxu0 0.0
    %881 = vmatpush2.msra.mxu0 0.0
    %882 = vmatprep.subr.mxu0 0.0
    %883 = vmatpush2.msra.mxu0 0.0
    %884 = vmatprep.subr.mxu0 0.0
    %885 = vmatpush2.msra.mxu0 0.0
    %886 = vmatprep.subr.mxu0 0.0
    %887 = vmatpush2.msra.mxu0 0.0
    %888 = vmatprep.subr.mxu0 0.0
    %889 = vmatpush2.msra.mxu0 0.0
    %890 = vmatprep.subr.mxu0 0.0
    %891 = vmatpush2.msra.mxu0 0.0
    %892 = vmatprep.subr.mxu0 0.0
    %893 = vmatpush2.msra.mxu0 0.0
    %894 = vmatprep.subr.mxu0 0.0
    %895 = vmatpush2.msra.mxu0 0.0
    %896 = vmatprep.subr.mxu0 0.0
    %897 = vmatpush2.msra.mxu0 0.0
    %898 = vmatprep.subr.mxu0 0.0
    %899 = vmatpush2.msra.mxu0 0.0
    %900 = vmatprep.subr.mxu0 0.0
    %901 = vmatpush2.msra.mxu0 0.0
    %902 = vmatprep.subr.mxu0 0.0
    %903 = vmatpush2.msra.mxu0 0.0
    %904 = vmatprep.mubr.f32.mxu0 0.0
    %905 = vmatmul.mubr.f32.gmra.mxu0 %v767
    %v906 = vpop.f32.mrf.mxu0
    %v907 = vadd.f32 0.0, %v906
    %v908 = vpop.f32.mrf.mxu0
    %v909 = vadd.f32 0.0, %v908
    %910 = vdwg.mxu0
    %s911 = scalar_lea.vmem %s3, 96
    %v912 = vld [vmem:[%s911] sm:$0xff]
    %s913 = scalar_lea.vmem %s3, 112
    %v914 = vld [vmem:[%s913] sm:$0xff]
    %v915 = vsel %vm124, %v836, 0.0
    %v916 = vsel %vm124, %v838, 0.0
    %v917 = vadd.f32 %v915, %v916
    %v918 = vsel %vm124, %v907, 0.0
    %v919 = vadd.f32 %v917, %v918
    %v920 = vsel %vm124, %v909, 0.0
    %v921 = vadd.f32 %v919, %v920
    %922 = vadd.xlane.f32.xlu0 %v921
    %v923 = vpop.xlane.xlu0 %922
    %v924 = vmul.f32 %v923, %v134
    %v925 = vmul.f32 %v836, %v836
    %v926 = vmul.f32 %v838, %v838
    %v927 = vmul.f32 %v907, %v907
    %v928 = vmul.f32 %v909, %v909
    %v929 = vsel %vm124, %v925, 0.0
    %v930 = vsel %vm124, %v926, 0.0
    %v931 = vadd.f32 %v929, %v930
    %v932 = vsel %vm124, %v927, 0.0
    %v933 = vadd.f32 %v931, %v932
    %v934 = vsel %vm124, %v928, 0.0
    %v935 = vadd.f32 %v933, %v934
    %936 = vadd.xlane.f32.xlu0 %v935
    %v937 = vpop.xlane.xlu0 %936
    %v938 = vmul.f32 %v937, %v134
    %v939 = vmul.f32 %v924, %v924
    %v940 = vsub.f32 %v938, %v939
    %v941 = vmax.f32 %v940, 0.0
    %v942 = vsub.f32 %v836, %v924
    %v943 = vsub.f32 %v838, %v924
    %v944 = vsub.f32 %v907, %v924
    %v945 = vsub.f32 %v909, %v924
    %v946 = vadd.f32 %v941, 1e-06
    %v947 = vrsqrt.pop %v946
    %v948 = vmul.f32 %v942, %v947
    %v949 = vmul.f32 %v943, %v947
    %v950 = vmul.f32 %v944, %v947
    %v951 = vmul.f32 %v945, %v947
    %953 = vset.pattern.permute.xlu0 0
    %954 = vperm.xlu0 %953, %v912
    %v955 = vpop.permute.xlu0 %954
    %v957 = vmul.f32 %v948, %v955
    %v958 = vmul.f32 %v949, %v955
    %v959 = vmul.f32 %v950, %v955
    %v960 = vmul.f32 %v951, %v955
    %962 = vset.pattern.permute.xlu0 0
    %963 = vperm.xlu0 %962, %v914
    %v964 = vpop.permute.xlu0 %963
    %v966 = vadd.f32 %v957, %v964
    %v967 = vadd.f32 %v958, %v964
    %v968 = vadd.f32 %v959, %v964
    %v969 = vadd.f32 %v960, %v964
    %v970 = vmul.f32 %v966, 0.25
    %v971 = vmul.f32 %v967, 0.25
    %v972 = vmul.f32 %v968, 0.25
    %v973 = vmul.f32 %v969, 0.25
    %v974 = vmul.f32 %v970, %v970
    %v975 = vmul.f32 %v971, %v971
    %v976 = vmul.f32 %v972, %v972
    %v977 = vmul.f32 %v973, %v973
    %v978 = vsel %vm124, %v974, 0.0
    %v979 = vrot.slane %v978, 4
    %v980 = vadd.f32 %v978, %v979
    %v981 = vrot.slane %v980, 2
    %v982 = vadd.f32 %v980, %v981
    %v983 = vrot.slane %v982, 1
    %v984 = vadd.f32 %v982, %v983
    %v985 = vsel %vm124, %v975, 0.0
    %v986 = vrot.slane %v985, 4
    %v987 = vadd.f32 %v985, %v986
    %v988 = vrot.slane %v987, 2
    %v989 = vadd.f32 %v987, %v988
    %v990 = vrot.slane %v989, 1
    %v991 = vadd.f32 %v989, %v990
    %v992 = vsel %vm124, %v976, 0.0
    %v993 = vrot.slane %v992, 4
    %v994 = vadd.f32 %v992, %v993
    %v995 = vrot.slane %v994, 2
    %v996 = vadd.f32 %v994, %v995
    %v997 = vrot.slane %v996, 1
    %v998 = vadd.f32 %v996, %v997
    %v999 = vsel %vm124, %v977, 0.0
    %v1000 = vrot.slane %v999, 4
    %v1001 = vadd.f32 %v999, %v1000
    %v1002 = vrot.slane %v1001, 2
    %v1003 = vadd.f32 %v1001, %v1002
    %v1004 = vrot.slane %v1003, 1
    %v1005 = vadd.f32 %v1003, %v1004
    %v1006 = vmul.f32 %v984, 0.25
    %v1007 = vmul.f32 %v991, 0.25
    %v1008 = vmul.f32 %v998, 0.25
    %v1009 = vmul.f32 %v1005, 0.25
    %v1014 = vcombine.low %v1006, %v1007
    %v1015 = vcombine.low %v1008, %v1009
    %v1018 = vadd.f32 %v113, %v1014
    %v1019 = vadd.f32 %v114, %v1015
    %v1022 = vcombine.high %v36, %v36
    %v1023 = vcombine.high %v37, %v37
    %v1026 = vmul.f32 %v970, %v36
    %v1027 = vmul.f32 %v971, %v1022
    %v1028 = vmul.f32 %v972, %v37
    %v1029 = vmul.f32 %v973, %v1023
    %v1030 = vsel %vm124, %v1026, 0.0
    %v1031 = vrot.slane %v1030, 4
    %v1032 = vadd.f32 %v1030, %v1031
    %v1033 = vrot.slane %v1032, 2
    %v1034 = vadd.f32 %v1032, %v1033
    %v1035 = vrot.slane %v1034, 1
    %v1036 = vadd.f32 %v1034, %v1035
    %v1037 = vsel %vm124, %v1027, 0.0
    %v1038 = vrot.slane %v1037, 4
    %v1039 = vadd.f32 %v1037, %v1038
    %v1040 = vrot.slane %v1039, 2
    %v1041 = vadd.f32 %v1039, %v1040
    %v1042 = vrot.slane %v1041, 1
    %v1043 = vadd.f32 %v1041, %v1042
    %v1044 = vsel %vm124, %v1028, 0.0
    %v1045 = vrot.slane %v1044, 4
    %v1046 = vadd.f32 %v1044, %v1045
    %v1047 = vrot.slane %v1046, 2
    %v1048 = vadd.f32 %v1046, %v1047
    %v1049 = vrot.slane %v1048, 1
    %v1050 = vadd.f32 %v1048, %v1049
    %v1051 = vsel %vm124, %v1029, 0.0
    %v1052 = vrot.slane %v1051, 4
    %v1053 = vadd.f32 %v1051, %v1052
    %v1054 = vrot.slane %v1053, 2
    %v1055 = vadd.f32 %v1053, %v1054
    %v1056 = vrot.slane %v1055, 1
    %v1057 = vadd.f32 %v1055, %v1056
    %v1062 = vcombine.low %v1036, %v1043
    %v1063 = vcombine.low %v1050, %v1057
    %v1066 = vadd.f32 %v1018, %v1062
    %v1067 = vadd.f32 %v1019, %v1063
    %s1068 = scalar_lea.vmem %s3, 128
    %v1069 = vld [vmem:[%s1068] sm:$0xff]
    %s1070 = scalar_lea.vmem %s3, 144
    %v1071 = vld [vmem:[%s1070] sm:$0xff]
    %v1074 = vcombine.high %v40, %v40
    %v1075 = vcombine.high %v41, %v41
    %v1078 = vsel %vm124, %v40, 0.0
    %v1079 = vsel %vm124, %v1074, 0.0
    %v1080 = vadd.f32 %v1078, %v1079
    %v1081 = vsel %vm124, %v41, 0.0
    %v1082 = vadd.f32 %v1080, %v1081
    %v1083 = vsel %vm124, %v1075, 0.0
    %v1084 = vadd.f32 %v1082, %v1083
    %1085 = vadd.xlane.f32.xlu0 %v1084
    %v1086 = vpop.xlane.xlu0 %1085
    %v1087 = vmul.f32 %v1086, %v134
    %v1088 = vmul.f32 %v40, %v40
    %v1089 = vmul.f32 %v41, %v41
    %v1092 = vcombine.high %v1088, %v1088
    %v1093 = vcombine.high %v1089, %v1089
    %v1096 = vsel %vm124, %v1088, 0.0
    %v1097 = vsel %vm124, %v1092, 0.0
    %v1098 = vadd.f32 %v1096, %v1097
    %v1099 = vsel %vm124, %v1089, 0.0
    %v1100 = vadd.f32 %v1098, %v1099
    %v1101 = vsel %vm124, %v1093, 0.0
    %v1102 = vadd.f32 %v1100, %v1101
    %1103 = vadd.xlane.f32.xlu0 %v1102
    %v1104 = vpop.xlane.xlu0 %1103
    %v1105 = vmul.f32 %v1104, %v134
    %v1106 = vmul.f32 %v1087, %v1087
    %v1107 = vsub.f32 %v1105, %v1106
    %v1108 = vmax.f32 %v1107, 0.0
    %v1111 = vunpack.c.l.s4 839922192
    %v1112 = vunpack.c.0.s8 %v1111
    %v1113 = vlaneseq
    %v1114 = vshrl.u32 %v1113, 7
    %v1115 = vsub.s32 %v1112, %v1114
    %v1116 = vrot.slane %v1087, %v1115
    %v1118 = vsub.f32 %v40, %v1116
    %v1119 = vsub.f32 %v41, %v1116
    %v1120 = vadd.f32 %v1108, 1e-06
    %v1121 = vrsqrt.pop %v1120
    %v1124 = vunpack.c.l.s4 839922192
    %v1125 = vunpack.c.0.s8 %v1124
    %v1126 = vlaneseq
    %v1127 = vshrl.u32 %v1126, 7
    %v1128 = vsub.s32 %v1125, %v1127
    %v1129 = vrot.slane %v1121, %v1128
    %v1131 = vmul.f32 %v1118, %v1129
    %v1132 = vmul.f32 %v1119, %v1129
    %1134 = vset.pattern.permute.xlu0 0
    %1135 = vperm.xlu0 %1134, %v1069
    %v1136 = vpop.permute.xlu0 %1135
    %v1138 = vunpack.c.l.s4 839922192
    %v1139 = vunpack.c.0.s8 %v1138
    %v1140 = vlaneseq
    %v1141 = vshrl.u32 %v1140, 7
    %v1142 = vsub.s32 %v1139, %v1141
    %v1143 = vrot.slane %v1136, %v1142
    %v1145 = vmul.f32 %v1131, %v1143
    %v1146 = vmul.f32 %v1132, %v1143
    %1148 = vset.pattern.permute.xlu0 0
    %1149 = vperm.xlu0 %1148, %v1071
    %v1150 = vpop.permute.xlu0 %1149
    %v1152 = vunpack.c.l.s4 839922192
    %v1153 = vunpack.c.0.s8 %v1152
    %v1154 = vlaneseq
    %v1155 = vshrl.u32 %v1154, 7
    %v1156 = vsub.s32 %v1153, %v1155
    %v1157 = vrot.slane %v1150, %v1156
    %v1159 = vadd.f32 %v1145, %v1157
    %v1160 = vadd.f32 %v1146, %v1157
    %s1161 = scalar_lea.vmem %s2, 48
    %v1162 = vld [vmem:[%s1161] sm:$0xff]
    %v1163 = vld [vmem:[%s1161 + $0x8] sm:$0xff]
    %v1166 = vcombine.high %v1159, %v1159
    %v1167 = vcombine.high %v1160, %v1160
    %v1169 = vsel %vm215, %v1162, 0
    %v1172 = vsel %vm215, %v1163, 0
    %v1174 = vsel %vm124, %v1159, 0
    %v1176 = vsel %vm124, %v1166, 0
    %v1178 = vsel %vm124, %v1160, 0
    %v1180 = vsel %vm124, %v1167, 0
    %1182 = vmatprep.subr.mxu0 0.0
    %1183 = vmatpush1.msra.mxu0 0.0
    %1184 = vmatprep.subr.mxu0 0.0
    %1185 = vmatpush1.msra.mxu0 0.0
    %1186 = vmatprep.subr.mxu0 0.0
    %1187 = vmatpush1.msra.mxu0 0.0
    %1188 = vmatprep.subr.mxu0 0.0
    %1189 = vmatpush1.msra.mxu0 0.0
    %1190 = vmatprep.subr.mxu0 0.0
    %1191 = vmatpush1.msra.mxu0 0.0
    %1192 = vmatprep.subr.mxu0 0.0
    %1193 = vmatpush1.msra.mxu0 0.0
    %1194 = vmatprep.subr.mxu0 0.0
    %1195 = vmatpush1.msra.mxu0 0.0
    %1196 = vmatprep.subr.mxu0 0.0
    %1197 = vmatpush1.msra.mxu0 0.0
    %1198 = vmatprep.subr.mxu0 0.0
    %1199 = vmatpush1.msra.mxu0 0.0
    %1200 = vmatprep.subr.mxu0 0.0
    %1201 = vmatpush1.msra.mxu0 0.0
    %1202 = vmatprep.subr.mxu0 0.0
    %1203 = vmatpush1.msra.mxu0 0.0
    %1204 = vmatprep.subr.mxu0 0.0
    %1205 = vmatpush1.msra.mxu0 0.0
    %1206 = vmatprep.subr.mxu0 0.0
    %1207 = vmatpush1.msra.mxu0 0.0
    %1208 = vmatprep.subr.mxu0 0.0
    %1209 = vmatpush1.msra.mxu0 0.0
    %1210 = vmatprep.subr.mxu0 0.0
    %1211 = vmatpush1.msra.mxu0 0.0
    %1212 = vmatprep.subr.mxu0 %v1176
    %1213 = vmatpush1.msra.mxu0 %v1174
    %1214 = vmatprep.subr.mxu0 0.0
    %1215 = vmatpush2.msra.mxu0 0.0
    %1216 = vmatprep.subr.mxu0 0.0
    %1217 = vmatpush2.msra.mxu0 0.0
    %1218 = vmatprep.subr.mxu0 0.0
    %1219 = vmatpush2.msra.mxu0 0.0
    %1220 = vmatprep.subr.mxu0 0.0
    %1221 = vmatpush2.msra.mxu0 0.0
    %1222 = vmatprep.subr.mxu0 0.0
    %1223 = vmatpush2.msra.mxu0 0.0
    %1224 = vmatprep.subr.mxu0 0.0
    %1225 = vmatpush2.msra.mxu0 0.0
    %1226 = vmatprep.subr.mxu0 0.0
    %1227 = vmatpush2.msra.mxu0 0.0
    %1228 = vmatprep.subr.mxu0 0.0
    %1229 = vmatpush2.msra.mxu0 0.0
    %1230 = vmatprep.subr.mxu0 0.0
    %1231 = vmatpush2.msra.mxu0 0.0
    %1232 = vmatprep.subr.mxu0 0.0
    %1233 = vmatpush2.msra.mxu0 0.0
    %1234 = vmatprep.subr.mxu0 0.0
    %1235 = vmatpush2.msra.mxu0 0.0
    %1236 = vmatprep.subr.mxu0 0.0
    %1237 = vmatpush2.msra.mxu0 0.0
    %1238 = vmatprep.subr.mxu0 0.0
    %1239 = vmatpush2.msra.mxu0 0.0
    %1240 = vmatprep.subr.mxu0 0.0
    %1241 = vmatpush2.msra.mxu0 0.0
    %1242 = vmatprep.subr.mxu0 0.0
    %1243 = vmatpush2.msra.mxu0 0.0
    %1244 = vmatprep.subr.mxu0 0.0
    %1245 = vmatpush2.msra.mxu0 0.0
    %1246 = vmatprep.mubr.f32.mxu0 0.0
    %1247 = vmatmul.mubr.f32.gmra.mxu0 %v1169
    %v1248 = vpop.f32.mrf.mxu0
    %v1249 = vadd.f32 0.0, %v1248
    %v1250 = vpop.f32.mrf.mxu0
    %v1251 = vadd.f32 0.0, %v1250
    %1252 = vmatprep.mubr.f32.mxu0 0.0
    %1253 = vmatmul.mubr.f32.gmra.mxu0 %v1172
    %v1254 = vpop.f32.mrf.mxu0
    %v1255 = vadd.f32 0.0, %v1254
    %v1256 = vpop.f32.mrf.mxu0
    %v1257 = vadd.f32 0.0, %v1256
    %1258 = vdwg.mxu0
    %1259 = vmatprep.subr.mxu0 0.0
    %1260 = vmatpush1.msra.mxu0 0.0
    %1261 = vmatprep.subr.mxu0 0.0
    %1262 = vmatpush1.msra.mxu0 0.0
    %1263 = vmatprep.subr.mxu0 0.0
    %1264 = vmatpush1.msra.mxu0 0.0
    %1265 = vmatprep.subr.mxu0 0.0
    %1266 = vmatpush1.msra.mxu0 0.0
    %1267 = vmatprep.subr.mxu0 0.0
    %1268 = vmatpush1.msra.mxu0 0.0
    %1269 = vmatprep.subr.mxu0 0.0
    %1270 = vmatpush1.msra.mxu0 0.0
    %1271 = vmatprep.subr.mxu0 0.0
    %1272 = vmatpush1.msra.mxu0 0.0
    %1273 = vmatprep.subr.mxu0 0.0
    %1274 = vmatpush1.msra.mxu0 0.0
    %1275 = vmatprep.subr.mxu0 0.0
    %1276 = vmatpush1.msra.mxu0 0.0
    %1277 = vmatprep.subr.mxu0 0.0
    %1278 = vmatpush1.msra.mxu0 0.0
    %1279 = vmatprep.subr.mxu0 0.0
    %1280 = vmatpush1.msra.mxu0 0.0
    %1281 = vmatprep.subr.mxu0 0.0
    %1282 = vmatpush1.msra.mxu0 0.0
    %1283 = vmatprep.subr.mxu0 0.0
    %1284 = vmatpush1.msra.mxu0 0.0
    %1285 = vmatprep.subr.mxu0 0.0
    %1286 = vmatpush1.msra.mxu0 0.0
    %1287 = vmatprep.subr.mxu0 0.0
    %1288 = vmatpush1.msra.mxu0 0.0
    %1289 = vmatprep.subr.mxu0 %v1180
    %1290 = vmatpush1.msra.mxu0 %v1178
    %1291 = vmatprep.subr.mxu0 0.0
    %1292 = vmatpush2.msra.mxu0 0.0
    %1293 = vmatprep.subr.mxu0 0.0
    %1294 = vmatpush2.msra.mxu0 0.0
    %1295 = vmatprep.subr.mxu0 0.0
    %1296 = vmatpush2.msra.mxu0 0.0
    %1297 = vmatprep.subr.mxu0 0.0
    %1298 = vmatpush2.msra.mxu0 0.0
    %1299 = vmatprep.subr.mxu0 0.0
    %1300 = vmatpush2.msra.mxu0 0.0
    %1301 = vmatprep.subr.mxu0 0.0
    %1302 = vmatpush2.msra.mxu0 0.0
    %1303 = vmatprep.subr.mxu0 0.0
    %1304 = vmatpush2.msra.mxu0 0.0
    %1305 = vmatprep.subr.mxu0 0.0
    %1306 = vmatpush2.msra.mxu0 0.0
    %1307 = vmatprep.subr.mxu0 0.0
    %1308 = vmatpush2.msra.mxu0 0.0
    %1309 = vmatprep.subr.mxu0 0.0
    %1310 = vmatpush2.msra.mxu0 0.0
    %1311 = vmatprep.subr.mxu0 0.0
    %1312 = vmatpush2.msra.mxu0 0.0
    %1313 = vmatprep.subr.mxu0 0.0
    %1314 = vmatpush2.msra.mxu0 0.0
    %1315 = vmatprep.subr.mxu0 0.0
    %1316 = vmatpush2.msra.mxu0 0.0
    %1317 = vmatprep.subr.mxu0 0.0
    %1318 = vmatpush2.msra.mxu0 0.0
    %1319 = vmatprep.subr.mxu0 0.0
    %1320 = vmatpush2.msra.mxu0 0.0
    %1321 = vmatprep.subr.mxu0 0.0
    %1322 = vmatpush2.msra.mxu0 0.0
    %1323 = vmatprep.mubr.f32.mxu0 0.0
    %1324 = vmatmul.mubr.f32.gmra.mxu0 %v1169
    %v1325 = vpop.f32.mrf.mxu0
    %v1326 = vadd.f32 0.0, %v1325
    %v1327 = vpop.f32.mrf.mxu0
    %v1328 = vadd.f32 0.0, %v1327
    %1329 = vmatprep.mubr.f32.mxu0 0.0
    %1330 = vmatmul.mubr.f32.gmra.mxu0 %v1172
    %v1331 = vpop.f32.mrf.mxu0
    %v1332 = vadd.f32 0.0, %v1331
    %v1333 = vpop.f32.mrf.mxu0
    %v1334 = vadd.f32 0.0, %v1333
    %1335 = vdwg.mxu0
    %s1336 = scalar_lea.vmem %s3, 160
    %v1337 = vld [vmem:[%s1336] sm:$0xff]
    %v1338 = vld [vmem:[%s1336 + $0x8] sm:$0xff]
    %s1339 = scalar_lea.vmem %s3, 176
    %v1340 = vld [vmem:[%s1339] sm:$0xff]
    %v1341 = vld [vmem:[%s1339 + $0x8] sm:$0xff]
    %v1342 = vadd.f32 %v1249, %v1251
    %v1343 = vadd.f32 %v1342, %v1326
    %v1344 = vadd.f32 %v1343, %v1328
    %1345 = vadd.xlane.f32.xlu0 %v1344
    %v1346 = vpop.xlane.xlu0 %1345
    %v1347 = vadd.f32 %v1255, %v1257
    %v1348 = vadd.f32 %v1347, %v1332
    %v1349 = vadd.f32 %v1348, %v1334
    %1350 = vadd.xlane.f32.xlu0 %v1349
    %v1351 = vpop.xlane.xlu0 %1350
    %v1352 = vmul.f32 %v1346, %v134
    %v1353 = vmul.f32 %v1351, %v134
    %v1354 = vmul.f32 %v1249, %v1249
    %v1355 = vmul.f32 %v1251, %v1251
    %v1356 = vmul.f32 %v1326, %v1326
    %v1357 = vmul.f32 %v1328, %v1328
    %v1358 = vmul.f32 %v1255, %v1255
    %v1359 = vmul.f32 %v1257, %v1257
    %v1360 = vmul.f32 %v1332, %v1332
    %v1361 = vmul.f32 %v1334, %v1334
    %v1362 = vadd.f32 %v1354, %v1355
    %v1363 = vadd.f32 %v1362, %v1356
    %v1364 = vadd.f32 %v1363, %v1357
    %1365 = vadd.xlane.f32.xlu0 %v1364
    %v1366 = vpop.xlane.xlu0 %1365
    %v1367 = vadd.f32 %v1358, %v1359
    %v1368 = vadd.f32 %v1367, %v1360
    %v1369 = vadd.f32 %v1368, %v1361
    %1370 = vadd.xlane.f32.xlu0 %v1369
    %v1371 = vpop.xlane.xlu0 %1370
    %v1372 = vmul.f32 %v1366, %v134
    %v1373 = vmul.f32 %v1371, %v134
    %v1374 = vmul.f32 %v1352, %v1352
    %v1375 = vmul.f32 %v1353, %v1353
    %v1376 = vsub.f32 %v1372, %v1374
    %v1377 = vsub.f32 %v1373, %v1375
    %v1378 = vmax.f32 %v1376, 0.0
    %v1379 = vmax.f32 %v1377, 0.0
    %v1380 = vsub.f32 %v1249, %v1352
    %v1381 = vsub.f32 %v1251, %v1352
    %v1382 = vsub.f32 %v1326, %v1352
    %v1383 = vsub.f32 %v1328, %v1352
    %v1384 = vsub.f32 %v1255, %v1353
    %v1385 = vsub.f32 %v1257, %v1353
    %v1386 = vsub.f32 %v1332, %v1353
    %v1387 = vsub.f32 %v1334, %v1353
    %v1388 = vadd.f32 %v1378, 1e-06
    %v1389 = vadd.f32 %v1379, 1e-06
    %v1390 = vrsqrt.pop %v1388
    %v1391 = vrsqrt.pop %v1389
    %v1392 = vmul.f32 %v1380, %v1390
    %v1393 = vmul.f32 %v1381, %v1390
    %v1394 = vmul.f32 %v1382, %v1390
    %v1395 = vmul.f32 %v1383, %v1390
    %v1396 = vmul.f32 %v1384, %v1391
    %v1397 = vmul.f32 %v1385, %v1391
    %v1398 = vmul.f32 %v1386, %v1391
    %v1399 = vmul.f32 %v1387, %v1391
    %1401 = vset.pattern.permute.xlu0 0
    %1402 = vperm.xlu0 %1401, %v1337
    %v1403 = vpop.permute.xlu0 %1402
    %1406 = vset.pattern.permute.xlu0 0
    %1407 = vperm.xlu0 %1406, %v1338
    %v1408 = vpop.permute.xlu0 %1407
    %v1410 = vmul.f32 %v1392, %v1403
    %v1411 = vmul.f32 %v1393, %v1403
    %v1412 = vmul.f32 %v1394, %v1403
    %v1413 = vmul.f32 %v1395, %v1403
    %v1414 = vmul.f32 %v1396, %v1408
    %v1415 = vmul.f32 %v1397, %v1408
    %v1416 = vmul.f32 %v1398, %v1408
    %v1417 = vmul.f32 %v1399, %v1408
    %1419 = vset.pattern.permute.xlu0 0
    %1420 = vperm.xlu0 %1419, %v1340
    %v1421 = vpop.permute.xlu0 %1420
    %1424 = vset.pattern.permute.xlu0 0
    %1425 = vperm.xlu0 %1424, %v1341
    %v1426 = vpop.permute.xlu0 %1425
    %v1428 = vadd.f32 %v1410, %v1421
    %v1429 = vadd.f32 %v1411, %v1421
    %v1430 = vadd.f32 %v1412, %v1421
    %v1431 = vadd.f32 %v1413, %v1421
    %v1432 = vadd.f32 %v1414, %v1426
    %v1433 = vadd.f32 %v1415, %v1426
    %v1434 = vadd.f32 %v1416, %v1426
    %v1435 = vadd.f32 %v1417, %v1426
    %v1436 = vmax.f32 %v1428, 0.0
    %v1437 = vmax.f32 %v1429, 0.0
    %v1438 = vmax.f32 %v1430, 0.0
    %v1439 = vmax.f32 %v1431, 0.0
    %v1440 = vmax.f32 %v1432, 0.0
    %v1441 = vmax.f32 %v1433, 0.0
    %v1442 = vmax.f32 %v1434, 0.0
    %v1443 = vmax.f32 %v1435, 0.0
    %s1444 = scalar_lea.vmem %s2, 64
    %v1445 = vld [vmem:[%s1444] sm:$0xff]
    %v1446 = vld [vmem:[%s1444 + $0x8] sm:$0xff]
    %v1448 = vsel %vm495, %v1445, 0
    %v1451 = vsel %vm495, %v1446, 0
    %1453 = vmatprep.subr.mxu0 0.0
    %1454 = vmatpush1.msra.mxu0 0.0
    %1455 = vmatprep.subr.mxu0 0.0
    %1456 = vmatpush1.msra.mxu0 0.0
    %1457 = vmatprep.subr.mxu0 0.0
    %1458 = vmatpush1.msra.mxu0 0.0
    %1459 = vmatprep.subr.mxu0 0.0
    %1460 = vmatpush1.msra.mxu0 0.0
    %1461 = vmatprep.subr.mxu0 0.0
    %1462 = vmatpush1.msra.mxu0 0.0
    %1463 = vmatprep.subr.mxu0 0.0
    %1464 = vmatpush1.msra.mxu0 0.0
    %1465 = vmatprep.subr.mxu0 0.0
    %1466 = vmatpush1.msra.mxu0 0.0
    %1467 = vmatprep.subr.mxu0 0.0
    %1468 = vmatpush1.msra.mxu0 0.0
    %1469 = vmatprep.subr.mxu0 0.0
    %1470 = vmatpush1.msra.mxu0 0.0
    %1471 = vmatprep.subr.mxu0 0.0
    %1472 = vmatpush1.msra.mxu0 0.0
    %1473 = vmatprep.subr.mxu0 0.0
    %1474 = vmatpush1.msra.mxu0 0.0
    %1475 = vmatprep.subr.mxu0 0.0
    %1476 = vmatpush1.msra.mxu0 0.0
    %1477 = vmatprep.subr.mxu0 0.0
    %1478 = vmatpush1.msra.mxu0 0.0
    %1479 = vmatprep.subr.mxu0 0.0
    %1480 = vmatpush1.msra.mxu0 0.0
    %1481 = vmatprep.subr.mxu0 %v1441
    %1482 = vmatpush1.msra.mxu0 %v1440
    %1483 = vmatprep.subr.mxu0 %v1437
    %1484 = vmatpush1.msra.mxu0 %v1436
    %1485 = vmatprep.subr.mxu0 0.0
    %1486 = vmatpush2.msra.mxu0 0.0
    %1487 = vmatprep.subr.mxu0 0.0
    %1488 = vmatpush2.msra.mxu0 0.0
    %1489 = vmatprep.subr.mxu0 0.0
    %1490 = vmatpush2.msra.mxu0 0.0
    %1491 = vmatprep.subr.mxu0 0.0
    %1492 = vmatpush2.msra.mxu0 0.0
    %1493 = vmatprep.subr.mxu0 0.0
    %1494 = vmatpush2.msra.mxu0 0.0
    %1495 = vmatprep.subr.mxu0 0.0
    %1496 = vmatpush2.msra.mxu0 0.0
    %1497 = vmatprep.subr.mxu0 0.0
    %1498 = vmatpush2.msra.mxu0 0.0
    %1499 = vmatprep.subr.mxu0 0.0
    %1500 = vmatpush2.msra.mxu0 0.0
    %1501 = vmatprep.subr.mxu0 0.0
    %1502 = vmatpush2.msra.mxu0 0.0
    %1503 = vmatprep.subr.mxu0 0.0
    %1504 = vmatpush2.msra.mxu0 0.0
    %1505 = vmatprep.subr.mxu0 0.0
    %1506 = vmatpush2.msra.mxu0 0.0
    %1507 = vmatprep.subr.mxu0 0.0
    %1508 = vmatpush2.msra.mxu0 0.0
    %1509 = vmatprep.subr.mxu0 0.0
    %1510 = vmatpush2.msra.mxu0 0.0
    %1511 = vmatprep.subr.mxu0 0.0
    %1512 = vmatpush2.msra.mxu0 0.0
    %1513 = vmatprep.subr.mxu0 0.0
    %1514 = vmatpush2.msra.mxu0 0.0
    %1515 = vmatprep.subr.mxu0 0.0
    %1516 = vmatpush2.msra.mxu0 0.0
    %1517 = vmatprep.mubr.f32.mxu0 0.0
    %1518 = vmatmul.mubr.f32.gmra.mxu0 %v1448
    %v1519 = vpop.f32.mrf.mxu0
    %v1520 = vadd.f32 0.0, %v1519
    %v1521 = vpop.f32.mrf.mxu0
    %v1522 = vadd.f32 0.0, %v1521
    %1523 = vmatprep.mubr.f32.mxu0 0.0
    %1524 = vmatmul.mubr.f32.gmra.mxu0 %v1451
    %v1525 = vpop.f32.mrf.mxu0
    %v1526 = vadd.f32 0.0, %v1525
    %v1527 = vpop.f32.mrf.mxu0
    %v1528 = vadd.f32 0.0, %v1527
    %1529 = vdwg.mxu0
    %1530 = vmatprep.subr.mxu0 0.0
    %1531 = vmatpush1.msra.mxu0 0.0
    %1532 = vmatprep.subr.mxu0 0.0
    %1533 = vmatpush1.msra.mxu0 0.0
    %1534 = vmatprep.subr.mxu0 0.0
    %1535 = vmatpush1.msra.mxu0 0.0
    %1536 = vmatprep.subr.mxu0 0.0
    %1537 = vmatpush1.msra.mxu0 0.0
    %1538 = vmatprep.subr.mxu0 0.0
    %1539 = vmatpush1.msra.mxu0 0.0
    %1540 = vmatprep.subr.mxu0 0.0
    %1541 = vmatpush1.msra.mxu0 0.0
    %1542 = vmatprep.subr.mxu0 0.0
    %1543 = vmatpush1.msra.mxu0 0.0
    %1544 = vmatprep.subr.mxu0 0.0
    %1545 = vmatpush1.msra.mxu0 0.0
    %1546 = vmatprep.subr.mxu0 0.0
    %1547 = vmatpush1.msra.mxu0 0.0
    %1548 = vmatprep.subr.mxu0 0.0
    %1549 = vmatpush1.msra.mxu0 0.0
    %1550 = vmatprep.subr.mxu0 0.0
    %1551 = vmatpush1.msra.mxu0 0.0
    %1552 = vmatprep.subr.mxu0 0.0
    %1553 = vmatpush1.msra.mxu0 0.0
    %1554 = vmatprep.subr.mxu0 0.0
    %1555 = vmatpush1.msra.mxu0 0.0
    %1556 = vmatprep.subr.mxu0 0.0
    %1557 = vmatpush1.msra.mxu0 0.0
    %1558 = vmatprep.subr.mxu0 %v1443
    %1559 = vmatpush1.msra.mxu0 %v1442
    %1560 = vmatprep.subr.mxu0 %v1439
    %1561 = vmatpush1.msra.mxu0 %v1438
    %1562 = vmatprep.subr.mxu0 0.0
    %1563 = vmatpush2.msra.mxu0 0.0
    %1564 = vmatprep.subr.mxu0 0.0
    %1565 = vmatpush2.msra.mxu0 0.0
    %1566 = vmatprep.subr.mxu0 0.0
    %1567 = vmatpush2.msra.mxu0 0.0
    %1568 = vmatprep.subr.mxu0 0.0
    %1569 = vmatpush2.msra.mxu0 0.0
    %1570 = vmatprep.subr.mxu0 0.0
    %1571 = vmatpush2.msra.mxu0 0.0
    %1572 = vmatprep.subr.mxu0 0.0
    %1573 = vmatpush2.msra.mxu0 0.0
    %1574 = vmatprep.subr.mxu0 0.0
    %1575 = vmatpush2.msra.mxu0 0.0
    %1576 = vmatprep.subr.mxu0 0.0
    %1577 = vmatpush2.msra.mxu0 0.0
    %1578 = vmatprep.subr.mxu0 0.0
    %1579 = vmatpush2.msra.mxu0 0.0
    %1580 = vmatprep.subr.mxu0 0.0
    %1581 = vmatpush2.msra.mxu0 0.0
    %1582 = vmatprep.subr.mxu0 0.0
    %1583 = vmatpush2.msra.mxu0 0.0
    %1584 = vmatprep.subr.mxu0 0.0
    %1585 = vmatpush2.msra.mxu0 0.0
    %1586 = vmatprep.subr.mxu0 0.0
    %1587 = vmatpush2.msra.mxu0 0.0
    %1588 = vmatprep.subr.mxu0 0.0
    %1589 = vmatpush2.msra.mxu0 0.0
    %1590 = vmatprep.subr.mxu0 0.0
    %1591 = vmatpush2.msra.mxu0 0.0
    %1592 = vmatprep.subr.mxu0 0.0
    %1593 = vmatpush2.msra.mxu0 0.0
    %1594 = vmatprep.mubr.f32.mxu0 0.0
    %1595 = vmatmul.mubr.f32.gmra.mxu0 %v1448
    %v1596 = vpop.f32.mrf.mxu0
    %v1597 = vadd.f32 0.0, %v1596
    %v1598 = vpop.f32.mrf.mxu0
    %v1599 = vadd.f32 0.0, %v1598
    %1600 = vmatprep.mubr.f32.mxu0 0.0
    %1601 = vmatmul.mubr.f32.gmra.mxu0 %v1451
    %v1602 = vpop.f32.mrf.mxu0
    %v1603 = vadd.f32 0.0, %v1602
    %v1604 = vpop.f32.mrf.mxu0
    %v1605 = vadd.f32 0.0, %v1604
    %1606 = vdwg.mxu0
    %s1607 = scalar_lea.vmem %s3, 192
    %v1608 = vld [vmem:[%s1607] sm:$0xff]
    %v1609 = vld [vmem:[%s1607 + $0x8] sm:$0xff]
    %s1610 = scalar_lea.vmem %s3, 208
    %v1611 = vld [vmem:[%s1610] sm:$0xff]
    %v1612 = vld [vmem:[%s1610 + $0x8] sm:$0xff]
    %v1613 = vadd.f32 %v1520, %v1522
    %v1614 = vadd.f32 %v1613, %v1597
    %v1615 = vadd.f32 %v1614, %v1599
    %1616 = vadd.xlane.f32.xlu0 %v1615
    %v1617 = vpop.xlane.xlu0 %1616
    %v1618 = vadd.f32 %v1526, %v1528
    %v1619 = vadd.f32 %v1618, %v1603
    %v1620 = vadd.f32 %v1619, %v1605
    %1621 = vadd.xlane.f32.xlu0 %v1620
    %v1622 = vpop.xlane.xlu0 %1621
    %v1623 = vmul.f32 %v1617, %v134
    %v1624 = vmul.f32 %v1622, %v134
    %v1625 = vmul.f32 %v1520, %v1520
    %v1626 = vmul.f32 %v1522, %v1522
    %v1627 = vmul.f32 %v1597, %v1597
    %v1628 = vmul.f32 %v1599, %v1599
    %v1629 = vmul.f32 %v1526, %v1526
    %v1630 = vmul.f32 %v1528, %v1528
    %v1631 = vmul.f32 %v1603, %v1603
    %v1632 = vmul.f32 %v1605, %v1605
    %v1633 = vadd.f32 %v1625, %v1626
    %v1634 = vadd.f32 %v1633, %v1627
    %v1635 = vadd.f32 %v1634, %v1628
    %1636 = vadd.xlane.f32.xlu0 %v1635
    %v1637 = vpop.xlane.xlu0 %1636
    %v1638 = vadd.f32 %v1629, %v1630
    %v1639 = vadd.f32 %v1638, %v1631
    %v1640 = vadd.f32 %v1639, %v1632
    %1641 = vadd.xlane.f32.xlu0 %v1640
    %v1642 = vpop.xlane.xlu0 %1641
    %v1643 = vmul.f32 %v1637, %v134
    %v1644 = vmul.f32 %v1642, %v134
    %v1645 = vmul.f32 %v1623, %v1623
    %v1646 = vmul.f32 %v1624, %v1624
    %v1647 = vsub.f32 %v1643, %v1645
    %v1648 = vsub.f32 %v1644, %v1646
    %v1649 = vmax.f32 %v1647, 0.0
    %v1650 = vmax.f32 %v1648, 0.0
    %v1651 = vsub.f32 %v1520, %v1623
    %v1652 = vsub.f32 %v1522, %v1623
    %v1653 = vsub.f32 %v1597, %v1623
    %v1654 = vsub.f32 %v1599, %v1623
    %v1655 = vsub.f32 %v1526, %v1624
    %v1656 = vsub.f32 %v1528, %v1624
    %v1657 = vsub.f32 %v1603, %v1624
    %v1658 = vsub.f32 %v1605, %v1624
    %v1659 = vadd.f32 %v1649, 1e-06
    %v1660 = vadd.f32 %v1650, 1e-06
    %v1661 = vrsqrt.pop %v1659
    %v1662 = vrsqrt.pop %v1660
    %v1663 = vmul.f32 %v1651, %v1661
    %v1664 = vmul.f32 %v1652, %v1661
    %v1665 = vmul.f32 %v1653, %v1661
    %v1666 = vmul.f32 %v1654, %v1661
    %v1667 = vmul.f32 %v1655, %v1662
    %v1668 = vmul.f32 %v1656, %v1662
    %v1669 = vmul.f32 %v1657, %v1662
    %v1670 = vmul.f32 %v1658, %v1662
    %1672 = vset.pattern.permute.xlu0 0
    %1673 = vperm.xlu0 %1672, %v1608
    %v1674 = vpop.permute.xlu0 %1673
    %1677 = vset.pattern.permute.xlu0 0
    %1678 = vperm.xlu0 %1677, %v1609
    %v1679 = vpop.permute.xlu0 %1678
    %v1681 = vmul.f32 %v1663, %v1674
    %v1682 = vmul.f32 %v1664, %v1674
    %v1683 = vmul.f32 %v1665, %v1674
    %v1684 = vmul.f32 %v1666, %v1674
    %v1685 = vmul.f32 %v1667, %v1679
    %v1686 = vmul.f32 %v1668, %v1679
    %v1687 = vmul.f32 %v1669, %v1679
    %v1688 = vmul.f32 %v1670, %v1679
    %1690 = vset.pattern.permute.xlu0 0
    %1691 = vperm.xlu0 %1690, %v1611
    %v1692 = vpop.permute.xlu0 %1691
    %1695 = vset.pattern.permute.xlu0 0
    %1696 = vperm.xlu0 %1695, %v1612
    %v1697 = vpop.permute.xlu0 %1696
    %v1699 = vadd.f32 %v1681, %v1692
    %v1700 = vadd.f32 %v1682, %v1692
    %v1701 = vadd.f32 %v1683, %v1692
    %v1702 = vadd.f32 %v1684, %v1692
    %v1703 = vadd.f32 %v1685, %v1697
    %v1704 = vadd.f32 %v1686, %v1697
    %v1705 = vadd.f32 %v1687, %v1697
    %v1706 = vadd.f32 %v1688, %v1697
    %v1707 = vmax.f32 %v1699, 0.0
    %v1708 = vmax.f32 %v1700, 0.0
    %v1709 = vmax.f32 %v1701, 0.0
    %v1710 = vmax.f32 %v1702, 0.0
    %v1711 = vmax.f32 %v1703, 0.0
    %v1712 = vmax.f32 %v1704, 0.0
    %v1713 = vmax.f32 %v1705, 0.0
    %v1714 = vmax.f32 %v1706, 0.0
    %s1715 = scalar_lea.vmem %s2, 80
    %v1716 = vld [vmem:[%s1715] sm:$0xff]
    %v1718 = vsel %vm495, %v1716, 0
    %1720 = vmatprep.subr.mxu0 0.0
    %1721 = vmatpush1.msra.mxu0 0.0
    %1722 = vmatprep.subr.mxu0 0.0
    %1723 = vmatpush1.msra.mxu0 0.0
    %1724 = vmatprep.subr.mxu0 0.0
    %1725 = vmatpush1.msra.mxu0 0.0
    %1726 = vmatprep.subr.mxu0 0.0
    %1727 = vmatpush1.msra.mxu0 0.0
    %1728 = vmatprep.subr.mxu0 0.0
    %1729 = vmatpush1.msra.mxu0 0.0
    %1730 = vmatprep.subr.mxu0 0.0
    %1731 = vmatpush1.msra.mxu0 0.0
    %1732 = vmatprep.subr.mxu0 0.0
    %1733 = vmatpush1.msra.mxu0 0.0
    %1734 = vmatprep.subr.mxu0 0.0
    %1735 = vmatpush1.msra.mxu0 0.0
    %1736 = vmatprep.subr.mxu0 0.0
    %1737 = vmatpush1.msra.mxu0 0.0
    %1738 = vmatprep.subr.mxu0 0.0
    %1739 = vmatpush1.msra.mxu0 0.0
    %1740 = vmatprep.subr.mxu0 0.0
    %1741 = vmatpush1.msra.mxu0 0.0
    %1742 = vmatprep.subr.mxu0 0.0
    %1743 = vmatpush1.msra.mxu0 0.0
    %1744 = vmatprep.subr.mxu0 0.0
    %1745 = vmatpush1.msra.mxu0 0.0
    %1746 = vmatprep.subr.mxu0 0.0
    %1747 = vmatpush1.msra.mxu0 0.0
    %1748 = vmatprep.subr.mxu0 %v1712
    %1749 = vmatpush1.msra.mxu0 %v1711
    %1750 = vmatprep.subr.mxu0 %v1708
    %1751 = vmatpush1.msra.mxu0 %v1707
    %1752 = vmatprep.subr.mxu0 0.0
    %1753 = vmatpush2.msra.mxu0 0.0
    %1754 = vmatprep.subr.mxu0 0.0
    %1755 = vmatpush2.msra.mxu0 0.0
    %1756 = vmatprep.subr.mxu0 0.0
    %1757 = vmatpush2.msra.mxu0 0.0
    %1758 = vmatprep.subr.mxu0 0.0
    %1759 = vmatpush2.msra.mxu0 0.0
    %1760 = vmatprep.subr.mxu0 0.0
    %1761 = vmatpush2.msra.mxu0 0.0
    %1762 = vmatprep.subr.mxu0 0.0
    %1763 = vmatpush2.msra.mxu0 0.0
    %1764 = vmatprep.subr.mxu0 0.0
    %1765 = vmatpush2.msra.mxu0 0.0
    %1766 = vmatprep.subr.mxu0 0.0
    %1767 = vmatpush2.msra.mxu0 0.0
    %1768 = vmatprep.subr.mxu0 0.0
    %1769 = vmatpush2.msra.mxu0 0.0
    %1770 = vmatprep.subr.mxu0 0.0
    %1771 = vmatpush2.msra.mxu0 0.0
    %1772 = vmatprep.subr.mxu0 0.0
    %1773 = vmatpush2.msra.mxu0 0.0
    %1774 = vmatprep.subr.mxu0 0.0
    %1775 = vmatpush2.msra.mxu0 0.0
    %1776 = vmatprep.subr.mxu0 0.0
    %1777 = vmatpush2.msra.mxu0 0.0
    %1778 = vmatprep.subr.mxu0 0.0
    %1779 = vmatpush2.msra.mxu0 0.0
    %1780 = vmatprep.subr.mxu0 0.0
    %1781 = vmatpush2.msra.mxu0 0.0
    %1782 = vmatprep.subr.mxu0 0.0
    %1783 = vmatpush2.msra.mxu0 0.0
    %1784 = vmatprep.mubr.f32.mxu0 0.0
    %1785 = vmatmul.mubr.f32.gmra.mxu0 %v1718
    %v1786 = vpop.f32.mrf.mxu0
    %v1787 = vadd.f32 0.0, %v1786
    %v1788 = vpop.f32.mrf.mxu0
    %v1789 = vadd.f32 0.0, %v1788
    %1790 = vdwg.mxu0
    %1791 = vmatprep.subr.mxu0 0.0
    %1792 = vmatpush1.msra.mxu0 0.0
    %1793 = vmatprep.subr.mxu0 0.0
    %1794 = vmatpush1.msra.mxu0 0.0
    %1795 = vmatprep.subr.mxu0 0.0
    %1796 = vmatpush1.msra.mxu0 0.0
    %1797 = vmatprep.subr.mxu0 0.0
    %1798 = vmatpush1.msra.mxu0 0.0
    %1799 = vmatprep.subr.mxu0 0.0
    %1800 = vmatpush1.msra.mxu0 0.0
    %1801 = vmatprep.subr.mxu0 0.0
    %1802 = vmatpush1.msra.mxu0 0.0
    %1803 = vmatprep.subr.mxu0 0.0
    %1804 = vmatpush1.msra.mxu0 0.0
    %1805 = vmatprep.subr.mxu0 0.0
    %1806 = vmatpush1.msra.mxu0 0.0
    %1807 = vmatprep.subr.mxu0 0.0
    %1808 = vmatpush1.msra.mxu0 0.0
    %1809 = vmatprep.subr.mxu0 0.0
    %1810 = vmatpush1.msra.mxu0 0.0
    %1811 = vmatprep.subr.mxu0 0.0
    %1812 = vmatpush1.msra.mxu0 0.0
    %1813 = vmatprep.subr.mxu0 0.0
    %1814 = vmatpush1.msra.mxu0 0.0
    %1815 = vmatprep.subr.mxu0 0.0
    %1816 = vmatpush1.msra.mxu0 0.0
    %1817 = vmatprep.subr.mxu0 0.0
    %1818 = vmatpush1.msra.mxu0 0.0
    %1819 = vmatprep.subr.mxu0 %v1714
    %1820 = vmatpush1.msra.mxu0 %v1713
    %1821 = vmatprep.subr.mxu0 %v1710
    %1822 = vmatpush1.msra.mxu0 %v1709
    %1823 = vmatprep.subr.mxu0 0.0
    %1824 = vmatpush2.msra.mxu0 0.0
    %1825 = vmatprep.subr.mxu0 0.0
    %1826 = vmatpush2.msra.mxu0 0.0
    %1827 = vmatprep.subr.mxu0 0.0
    %1828 = vmatpush2.msra.mxu0 0.0
    %1829 = vmatprep.subr.mxu0 0.0
    %1830 = vmatpush2.msra.mxu0 0.0
    %1831 = vmatprep.subr.mxu0 0.0
    %1832 = vmatpush2.msra.mxu0 0.0
    %1833 = vmatprep.subr.mxu0 0.0
    %1834 = vmatpush2.msra.mxu0 0.0
    %1835 = vmatprep.subr.mxu0 0.0
    %1836 = vmatpush2.msra.mxu0 0.0
    %1837 = vmatprep.subr.mxu0 0.0
    %1838 = vmatpush2.msra.mxu0 0.0
    %1839 = vmatprep.subr.mxu0 0.0
    %1840 = vmatpush2.msra.mxu0 0.0
    %1841 = vmatprep.subr.mxu0 0.0
    %1842 = vmatpush2.msra.mxu0 0.0
    %1843 = vmatprep.subr.mxu0 0.0
    %1844 = vmatpush2.msra.mxu0 0.0
    %1845 = vmatprep.subr.mxu0 0.0
    %1846 = vmatpush2.msra.mxu0 0.0
    %1847 = vmatprep.subr.mxu0 0.0
    %1848 = vmatpush2.msra.mxu0 0.0
    %1849 = vmatprep.subr.mxu0 0.0
    %1850 = vmatpush2.msra.mxu0 0.0
    %1851 = vmatprep.subr.mxu0 0.0
    %1852 = vmatpush2.msra.mxu0 0.0
    %1853 = vmatprep.subr.mxu0 0.0
    %1854 = vmatpush2.msra.mxu0 0.0
    %1855 = vmatprep.mubr.f32.mxu0 0.0
    %1856 = vmatmul.mubr.f32.gmra.mxu0 %v1718
    %v1857 = vpop.f32.mrf.mxu0
    %v1858 = vadd.f32 0.0, %v1857
    %v1859 = vpop.f32.mrf.mxu0
    %v1860 = vadd.f32 0.0, %v1859
    %1861 = vdwg.mxu0
    %s1862 = scalar_lea.vmem %s3, 224
    %v1863 = vld [vmem:[%s1862] sm:$0xff]
    %s1864 = scalar_lea.vmem %s3, 240
    %v1865 = vld [vmem:[%s1864] sm:$0xff]
    %v1866 = vsel %vm124, %v1787, 0.0
    %v1867 = vsel %vm124, %v1789, 0.0
    %v1868 = vadd.f32 %v1866, %v1867
    %v1869 = vsel %vm124, %v1858, 0.0
    %v1870 = vadd.f32 %v1868, %v1869
    %v1871 = vsel %vm124, %v1860, 0.0
    %v1872 = vadd.f32 %v1870, %v1871
    %1873 = vadd.xlane.f32.xlu0 %v1872
    %v1874 = vpop.xlane.xlu0 %1873
    %v1875 = vmul.f32 %v1874, %v134
    %v1876 = vmul.f32 %v1787, %v1787
    %v1877 = vmul.f32 %v1789, %v1789
    %v1878 = vmul.f32 %v1858, %v1858
    %v1879 = vmul.f32 %v1860, %v1860
    %v1880 = vsel %vm124, %v1876, 0.0
    %v1881 = vsel %vm124, %v1877, 0.0
    %v1882 = vadd.f32 %v1880, %v1881
    %v1883 = vsel %vm124, %v1878, 0.0
    %v1884 = vadd.f32 %v1882, %v1883
    %v1885 = vsel %vm124, %v1879, 0.0
    %v1886 = vadd.f32 %v1884, %v1885
    %1887 = vadd.xlane.f32.xlu0 %v1886
    %v1888 = vpop.xlane.xlu0 %1887
    %v1889 = vmul.f32 %v1888, %v134
    %v1890 = vmul.f32 %v1875, %v1875
    %v1891 = vsub.f32 %v1889, %v1890
    %v1892 = vmax.f32 %v1891, 0.0
    %v1893 = vsub.f32 %v1787, %v1875
    %v1894 = vsub.f32 %v1789, %v1875
    %v1895 = vsub.f32 %v1858, %v1875
    %v1896 = vsub.f32 %v1860, %v1875
    %v1897 = vadd.f32 %v1892, 1e-06
    %v1898 = vrsqrt.pop %v1897
    %v1899 = vmul.f32 %v1893, %v1898
    %v1900 = vmul.f32 %v1894, %v1898
    %v1901 = vmul.f32 %v1895, %v1898
    %v1902 = vmul.f32 %v1896, %v1898
    %1904 = vset.pattern.permute.xlu0 0
    %1905 = vperm.xlu0 %1904, %v1863
    %v1906 = vpop.permute.xlu0 %1905
    %v1908 = vmul.f32 %v1899, %v1906
    %v1909 = vmul.f32 %v1900, %v1906
    %v1910 = vmul.f32 %v1901, %v1906
    %v1911 = vmul.f32 %v1902, %v1906
    %1913 = vset.pattern.permute.xlu0 0
    %1914 = vperm.xlu0 %1913, %v1865
    %v1915 = vpop.permute.xlu0 %1914
    %v1917 = vadd.f32 %v1908, %v1915
    %v1918 = vadd.f32 %v1909, %v1915
    %v1919 = vadd.f32 %v1910, %v1915
    %v1920 = vadd.f32 %v1911, %v1915
    %v1921 = vmul.f32 %v1917, 0.25
    %v1922 = vmul.f32 %v1918, 0.25
    %v1923 = vmul.f32 %v1919, 0.25
    %v1924 = vmul.f32 %v1920, 0.25
    %v1925 = vmul.f32 %v1921, %v1921
    %v1926 = vmul.f32 %v1922, %v1922
    %v1927 = vmul.f32 %v1923, %v1923
    %v1928 = vmul.f32 %v1924, %v1924
    %v1929 = vsel %vm124, %v1925, 0.0
    %v1930 = vrot.slane %v1929, 4
    %v1931 = vadd.f32 %v1929, %v1930
    %v1932 = vrot.slane %v1931, 2
    %v1933 = vadd.f32 %v1931, %v1932
    %v1934 = vrot.slane %v1933, 1
    %v1935 = vadd.f32 %v1933, %v1934
    %v1936 = vsel %vm124, %v1926, 0.0
    %v1937 = vrot.slane %v1936, 4
    %v1938 = vadd.f32 %v1936, %v1937
    %v1939 = vrot.slane %v1938, 2
    %v1940 = vadd.f32 %v1938, %v1939
    %v1941 = vrot.slane %v1940, 1
    %v1942 = vadd.f32 %v1940, %v1941
    %v1943 = vsel %vm124, %v1927, 0.0
    %v1944 = vrot.slane %v1943, 4
    %v1945 = vadd.f32 %v1943, %v1944
    %v1946 = vrot.slane %v1945, 2
    %v1947 = vadd.f32 %v1945, %v1946
    %v1948 = vrot.slane %v1947, 1
    %v1949 = vadd.f32 %v1947, %v1948
    %v1950 = vsel %vm124, %v1928, 0.0
    %v1951 = vrot.slane %v1950, 4
    %v1952 = vadd.f32 %v1950, %v1951
    %v1953 = vrot.slane %v1952, 2
    %v1954 = vadd.f32 %v1952, %v1953
    %v1955 = vrot.slane %v1954, 1
    %v1956 = vadd.f32 %v1954, %v1955
    %v1957 = vmul.f32 %v1935, 0.25
    %v1958 = vmul.f32 %v1942, 0.25
    %v1959 = vmul.f32 %v1949, 0.25
    %v1960 = vmul.f32 %v1956, 0.25
    %v1965 = vcombine.low %v1957, %v1958
    %v1966 = vcombine.low %v1959, %v1960
    %v1969 = vadd.f32 %v1066, %v1965
    %v1970 = vadd.f32 %v1067, %v1966
    %v1973 = vcombine.high %v43, %v43
    %v1974 = vcombine.high %v44, %v44
    %v1977 = vmul.f32 %v1921, %v43
    %v1978 = vmul.f32 %v1922, %v1973
    %v1979 = vmul.f32 %v1923, %v44
    %v1980 = vmul.f32 %v1924, %v1974
    %v1981 = vsel %vm124, %v1977, 0.0
    %v1982 = vrot.slane %v1981, 4
    %v1983 = vadd.f32 %v1981, %v1982
    %v1984 = vrot.slane %v1983, 2
    %v1985 = vadd.f32 %v1983, %v1984
    %v1986 = vrot.slane %v1985, 1
    %v1987 = vadd.f32 %v1985, %v1986
    %v1988 = vsel %vm124, %v1978, 0.0
    %v1989 = vrot.slane %v1988, 4
    %v1990 = vadd.f32 %v1988, %v1989
    %v1991 = vrot.slane %v1990, 2
    %v1992 = vadd.f32 %v1990, %v1991
    %v1993 = vrot.slane %v1992, 1
    %v1994 = vadd.f32 %v1992, %v1993
    %v1995 = vsel %vm124, %v1979, 0.0
    %v1996 = vrot.slane %v1995, 4
    %v1997 = vadd.f32 %v1995, %v1996
    %v1998 = vrot.slane %v1997, 2
    %v1999 = vadd.f32 %v1997, %v1998
    %v2000 = vrot.slane %v1999, 1
    %v2001 = vadd.f32 %v1999, %v2000
    %v2002 = vsel %vm124, %v1980, 0.0
    %v2003 = vrot.slane %v2002, 4
    %v2004 = vadd.f32 %v2002, %v2003
    %v2005 = vrot.slane %v2004, 2
    %v2006 = vadd.f32 %v2004, %v2005
    %v2007 = vrot.slane %v2006, 1
    %v2008 = vadd.f32 %v2006, %v2007
    %v2013 = vcombine.low %v1987, %v1994
    %v2014 = vcombine.low %v2001, %v2008
    %v2017 = vadd.f32 %v1969, %v2013
    %v2018 = vadd.f32 %v1970, %v2014
    %s2019 = scalar_lea.vmem %s3, 256
    %v2020 = vld [vmem:[%s2019] sm:$0xff]
    %s2021 = scalar_lea.vmem %s3, 272
    %v2022 = vld [vmem:[%s2021] sm:$0xff]
    %v2025 = vcombine.high %v47, %v47
    %v2026 = vcombine.high %v48, %v48
    %v2029 = vsel %vm124, %v47, 0.0
    %v2030 = vsel %vm124, %v2025, 0.0
    %v2031 = vadd.f32 %v2029, %v2030
    %v2032 = vsel %vm124, %v48, 0.0
    %v2033 = vadd.f32 %v2031, %v2032
    %v2034 = vsel %vm124, %v2026, 0.0
    %v2035 = vadd.f32 %v2033, %v2034
    %2036 = vadd.xlane.f32.xlu0 %v2035
    %v2037 = vpop.xlane.xlu0 %2036
    %v2038 = vmul.f32 %v2037, %v134
    %v2039 = vmul.f32 %v47, %v47
    %v2040 = vmul.f32 %v48, %v48
    %v2043 = vcombine.high %v2039, %v2039
    %v2044 = vcombine.high %v2040, %v2040
    %v2047 = vsel %vm124, %v2039, 0.0
    %v2048 = vsel %vm124, %v2043, 0.0
    %v2049 = vadd.f32 %v2047, %v2048
    %v2050 = vsel %vm124, %v2040, 0.0
    %v2051 = vadd.f32 %v2049, %v2050
    %v2052 = vsel %vm124, %v2044, 0.0
    %v2053 = vadd.f32 %v2051, %v2052
    %2054 = vadd.xlane.f32.xlu0 %v2053
    %v2055 = vpop.xlane.xlu0 %2054
    %v2056 = vmul.f32 %v2055, %v134
    %v2057 = vmul.f32 %v2038, %v2038
    %v2058 = vsub.f32 %v2056, %v2057
    %v2059 = vmax.f32 %v2058, 0.0
    %v2062 = vunpack.c.l.s4 839922192
    %v2063 = vunpack.c.0.s8 %v2062
    %v2064 = vlaneseq
    %v2065 = vshrl.u32 %v2064, 7
    %v2066 = vsub.s32 %v2063, %v2065
    %v2067 = vrot.slane %v2038, %v2066
    %v2069 = vsub.f32 %v47, %v2067
    %v2070 = vsub.f32 %v48, %v2067
    %v2071 = vadd.f32 %v2059, 1e-06
    %v2072 = vrsqrt.pop %v2071
    %v2075 = vunpack.c.l.s4 839922192
    %v2076 = vunpack.c.0.s8 %v2075
    %v2077 = vlaneseq
    %v2078 = vshrl.u32 %v2077, 7
    %v2079 = vsub.s32 %v2076, %v2078
    %v2080 = vrot.slane %v2072, %v2079
    %v2082 = vmul.f32 %v2069, %v2080
    %v2083 = vmul.f32 %v2070, %v2080
    %2085 = vset.pattern.permute.xlu0 0
    %2086 = vperm.xlu0 %2085, %v2020
    %v2087 = vpop.permute.xlu0 %2086
    %v2089 = vunpack.c.l.s4 839922192
    %v2090 = vunpack.c.0.s8 %v2089
    %v2091 = vlaneseq
    %v2092 = vshrl.u32 %v2091, 7
    %v2093 = vsub.s32 %v2090, %v2092
    %v2094 = vrot.slane %v2087, %v2093
    %v2096 = vmul.f32 %v2082, %v2094
    %v2097 = vmul.f32 %v2083, %v2094
    %2099 = vset.pattern.permute.xlu0 0
    %2100 = vperm.xlu0 %2099, %v2022
    %v2101 = vpop.permute.xlu0 %2100
    %v2103 = vunpack.c.l.s4 839922192
    %v2104 = vunpack.c.0.s8 %v2103
    %v2105 = vlaneseq
    %v2106 = vshrl.u32 %v2105, 7
    %v2107 = vsub.s32 %v2104, %v2106
    %v2108 = vrot.slane %v2101, %v2107
    %v2110 = vadd.f32 %v2096, %v2108
    %v2111 = vadd.f32 %v2097, %v2108
    %s2112 = scalar_lea.vmem %s2, 96
    %v2113 = vld [vmem:[%s2112] sm:$0xff]
    %v2114 = vld [vmem:[%s2112 + $0x8] sm:$0xff]
    %v2117 = vcombine.high %v2110, %v2110
    %v2118 = vcombine.high %v2111, %v2111
    %v2120 = vsel %vm215, %v2113, 0
    %v2123 = vsel %vm215, %v2114, 0
    %v2125 = vsel %vm124, %v2110, 0
    %v2127 = vsel %vm124, %v2117, 0
    %v2129 = vsel %vm124, %v2111, 0
    %v2131 = vsel %vm124, %v2118, 0
    %2133 = vmatprep.subr.mxu0 0.0
    %2134 = vmatpush1.msra.mxu0 0.0
    %2135 = vmatprep.subr.mxu0 0.0
    %2136 = vmatpush1.msra.mxu0 0.0
    %2137 = vmatprep.subr.mxu0 0.0
    %2138 = vmatpush1.msra.mxu0 0.0
    %2139 = vmatprep.subr.mxu0 0.0
    %2140 = vmatpush1.msra.mxu0 0.0
    %2141 = vmatprep.subr.mxu0 0.0
    %2142 = vmatpush1.msra.mxu0 0.0
    %2143 = vmatprep.subr.mxu0 0.0
    %2144 = vmatpush1.msra.mxu0 0.0
    %2145 = vmatprep.subr.mxu0 0.0
    %2146 = vmatpush1.msra.mxu0 0.0
    %2147 = vmatprep.subr.mxu0 0.0
    %2148 = vmatpush1.msra.mxu0 0.0
    %2149 = vmatprep.subr.mxu0 0.0
    %2150 = vmatpush1.msra.mxu0 0.0
    %2151 = vmatprep.subr.mxu0 0.0
    %2152 = vmatpush1.msra.mxu0 0.0
    %2153 = vmatprep.subr.mxu0 0.0
    %2154 = vmatpush1.msra.mxu0 0.0
    %2155 = vmatprep.subr.mxu0 0.0
    %2156 = vmatpush1.msra.mxu0 0.0
    %2157 = vmatprep.subr.mxu0 0.0
    %2158 = vmatpush1.msra.mxu0 0.0
    %2159 = vmatprep.subr.mxu0 0.0
    %2160 = vmatpush1.msra.mxu0 0.0
    %2161 = vmatprep.subr.mxu0 0.0
    %2162 = vmatpush1.msra.mxu0 0.0
    %2163 = vmatprep.subr.mxu0 %v2127
    %2164 = vmatpush1.msra.mxu0 %v2125
    %2165 = vmatprep.subr.mxu0 0.0
    %2166 = vmatpush2.msra.mxu0 0.0
    %2167 = vmatprep.subr.mxu0 0.0
    %2168 = vmatpush2.msra.mxu0 0.0
    %2169 = vmatprep.subr.mxu0 0.0
    %2170 = vmatpush2.msra.mxu0 0.0
    %2171 = vmatprep.subr.mxu0 0.0
    %2172 = vmatpush2.msra.mxu0 0.0
    %2173 = vmatprep.subr.mxu0 0.0
    %2174 = vmatpush2.msra.mxu0 0.0
    %2175 = vmatprep.subr.mxu0 0.0
    %2176 = vmatpush2.msra.mxu0 0.0
    %2177 = vmatprep.subr.mxu0 0.0
    %2178 = vmatpush2.msra.mxu0 0.0
    %2179 = vmatprep.subr.mxu0 0.0
    %2180 = vmatpush2.msra.mxu0 0.0
    %2181 = vmatprep.subr.mxu0 0.0
    %2182 = vmatpush2.msra.mxu0 0.0
    %2183 = vmatprep.subr.mxu0 0.0
    %2184 = vmatpush2.msra.mxu0 0.0
    %2185 = vmatprep.subr.mxu0 0.0
    %2186 = vmatpush2.msra.mxu0 0.0
    %2187 = vmatprep.subr.mxu0 0.0
    %2188 = vmatpush2.msra.mxu0 0.0
    %2189 = vmatprep.subr.mxu0 0.0
    %2190 = vmatpush2.msra.mxu0 0.0
    %2191 = vmatprep.subr.mxu0 0.0
    %2192 = vmatpush2.msra.mxu0 0.0
    %2193 = vmatprep.subr.mxu0 0.0
    %2194 = vmatpush2.msra.mxu0 0.0
    %2195 = vmatprep.subr.mxu0 0.0
    %2196 = vmatpush2.msra.mxu0 0.0
    %2197 = vmatprep.mubr.f32.mxu0 0.0
    %2198 = vmatmul.mubr.f32.gmra.mxu0 %v2120
    %v2199 = vpop.f32.mrf.mxu0
    %v2200 = vadd.f32 0.0, %v2199
    %v2201 = vpop.f32.mrf.mxu0
    %v2202 = vadd.f32 0.0, %v2201
    %2203 = vmatprep.mubr.f32.mxu0 0.0
    %2204 = vmatmul.mubr.f32.gmra.mxu0 %v2123
    %v2205 = vpop.f32.mrf.mxu0
    %v2206 = vadd.f32 0.0, %v2205
    %v2207 = vpop.f32.mrf.mxu0
    %v2208 = vadd.f32 0.0, %v2207
    %2209 = vdwg.mxu0
    %2210 = vmatprep.subr.mxu0 0.0
    %2211 = vmatpush1.msra.mxu0 0.0
    %2212 = vmatprep.subr.mxu0 0.0
    %2213 = vmatpush1.msra.mxu0 0.0
    %2214 = vmatprep.subr.mxu0 0.0
    %2215 = vmatpush1.msra.mxu0 0.0
    %2216 = vmatprep.subr.mxu0 0.0
    %2217 = vmatpush1.msra.mxu0 0.0
    %2218 = vmatprep.subr.mxu0 0.0
    %2219 = vmatpush1.msra.mxu0 0.0
    %2220 = vmatprep.subr.mxu0 0.0
    %2221 = vmatpush1.msra.mxu0 0.0
    %2222 = vmatprep.subr.mxu0 0.0
    %2223 = vmatpush1.msra.mxu0 0.0
    %2224 = vmatprep.subr.mxu0 0.0
    %2225 = vmatpush1.msra.mxu0 0.0
    %2226 = vmatprep.subr.mxu0 0.0
    %2227 = vmatpush1.msra.mxu0 0.0
    %2228 = vmatprep.subr.mxu0 0.0
    %2229 = vmatpush1.msra.mxu0 0.0
    %2230 = vmatprep.subr.mxu0 0.0
    %2231 = vmatpush1.msra.mxu0 0.0
    %2232 = vmatprep.subr.mxu0 0.0
    %2233 = vmatpush1.msra.mxu0 0.0
    %2234 = vmatprep.subr.mxu0 0.0
    %2235 = vmatpush1.msra.mxu0 0.0
    %2236 = vmatprep.subr.mxu0 0.0
    %2237 = vmatpush1.msra.mxu0 0.0
    %2238 = vmatprep.subr.mxu0 0.0
    %2239 = vmatpush1.msra.mxu0 0.0
    %2240 = vmatprep.subr.mxu0 %v2131
    %2241 = vmatpush1.msra.mxu0 %v2129
    %2242 = vmatprep.subr.mxu0 0.0
    %2243 = vmatpush2.msra.mxu0 0.0
    %2244 = vmatprep.subr.mxu0 0.0
    %2245 = vmatpush2.msra.mxu0 0.0
    %2246 = vmatprep.subr.mxu0 0.0
    %2247 = vmatpush2.msra.mxu0 0.0
    %2248 = vmatprep.subr.mxu0 0.0
    %2249 = vmatpush2.msra.mxu0 0.0
    %2250 = vmatprep.subr.mxu0 0.0
    %2251 = vmatpush2.msra.mxu0 0.0
    %2252 = vmatprep.subr.mxu0 0.0
    %2253 = vmatpush2.msra.mxu0 0.0
    %2254 = vmatprep.subr.mxu0 0.0
    %2255 = vmatpush2.msra.mxu0 0.0
    %2256 = vmatprep.subr.mxu0 0.0
    %2257 = vmatpush2.msra.mxu0 0.0
    %2258 = vmatprep.subr.mxu0 0.0
    %2259 = vmatpush2.msra.mxu0 0.0
    %2260 = vmatprep.subr.mxu0 0.0
    %2261 = vmatpush2.msra.mxu0 0.0
    %2262 = vmatprep.subr.mxu0 0.0
    %2263 = vmatpush2.msra.mxu0 0.0
    %2264 = vmatprep.subr.mxu0 0.0
    %2265 = vmatpush2.msra.mxu0 0.0
    %2266 = vmatprep.subr.mxu0 0.0
    %2267 = vmatpush2.msra.mxu0 0.0
    %2268 = vmatprep.subr.mxu0 0.0
    %2269 = vmatpush2.msra.mxu0 0.0
    %2270 = vmatprep.subr.mxu0 0.0
    %2271 = vmatpush2.msra.mxu0 0.0
    %2272 = vmatprep.subr.mxu0 0.0
    %2273 = vmatpush2.msra.mxu0 0.0
    %2274 = vmatprep.mubr.f32.mxu0 0.0
    %2275 = vmatmul.mubr.f32.gmra.mxu0 %v2120
    %v2276 = vpop.f32.mrf.mxu0
    %v2277 = vadd.f32 0.0, %v2276
    %v2278 = vpop.f32.mrf.mxu0
    %v2279 = vadd.f32 0.0, %v2278
    %2280 = vmatprep.mubr.f32.mxu0 0.0
    %2281 = vmatmul.mubr.f32.gmra.mxu0 %v2123
    %v2282 = vpop.f32.mrf.mxu0
    %v2283 = vadd.f32 0.0, %v2282
    %v2284 = vpop.f32.mrf.mxu0
    %v2285 = vadd.f32 0.0, %v2284
    %2286 = vdwg.mxu0
    %s2287 = scalar_lea.vmem %s3, 288
    %v2288 = vld [vmem:[%s2287] sm:$0xff]
    %v2289 = vld [vmem:[%s2287 + $0x8] sm:$0xff]
    %s2290 = scalar_lea.vmem %s3, 304
    %v2291 = vld [vmem:[%s2290] sm:$0xff]
    %v2292 = vld [vmem:[%s2290 + $0x8] sm:$0xff]
    %v2293 = vadd.f32 %v2200, %v2202
    %v2294 = vadd.f32 %v2293, %v2277
    %v2295 = vadd.f32 %v2294, %v2279
    %2296 = vadd.xlane.f32.xlu0 %v2295
    %v2297 = vpop.xlane.xlu0 %2296
    %v2298 = vadd.f32 %v2206, %v2208
    %v2299 = vadd.f32 %v2298, %v2283
    %v2300 = vadd.f32 %v2299, %v2285
    %2301 = vadd.xlane.f32.xlu0 %v2300
    %v2302 = vpop.xlane.xlu0 %2301
    %v2303 = vmul.f32 %v2297, %v134
    %v2304 = vmul.f32 %v2302, %v134
    %v2305 = vmul.f32 %v2200, %v2200
    %v2306 = vmul.f32 %v2202, %v2202
    %v2307 = vmul.f32 %v2277, %v2277
    %v2308 = vmul.f32 %v2279, %v2279
    %v2309 = vmul.f32 %v2206, %v2206
    %v2310 = vmul.f32 %v2208, %v2208
    %v2311 = vmul.f32 %v2283, %v2283
    %v2312 = vmul.f32 %v2285, %v2285
    %v2313 = vadd.f32 %v2305, %v2306
    %v2314 = vadd.f32 %v2313, %v2307
    %v2315 = vadd.f32 %v2314, %v2308
    %2316 = vadd.xlane.f32.xlu0 %v2315
    %v2317 = vpop.xlane.xlu0 %2316
    %v2318 = vadd.f32 %v2309, %v2310
    %v2319 = vadd.f32 %v2318, %v2311
    %v2320 = vadd.f32 %v2319, %v2312
    %2321 = vadd.xlane.f32.xlu0 %v2320
    %v2322 = vpop.xlane.xlu0 %2321
    %v2323 = vmul.f32 %v2317, %v134
    %v2324 = vmul.f32 %v2322, %v134
    %v2325 = vmul.f32 %v2303, %v2303
    %v2326 = vmul.f32 %v2304, %v2304
    %v2327 = vsub.f32 %v2323, %v2325
    %v2328 = vsub.f32 %v2324, %v2326
    %v2329 = vmax.f32 %v2327, 0.0
    %v2330 = vmax.f32 %v2328, 0.0
    %v2331 = vsub.f32 %v2200, %v2303
    %v2332 = vsub.f32 %v2202, %v2303
    %v2333 = vsub.f32 %v2277, %v2303
    %v2334 = vsub.f32 %v2279, %v2303
    %v2335 = vsub.f32 %v2206, %v2304
    %v2336 = vsub.f32 %v2208, %v2304
    %v2337 = vsub.f32 %v2283, %v2304
    %v2338 = vsub.f32 %v2285, %v2304
    %v2339 = vadd.f32 %v2329, 1e-06
    %v2340 = vadd.f32 %v2330, 1e-06
    %v2341 = vrsqrt.pop %v2339
    %v2342 = vrsqrt.pop %v2340
    %v2343 = vmul.f32 %v2331, %v2341
    %v2344 = vmul.f32 %v2332, %v2341
    %v2345 = vmul.f32 %v2333, %v2341
    %v2346 = vmul.f32 %v2334, %v2341
    %v2347 = vmul.f32 %v2335, %v2342
    %v2348 = vmul.f32 %v2336, %v2342
    %v2349 = vmul.f32 %v2337, %v2342
    %v2350 = vmul.f32 %v2338, %v2342
    %2352 = vset.pattern.permute.xlu0 0
    %2353 = vperm.xlu0 %2352, %v2288
    %v2354 = vpop.permute.xlu0 %2353
    %2357 = vset.pattern.permute.xlu0 0
    %2358 = vperm.xlu0 %2357, %v2289
    %v2359 = vpop.permute.xlu0 %2358
    %v2361 = vmul.f32 %v2343, %v2354
    %v2362 = vmul.f32 %v2344, %v2354
    %v2363 = vmul.f32 %v2345, %v2354
    %v2364 = vmul.f32 %v2346, %v2354
    %v2365 = vmul.f32 %v2347, %v2359
    %v2366 = vmul.f32 %v2348, %v2359
    %v2367 = vmul.f32 %v2349, %v2359
    %v2368 = vmul.f32 %v2350, %v2359
    %2370 = vset.pattern.permute.xlu0 0
    %2371 = vperm.xlu0 %2370, %v2291
    %v2372 = vpop.permute.xlu0 %2371
    %2375 = vset.pattern.permute.xlu0 0
    %2376 = vperm.xlu0 %2375, %v2292
    %v2377 = vpop.permute.xlu0 %2376
    %v2379 = vadd.f32 %v2361, %v2372
    %v2380 = vadd.f32 %v2362, %v2372
    %v2381 = vadd.f32 %v2363, %v2372
    %v2382 = vadd.f32 %v2364, %v2372
    %v2383 = vadd.f32 %v2365, %v2377
    %v2384 = vadd.f32 %v2366, %v2377
    %v2385 = vadd.f32 %v2367, %v2377
    %v2386 = vadd.f32 %v2368, %v2377
    %v2387 = vmax.f32 %v2379, 0.0
    %v2388 = vmax.f32 %v2380, 0.0
    %v2389 = vmax.f32 %v2381, 0.0
    %v2390 = vmax.f32 %v2382, 0.0
    %v2391 = vmax.f32 %v2383, 0.0
    %v2392 = vmax.f32 %v2384, 0.0
    %v2393 = vmax.f32 %v2385, 0.0
    %v2394 = vmax.f32 %v2386, 0.0
    %s2395 = scalar_lea.vmem %s2, 112
    %v2396 = vld [vmem:[%s2395] sm:$0xff]
    %v2397 = vld [vmem:[%s2395 + $0x8] sm:$0xff]
    %v2399 = vsel %vm495, %v2396, 0
    %v2402 = vsel %vm495, %v2397, 0
    %2404 = vmatprep.subr.mxu0 0.0
    %2405 = vmatpush1.msra.mxu0 0.0
    %2406 = vmatprep.subr.mxu0 0.0
    %2407 = vmatpush1.msra.mxu0 0.0
    %2408 = vmatprep.subr.mxu0 0.0
    %2409 = vmatpush1.msra.mxu0 0.0
    %2410 = vmatprep.subr.mxu0 0.0
    %2411 = vmatpush1.msra.mxu0 0.0
    %2412 = vmatprep.subr.mxu0 0.0
    %2413 = vmatpush1.msra.mxu0 0.0
    %2414 = vmatprep.subr.mxu0 0.0
    %2415 = vmatpush1.msra.mxu0 0.0
    %2416 = vmatprep.subr.mxu0 0.0
    %2417 = vmatpush1.msra.mxu0 0.0
    %2418 = vmatprep.subr.mxu0 0.0
    %2419 = vmatpush1.msra.mxu0 0.0
    %2420 = vmatprep.subr.mxu0 0.0
    %2421 = vmatpush1.msra.mxu0 0.0
    %2422 = vmatprep.subr.mxu0 0.0
    %2423 = vmatpush1.msra.mxu0 0.0
    %2424 = vmatprep.subr.mxu0 0.0
    %2425 = vmatpush1.msra.mxu0 0.0
    %2426 = vmatprep.subr.mxu0 0.0
    %2427 = vmatpush1.msra.mxu0 0.0
    %2428 = vmatprep.subr.mxu0 0.0
    %2429 = vmatpush1.msra.mxu0 0.0
    %2430 = vmatprep.subr.mxu0 0.0
    %2431 = vmatpush1.msra.mxu0 0.0
    %2432 = vmatprep.subr.mxu0 %v2392
    %2433 = vmatpush1.msra.mxu0 %v2391
    %2434 = vmatprep.subr.mxu0 %v2388
    %2435 = vmatpush1.msra.mxu0 %v2387
    %2436 = vmatprep.subr.mxu0 0.0
    %2437 = vmatpush2.msra.mxu0 0.0
    %2438 = vmatprep.subr.mxu0 0.0
    %2439 = vmatpush2.msra.mxu0 0.0
    %2440 = vmatprep.subr.mxu0 0.0
    %2441 = vmatpush2.msra.mxu0 0.0
    %2442 = vmatprep.subr.mxu0 0.0
    %2443 = vmatpush2.msra.mxu0 0.0
    %2444 = vmatprep.subr.mxu0 0.0
    %2445 = vmatpush2.msra.mxu0 0.0
    %2446 = vmatprep.subr.mxu0 0.0
    %2447 = vmatpush2.msra.mxu0 0.0
    %2448 = vmatprep.subr.mxu0 0.0
    %2449 = vmatpush2.msra.mxu0 0.0
    %2450 = vmatprep.subr.mxu0 0.0
    %2451 = vmatpush2.msra.mxu0 0.0
    %2452 = vmatprep.subr.mxu0 0.0
    %2453 = vmatpush2.msra.mxu0 0.0
    %2454 = vmatprep.subr.mxu0 0.0
    %2455 = vmatpush2.msra.mxu0 0.0
    %2456 = vmatprep.subr.mxu0 0.0
    %2457 = vmatpush2.msra.mxu0 0.0
    %2458 = vmatprep.subr.mxu0 0.0
    %2459 = vmatpush2.msra.mxu0 0.0
    %2460 = vmatprep.subr.mxu0 0.0
    %2461 = vmatpush2.msra.mxu0 0.0
    %2462 = vmatprep.subr.mxu0 0.0
    %2463 = vmatpush2.msra.mxu0 0.0
    %2464 = vmatprep.subr.mxu0 0.0
    %2465 = vmatpush2.msra.mxu0 0.0
    %2466 = vmatprep.subr.mxu0 0.0
    %2467 = vmatpush2.msra.mxu0 0.0
    %2468 = vmatprep.mubr.f32.mxu0 0.0
    %2469 = vmatmul.mubr.f32.gmra.mxu0 %v2399
    %v2470 = vpop.f32.mrf.mxu0
    %v2471 = vadd.f32 0.0, %v2470
    %v2472 = vpop.f32.mrf.mxu0
    %v2473 = vadd.f32 0.0, %v2472
    %2474 = vmatprep.mubr.f32.mxu0 0.0
    %2475 = vmatmul.mubr.f32.gmra.mxu0 %v2402
    %v2476 = vpop.f32.mrf.mxu0
    %v2477 = vadd.f32 0.0, %v2476
    %v2478 = vpop.f32.mrf.mxu0
    %v2479 = vadd.f32 0.0, %v2478
    %2480 = vdwg.mxu0
    %2481 = vmatprep.subr.mxu0 0.0
    %2482 = vmatpush1.msra.mxu0 0.0
    %2483 = vmatprep.subr.mxu0 0.0
    %2484 = vmatpush1.msra.mxu0 0.0
    %2485 = vmatprep.subr.mxu0 0.0
    %2486 = vmatpush1.msra.mxu0 0.0
    %2487 = vmatprep.subr.mxu0 0.0
    %2488 = vmatpush1.msra.mxu0 0.0
    %2489 = vmatprep.subr.mxu0 0.0
    %2490 = vmatpush1.msra.mxu0 0.0
    %2491 = vmatprep.subr.mxu0 0.0
    %2492 = vmatpush1.msra.mxu0 0.0
    %2493 = vmatprep.subr.mxu0 0.0
    %2494 = vmatpush1.msra.mxu0 0.0
    %2495 = vmatprep.subr.mxu0 0.0
    %2496 = vmatpush1.msra.mxu0 0.0
    %2497 = vmatprep.subr.mxu0 0.0
    %2498 = vmatpush1.msra.mxu0 0.0
    %2499 = vmatprep.subr.mxu0 0.0
    %2500 = vmatpush1.msra.mxu0 0.0
    %2501 = vmatprep.subr.mxu0 0.0
    %2502 = vmatpush1.msra.mxu0 0.0
    %2503 = vmatprep.subr.mxu0 0.0
    %2504 = vmatpush1.msra.mxu0 0.0
    %2505 = vmatprep.subr.mxu0 0.0
    %2506 = vmatpush1.msra.mxu0 0.0
    %2507 = vmatprep.subr.mxu0 0.0
    %2508 = vmatpush1.msra.mxu0 0.0
    %2509 = vmatprep.subr.mxu0 %v2394
    %2510 = vmatpush1.msra.mxu0 %v2393
    %2511 = vmatprep.subr.mxu0 %v2390
    %2512 = vmatpush1.msra.mxu0 %v2389
    %2513 = vmatprep.subr.mxu0 0.0
    %2514 = vmatpush2.msra.mxu0 0.0
    %2515 = vmatprep.subr.mxu0 0.0
    %2516 = vmatpush2.msra.mxu0 0.0
    %2517 = vmatprep.subr.mxu0 0.0
    %2518 = vmatpush2.msra.mxu0 0.0
    %2519 = vmatprep.subr.mxu0 0.0
    %2520 = vmatpush2.msra.mxu0 0.0
    %2521 = vmatprep.subr.mxu0 0.0
    %2522 = vmatpush2.msra.mxu0 0.0
    %2523 = vmatprep.subr.mxu0 0.0
    %2524 = vmatpush2.msra.mxu0 0.0
    %2525 = vmatprep.subr.mxu0 0.0
    %2526 = vmatpush2.msra.mxu0 0.0
    %2527 = vmatprep.subr.mxu0 0.0
    %2528 = vmatpush2.msra.mxu0 0.0
    %2529 = vmatprep.subr.mxu0 0.0
    %2530 = vmatpush2.msra.mxu0 0.0
    %2531 = vmatprep.subr.mxu0 0.0
    %2532 = vmatpush2.msra.mxu0 0.0
    %2533 = vmatprep.subr.mxu0 0.0
    %2534 = vmatpush2.msra.mxu0 0.0
    %2535 = vmatprep.subr.mxu0 0.0
    %2536 = vmatpush2.msra.mxu0 0.0
    %2537 = vmatprep.subr.mxu0 0.0
    %2538 = vmatpush2.msra.mxu0 0.0
    %2539 = vmatprep.subr.mxu0 0.0
    %2540 = vmatpush2.msra.mxu0 0.0
    %2541 = vmatprep.subr.mxu0 0.0
    %2542 = vmatpush2.msra.mxu0 0.0
    %2543 = vmatprep.subr.mxu0 0.0
    %2544 = vmatpush2.msra.mxu0 0.0
    %2545 = vmatprep.mubr.f32.mxu0 0.0
    %2546 = vmatmul.mubr.f32.gmra.mxu0 %v2399
    %v2547 = vpop.f32.mrf.mxu0
    %v2548 = vadd.f32 0.0, %v2547
    %v2549 = vpop.f32.mrf.mxu0
    %v2550 = vadd.f32 0.0, %v2549
    %2551 = vmatprep.mubr.f32.mxu0 0.0
    %2552 = vmatmul.mubr.f32.gmra.mxu0 %v2402
    %v2553 = vpop.f32.mrf.mxu0
    %v2554 = vadd.f32 0.0, %v2553
    %v2555 = vpop.f32.mrf.mxu0
    %v2556 = vadd.f32 0.0, %v2555
    %2557 = vdwg.mxu0
    %s2558 = scalar_lea.vmem %s3, 320
    %v2559 = vld [vmem:[%s2558] sm:$0xff]
    %v2560 = vld [vmem:[%s2558 + $0x8] sm:$0xff]
    %s2561 = scalar_lea.vmem %s3, 336
    %v2562 = vld [vmem:[%s2561] sm:$0xff]
    %v2563 = vld [vmem:[%s2561 + $0x8] sm:$0xff]
    %v2564 = vadd.f32 %v2471, %v2473
    %v2565 = vadd.f32 %v2564, %v2548
    %v2566 = vadd.f32 %v2565, %v2550
    %2567 = vadd.xlane.f32.xlu0 %v2566
    %v2568 = vpop.xlane.xlu0 %2567
    %v2569 = vadd.f32 %v2477, %v2479
    %v2570 = vadd.f32 %v2569, %v2554
    %v2571 = vadd.f32 %v2570, %v2556
    %2572 = vadd.xlane.f32.xlu0 %v2571
    %v2573 = vpop.xlane.xlu0 %2572
    %v2574 = vmul.f32 %v2568, %v134
    %v2575 = vmul.f32 %v2573, %v134
    %v2576 = vmul.f32 %v2471, %v2471
    %v2577 = vmul.f32 %v2473, %v2473
    %v2578 = vmul.f32 %v2548, %v2548
    %v2579 = vmul.f32 %v2550, %v2550
    %v2580 = vmul.f32 %v2477, %v2477
    %v2581 = vmul.f32 %v2479, %v2479
    %v2582 = vmul.f32 %v2554, %v2554
    %v2583 = vmul.f32 %v2556, %v2556
    %v2584 = vadd.f32 %v2576, %v2577
    %v2585 = vadd.f32 %v2584, %v2578
    %v2586 = vadd.f32 %v2585, %v2579
    %2587 = vadd.xlane.f32.xlu0 %v2586
    %v2588 = vpop.xlane.xlu0 %2587
    %v2589 = vadd.f32 %v2580, %v2581
    %v2590 = vadd.f32 %v2589, %v2582
    %v2591 = vadd.f32 %v2590, %v2583
    %2592 = vadd.xlane.f32.xlu0 %v2591
    %v2593 = vpop.xlane.xlu0 %2592
    %v2594 = vmul.f32 %v2588, %v134
    %v2595 = vmul.f32 %v2593, %v134
    %v2596 = vmul.f32 %v2574, %v2574
    %v2597 = vmul.f32 %v2575, %v2575
    %v2598 = vsub.f32 %v2594, %v2596
    %v2599 = vsub.f32 %v2595, %v2597
    %v2600 = vmax.f32 %v2598, 0.0
    %v2601 = vmax.f32 %v2599, 0.0
    %v2602 = vsub.f32 %v2471, %v2574
    %v2603 = vsub.f32 %v2473, %v2574
    %v2604 = vsub.f32 %v2548, %v2574
    %v2605 = vsub.f32 %v2550, %v2574
    %v2606 = vsub.f32 %v2477, %v2575
    %v2607 = vsub.f32 %v2479, %v2575
    %v2608 = vsub.f32 %v2554, %v2575
    %v2609 = vsub.f32 %v2556, %v2575
    %v2610 = vadd.f32 %v2600, 1e-06
    %v2611 = vadd.f32 %v2601, 1e-06
    %v2612 = vrsqrt.pop %v2610
    %v2613 = vrsqrt.pop %v2611
    %v2614 = vmul.f32 %v2602, %v2612
    %v2615 = vmul.f32 %v2603, %v2612
    %v2616 = vmul.f32 %v2604, %v2612
    %v2617 = vmul.f32 %v2605, %v2612
    %v2618 = vmul.f32 %v2606, %v2613
    %v2619 = vmul.f32 %v2607, %v2613
    %v2620 = vmul.f32 %v2608, %v2613
    %v2621 = vmul.f32 %v2609, %v2613
    %2623 = vset.pattern.permute.xlu0 0
    %2624 = vperm.xlu0 %2623, %v2559
    %v2625 = vpop.permute.xlu0 %2624
    %2628 = vset.pattern.permute.xlu0 0
    %2629 = vperm.xlu0 %2628, %v2560
    %v2630 = vpop.permute.xlu0 %2629
    %v2632 = vmul.f32 %v2614, %v2625
    %v2633 = vmul.f32 %v2615, %v2625
    %v2634 = vmul.f32 %v2616, %v2625
    %v2635 = vmul.f32 %v2617, %v2625
    %v2636 = vmul.f32 %v2618, %v2630
    %v2637 = vmul.f32 %v2619, %v2630
    %v2638 = vmul.f32 %v2620, %v2630
    %v2639 = vmul.f32 %v2621, %v2630
    %2641 = vset.pattern.permute.xlu0 0
    %2642 = vperm.xlu0 %2641, %v2562
    %v2643 = vpop.permute.xlu0 %2642
    %2646 = vset.pattern.permute.xlu0 0
    %2647 = vperm.xlu0 %2646, %v2563
    %v2648 = vpop.permute.xlu0 %2647
    %v2650 = vadd.f32 %v2632, %v2643
    %v2651 = vadd.f32 %v2633, %v2643
    %v2652 = vadd.f32 %v2634, %v2643
    %v2653 = vadd.f32 %v2635, %v2643
    %v2654 = vadd.f32 %v2636, %v2648
    %v2655 = vadd.f32 %v2637, %v2648
    %v2656 = vadd.f32 %v2638, %v2648
    %v2657 = vadd.f32 %v2639, %v2648
    %v2658 = vmax.f32 %v2650, 0.0
    %v2659 = vmax.f32 %v2651, 0.0
    %v2660 = vmax.f32 %v2652, 0.0
    %v2661 = vmax.f32 %v2653, 0.0
    %v2662 = vmax.f32 %v2654, 0.0
    %v2663 = vmax.f32 %v2655, 0.0
    %v2664 = vmax.f32 %v2656, 0.0
    %v2665 = vmax.f32 %v2657, 0.0
    %s2666 = scalar_lea.vmem %s2, 128
    %v2667 = vld [vmem:[%s2666] sm:$0xff]
    %v2669 = vsel %vm495, %v2667, 0
    %2671 = vmatprep.subr.mxu0 0.0
    %2672 = vmatpush1.msra.mxu0 0.0
    %2673 = vmatprep.subr.mxu0 0.0
    %2674 = vmatpush1.msra.mxu0 0.0
    %2675 = vmatprep.subr.mxu0 0.0
    %2676 = vmatpush1.msra.mxu0 0.0
    %2677 = vmatprep.subr.mxu0 0.0
    %2678 = vmatpush1.msra.mxu0 0.0
    %2679 = vmatprep.subr.mxu0 0.0
    %2680 = vmatpush1.msra.mxu0 0.0
    %2681 = vmatprep.subr.mxu0 0.0
    %2682 = vmatpush1.msra.mxu0 0.0
    %2683 = vmatprep.subr.mxu0 0.0
    %2684 = vmatpush1.msra.mxu0 0.0
    %2685 = vmatprep.subr.mxu0 0.0
    %2686 = vmatpush1.msra.mxu0 0.0
    %2687 = vmatprep.subr.mxu0 0.0
    %2688 = vmatpush1.msra.mxu0 0.0
    %2689 = vmatprep.subr.mxu0 0.0
    %2690 = vmatpush1.msra.mxu0 0.0
    %2691 = vmatprep.subr.mxu0 0.0
    %2692 = vmatpush1.msra.mxu0 0.0
    %2693 = vmatprep.subr.mxu0 0.0
    %2694 = vmatpush1.msra.mxu0 0.0
    %2695 = vmatprep.subr.mxu0 0.0
    %2696 = vmatpush1.msra.mxu0 0.0
    %2697 = vmatprep.subr.mxu0 0.0
    %2698 = vmatpush1.msra.mxu0 0.0
    %2699 = vmatprep.subr.mxu0 %v2663
    %2700 = vmatpush1.msra.mxu0 %v2662
    %2701 = vmatprep.subr.mxu0 %v2659
    %2702 = vmatpush1.msra.mxu0 %v2658
    %2703 = vmatprep.subr.mxu0 0.0
    %2704 = vmatpush2.msra.mxu0 0.0
    %2705 = vmatprep.subr.mxu0 0.0
    %2706 = vmatpush2.msra.mxu0 0.0
    %2707 = vmatprep.subr.mxu0 0.0
    %2708 = vmatpush2.msra.mxu0 0.0
    %2709 = vmatprep.subr.mxu0 0.0
    %2710 = vmatpush2.msra.mxu0 0.0
    %2711 = vmatprep.subr.mxu0 0.0
    %2712 = vmatpush2.msra.mxu0 0.0
    %2713 = vmatprep.subr.mxu0 0.0
    %2714 = vmatpush2.msra.mxu0 0.0
    %2715 = vmatprep.subr.mxu0 0.0
    %2716 = vmatpush2.msra.mxu0 0.0
    %2717 = vmatprep.subr.mxu0 0.0
    %2718 = vmatpush2.msra.mxu0 0.0
    %2719 = vmatprep.subr.mxu0 0.0
    %2720 = vmatpush2.msra.mxu0 0.0
    %2721 = vmatprep.subr.mxu0 0.0
    %2722 = vmatpush2.msra.mxu0 0.0
    %2723 = vmatprep.subr.mxu0 0.0
    %2724 = vmatpush2.msra.mxu0 0.0
    %2725 = vmatprep.subr.mxu0 0.0
    %2726 = vmatpush2.msra.mxu0 0.0
    %2727 = vmatprep.subr.mxu0 0.0
    %2728 = vmatpush2.msra.mxu0 0.0
    %2729 = vmatprep.subr.mxu0 0.0
    %2730 = vmatpush2.msra.mxu0 0.0
    %2731 = vmatprep.subr.mxu0 0.0
    %2732 = vmatpush2.msra.mxu0 0.0
    %2733 = vmatprep.subr.mxu0 0.0
    %2734 = vmatpush2.msra.mxu0 0.0
    %2735 = vmatprep.mubr.f32.mxu0 0.0
    %2736 = vmatmul.mubr.f32.gmra.mxu0 %v2669
    %v2737 = vpop.f32.mrf.mxu0
    %v2738 = vadd.f32 0.0, %v2737
    %v2739 = vpop.f32.mrf.mxu0
    %v2740 = vadd.f32 0.0, %v2739
    %2741 = vdwg.mxu0
    %2742 = vmatprep.subr.mxu0 0.0
    %2743 = vmatpush1.msra.mxu0 0.0
    %2744 = vmatprep.subr.mxu0 0.0
    %2745 = vmatpush1.msra.mxu0 0.0
    %2746 = vmatprep.subr.mxu0 0.0
    %2747 = vmatpush1.msra.mxu0 0.0
    %2748 = vmatprep.subr.mxu0 0.0
    %2749 = vmatpush1.msra.mxu0 0.0
    %2750 = vmatprep.subr.mxu0 0.0
    %2751 = vmatpush1.msra.mxu0 0.0
    %2752 = vmatprep.subr.mxu0 0.0
    %2753 = vmatpush1.msra.mxu0 0.0
    %2754 = vmatprep.subr.mxu0 0.0
    %2755 = vmatpush1.msra.mxu0 0.0
    %2756 = vmatprep.subr.mxu0 0.0
    %2757 = vmatpush1.msra.mxu0 0.0
    %2758 = vmatprep.subr.mxu0 0.0
    %2759 = vmatpush1.msra.mxu0 0.0
    %2760 = vmatprep.subr.mxu0 0.0
    %2761 = vmatpush1.msra.mxu0 0.0
    %2762 = vmatprep.subr.mxu0 0.0
    %2763 = vmatpush1.msra.mxu0 0.0
    %2764 = vmatprep.subr.mxu0 0.0
    %2765 = vmatpush1.msra.mxu0 0.0
    %2766 = vmatprep.subr.mxu0 0.0
    %2767 = vmatpush1.msra.mxu0 0.0
    %2768 = vmatprep.subr.mxu0 0.0
    %2769 = vmatpush1.msra.mxu0 0.0
    %2770 = vmatprep.subr.mxu0 %v2665
    %2771 = vmatpush1.msra.mxu0 %v2664
    %2772 = vmatprep.subr.mxu0 %v2661
    %2773 = vmatpush1.msra.mxu0 %v2660
    %2774 = vmatprep.subr.mxu0 0.0
    %2775 = vmatpush2.msra.mxu0 0.0
    %2776 = vmatprep.subr.mxu0 0.0
    %2777 = vmatpush2.msra.mxu0 0.0
    %2778 = vmatprep.subr.mxu0 0.0
    %2779 = vmatpush2.msra.mxu0 0.0
    %2780 = vmatprep.subr.mxu0 0.0
    %2781 = vmatpush2.msra.mxu0 0.0
    %2782 = vmatprep.subr.mxu0 0.0
    %2783 = vmatpush2.msra.mxu0 0.0
    %2784 = vmatprep.subr.mxu0 0.0
    %2785 = vmatpush2.msra.mxu0 0.0
    %2786 = vmatprep.subr.mxu0 0.0
    %2787 = vmatpush2.msra.mxu0 0.0
    %2788 = vmatprep.subr.mxu0 0.0
    %2789 = vmatpush2.msra.mxu0 0.0
    %2790 = vmatprep.subr.mxu0 0.0
    %2791 = vmatpush2.msra.mxu0 0.0
    %2792 = vmatprep.subr.mxu0 0.0
    %2793 = vmatpush2.msra.mxu0 0.0
    %2794 = vmatprep.subr.mxu0 0.0
    %2795 = vmatpush2.msra.mxu0 0.0
    %2796 = vmatprep.subr.mxu0 0.0
    %2797 = vmatpush2.msra.mxu0 0.0
    %2798 = vmatprep.subr.mxu0 0.0
    %2799 = vmatpush2.msra.mxu0 0.0
    %2800 = vmatprep.subr.mxu0 0.0
    %2801 = vmatpush2.msra.mxu0 0.0
    %2802 = vmatprep.subr.mxu0 0.0
    %2803 = vmatpush2.msra.mxu0 0.0
    %2804 = vmatprep.subr.mxu0 0.0
    %2805 = vmatpush2.msra.mxu0 0.0
    %2806 = vmatprep.mubr.f32.mxu0 0.0
    %2807 = vmatmul.mubr.f32.gmra.mxu0 %v2669
    %v2808 = vpop.f32.mrf.mxu0
    %v2809 = vadd.f32 0.0, %v2808
    %v2810 = vpop.f32.mrf.mxu0
    %v2811 = vadd.f32 0.0, %v2810
    %2812 = vdwg.mxu0
    %s2813 = scalar_lea.vmem %s3, 352
    %v2814 = vld [vmem:[%s2813] sm:$0xff]
    %s2815 = scalar_lea.vmem %s3, 368
    %v2816 = vld [vmem:[%s2815] sm:$0xff]
    %v2817 = vsel %vm124, %v2738, 0.0
    %v2818 = vsel %vm124, %v2740, 0.0
    %v2819 = vadd.f32 %v2817, %v2818
    %v2820 = vsel %vm124, %v2809, 0.0
    %v2821 = vadd.f32 %v2819, %v2820
    %v2822 = vsel %vm124, %v2811, 0.0
    %v2823 = vadd.f32 %v2821, %v2822
    %2824 = vadd.xlane.f32.xlu0 %v2823
    %v2825 = vpop.xlane.xlu0 %2824
    %v2826 = vmul.f32 %v2825, %v134
    %v2827 = vmul.f32 %v2738, %v2738
    %v2828 = vmul.f32 %v2740, %v2740
    %v2829 = vmul.f32 %v2809, %v2809
    %v2830 = vmul.f32 %v2811, %v2811
    %v2831 = vsel %vm124, %v2827, 0.0
    %v2832 = vsel %vm124, %v2828, 0.0
    %v2833 = vadd.f32 %v2831, %v2832
    %v2834 = vsel %vm124, %v2829, 0.0
    %v2835 = vadd.f32 %v2833, %v2834
    %v2836 = vsel %vm124, %v2830, 0.0
    %v2837 = vadd.f32 %v2835, %v2836
    %2838 = vadd.xlane.f32.xlu0 %v2837
    %v2839 = vpop.xlane.xlu0 %2838
    %v2840 = vmul.f32 %v2839, %v134
    %v2841 = vmul.f32 %v2826, %v2826
    %v2842 = vsub.f32 %v2840, %v2841
    %v2843 = vmax.f32 %v2842, 0.0
    %v2844 = vsub.f32 %v2738, %v2826
    %v2845 = vsub.f32 %v2740, %v2826
    %v2846 = vsub.f32 %v2809, %v2826
    %v2847 = vsub.f32 %v2811, %v2826
    %v2848 = vadd.f32 %v2843, 1e-06
    %v2849 = vrsqrt.pop %v2848
    %v2850 = vmul.f32 %v2844, %v2849
    %v2851 = vmul.f32 %v2845, %v2849
    %v2852 = vmul.f32 %v2846, %v2849
    %v2853 = vmul.f32 %v2847, %v2849
    %2855 = vset.pattern.permute.xlu0 0
    %2856 = vperm.xlu0 %2855, %v2814
    %v2857 = vpop.permute.xlu0 %2856
    %v2859 = vmul.f32 %v2850, %v2857
    %v2860 = vmul.f32 %v2851, %v2857
    %v2861 = vmul.f32 %v2852, %v2857
    %v2862 = vmul.f32 %v2853, %v2857
    %2864 = vset.pattern.permute.xlu0 0
    %2865 = vperm.xlu0 %2864, %v2816
    %v2866 = vpop.permute.xlu0 %2865
    %v2868 = vadd.f32 %v2859, %v2866
    %v2869 = vadd.f32 %v2860, %v2866
    %v2870 = vadd.f32 %v2861, %v2866
    %v2871 = vadd.f32 %v2862, %v2866
    %v2872 = vmul.f32 %v2868, 0.25
    %v2873 = vmul.f32 %v2869, 0.25
    %v2874 = vmul.f32 %v2870, 0.25
    %v2875 = vmul.f32 %v2871, 0.25
    %v2876 = vmul.f32 %v2872, %v2872
    %v2877 = vmul.f32 %v2873, %v2873
    %v2878 = vmul.f32 %v2874, %v2874
    %v2879 = vmul.f32 %v2875, %v2875
    %v2880 = vsel %vm124, %v2876, 0.0
    %v2881 = vrot.slane %v2880, 4
    %v2882 = vadd.f32 %v2880, %v2881
    %v2883 = vrot.slane %v2882, 2
    %v2884 = vadd.f32 %v2882, %v2883
    %v2885 = vrot.slane %v2884, 1
    %v2886 = vadd.f32 %v2884, %v2885
    %v2887 = vsel %vm124, %v2877, 0.0
    %v2888 = vrot.slane %v2887, 4
    %v2889 = vadd.f32 %v2887, %v2888
    %v2890 = vrot.slane %v2889, 2
    %v2891 = vadd.f32 %v2889, %v2890
    %v2892 = vrot.slane %v2891, 1
    %v2893 = vadd.f32 %v2891, %v2892
    %v2894 = vsel %vm124, %v2878, 0.0
    %v2895 = vrot.slane %v2894, 4
    %v2896 = vadd.f32 %v2894, %v2895
    %v2897 = vrot.slane %v2896, 2
    %v2898 = vadd.f32 %v2896, %v2897
    %v2899 = vrot.slane %v2898, 1
    %v2900 = vadd.f32 %v2898, %v2899
    %v2901 = vsel %vm124, %v2879, 0.0
    %v2902 = vrot.slane %v2901, 4
    %v2903 = vadd.f32 %v2901, %v2902
    %v2904 = vrot.slane %v2903, 2
    %v2905 = vadd.f32 %v2903, %v2904
    %v2906 = vrot.slane %v2905, 1
    %v2907 = vadd.f32 %v2905, %v2906
    %v2908 = vmul.f32 %v2886, 0.25
    %v2909 = vmul.f32 %v2893, 0.25
    %v2910 = vmul.f32 %v2900, 0.25
    %v2911 = vmul.f32 %v2907, 0.25
    %v2916 = vcombine.low %v2908, %v2909
    %v2917 = vcombine.low %v2910, %v2911
    %v2920 = vadd.f32 %v2017, %v2916
    %v2921 = vadd.f32 %v2018, %v2917
    %v2924 = vcombine.high %v50, %v50
    %v2925 = vcombine.high %v51, %v51
    %v2928 = vmul.f32 %v2872, %v50
    %v2929 = vmul.f32 %v2873, %v2924
    %v2930 = vmul.f32 %v2874, %v51
    %v2931 = vmul.f32 %v2875, %v2925
    %v2932 = vsel %vm124, %v2928, 0.0
    %v2933 = vrot.slane %v2932, 4
    %v2934 = vadd.f32 %v2932, %v2933
    %v2935 = vrot.slane %v2934, 2
    %v2936 = vadd.f32 %v2934, %v2935
    %v2937 = vrot.slane %v2936, 1
    %v2938 = vadd.f32 %v2936, %v2937
    %v2939 = vsel %vm124, %v2929, 0.0
    %v2940 = vrot.slane %v2939, 4
    %v2941 = vadd.f32 %v2939, %v2940
    %v2942 = vrot.slane %v2941, 2
    %v2943 = vadd.f32 %v2941, %v2942
    %v2944 = vrot.slane %v2943, 1
    %v2945 = vadd.f32 %v2943, %v2944
    %v2946 = vsel %vm124, %v2930, 0.0
    %v2947 = vrot.slane %v2946, 4
    %v2948 = vadd.f32 %v2946, %v2947
    %v2949 = vrot.slane %v2948, 2
    %v2950 = vadd.f32 %v2948, %v2949
    %v2951 = vrot.slane %v2950, 1
    %v2952 = vadd.f32 %v2950, %v2951
    %v2953 = vsel %vm124, %v2931, 0.0
    %v2954 = vrot.slane %v2953, 4
    %v2955 = vadd.f32 %v2953, %v2954
    %v2956 = vrot.slane %v2955, 2
    %v2957 = vadd.f32 %v2955, %v2956
    %v2958 = vrot.slane %v2957, 1
    %v2959 = vadd.f32 %v2957, %v2958
    %v2964 = vcombine.low %v2938, %v2945
    %v2965 = vcombine.low %v2952, %v2959
    %v2968 = vadd.f32 %v2920, %v2964
    %v2969 = vadd.f32 %v2921, %v2965
    %v2970 = vmul.f32 %v54, %v54
    %v2971 = vmul.f32 %v55, %v55
    %v2974 = vcombine.high %v2970, %v2970
    %v2975 = vcombine.high %v2971, %v2971
    %v2978 = vsel %vm124, %v2970, 0.0
    %v2979 = vrot.slane %v2978, 4
    %v2980 = vadd.f32 %v2978, %v2979
    %v2981 = vrot.slane %v2980, 2
    %v2982 = vadd.f32 %v2980, %v2981
    %v2983 = vrot.slane %v2982, 1
    %v2984 = vadd.f32 %v2982, %v2983
    %v2985 = vsel %vm124, %v2974, 0.0
    %v2986 = vrot.slane %v2985, 4
    %v2987 = vadd.f32 %v2985, %v2986
    %v2988 = vrot.slane %v2987, 2
    %v2989 = vadd.f32 %v2987, %v2988
    %v2990 = vrot.slane %v2989, 1
    %v2991 = vadd.f32 %v2989, %v2990
    %v2992 = vsel %vm124, %v2971, 0.0
    %v2993 = vrot.slane %v2992, 4
    %v2994 = vadd.f32 %v2992, %v2993
    %v2995 = vrot.slane %v2994, 2
    %v2996 = vadd.f32 %v2994, %v2995
    %v2997 = vrot.slane %v2996, 1
    %v2998 = vadd.f32 %v2996, %v2997
    %v2999 = vsel %vm124, %v2975, 0.0
    %v3000 = vrot.slane %v2999, 4
    %v3001 = vadd.f32 %v2999, %v3000
    %v3002 = vrot.slane %v3001, 2
    %v3003 = vadd.f32 %v3001, %v3002
    %v3004 = vrot.slane %v3003, 1
    %v3005 = vadd.f32 %v3003, %v3004
    %v3006 = vadd.f32 %v2984, 1.0
    %v3007 = vadd.f32 %v2991, 1.0
    %v3008 = vadd.f32 %v2998, 1.0
    %v3009 = vadd.f32 %v3005, 1.0
    %v3010 = vmul.f32 %v3006, 0.5
    %v3011 = vmul.f32 %v3007, 0.5
    %v3012 = vmul.f32 %v3008, 0.5
    %v3013 = vmul.f32 %v3009, 0.5
    %v3014 = vlog2.pop %v3010
    %v3015 = vmul.f32 %v3014, 0.6931472
    %v3016 = vlog2.pop %v3011
    %v3017 = vmul.f32 %v3016, 0.6931472
    %v3018 = vlog2.pop %v3012
    %v3019 = vmul.f32 %v3018, 0.6931472
    %v3020 = vlog2.pop %v3013
    %v3021 = vmul.f32 %v3020, 0.6931472
    %v3026 = vcombine.low %v3015, %v3017
    %v3027 = vcombine.low %v3019, %v3021
    %v3030 = vsub.f32 %v2968, %v3026
    %v3031 = vsub.f32 %v2969, %v3027
    %v3032 = vand.u32 2147483647, %v3030
    %v3033 = vand.u32 2147483647, %v3031
    %vm3034 = vcmp.lt.f32.partialorder %v3032, 50.0
    %vm3035 = vcmp.lt.f32.partialorder %v3033, 50.0
    %v3036 = vmul.f32 %v3030, %v3030
    %v3037 = vmul.f32 %v3031, %v3031
    %v3038 = vmul.f32 %v3032, 100.0
    %v3039 = vmul.f32 %v3033, 100.0
    %v3040 = vsub.f32 %v3038, 2500.0
    %v3041 = vsub.f32 %v3039, 2500.0
    %v3042 = vsel %vm3034, %v3036, %v3040
    %v3043 = vsel %vm3035, %v3037, %v3041
    %v3046 = vlaneseq
    %v3047 = vshrl.u32 %v3046, 7
    %v3048 = vsub.s32 0, %v3047
    %v3049 = vrot.slane %v3042, %v3048
    %v3050 = vlaneseq
    %v3051 = vshrl.u32 %v3050, 7
    %v3052 = vsub.s32 4, %v3051
    %v3053 = vrot.slane %v3042, %v3052
    %v3054 = vlaneseq
    %v3055 = vshrl.u32 %v3054, 7
    %v3056 = vsub.s32 0, %v3055
    %v3057 = vrot.slane %v3043, %v3056
    %v3058 = vlaneseq
    %v3059 = vshrl.u32 %v3058, 7
    %v3060 = vsub.s32 4, %v3059
    %v3061 = vrot.slane %v3043, %v3060
    %vm3066 = vcmask 1040384
    %v3067 = vsel %vm3066, %v3049, 0.0
    %v3068 = vsel %vm3066, %v3053, 0.0
    %v3069 = vadd.f32 %v3067, %v3068
    %v3070 = vsel %vm3066, %v3057, 0.0
    %v3071 = vadd.f32 %v3069, %v3070
    %v3072 = vsel %vm3066, %v3061, 0.0
    %v3073 = vadd.f32 %v3071, %v3072
    %3074 = vadd.xlane.f32.xlu0 %v3073
    %v3075 = vpop.xlane.xlu0 %3074
    %v3076 = vmul.f32 %v3075, 0.001953125
    %vm3077 = vcmask 0
    %3078 = vst.msk [vmem:[#allocation5] sm:$0x1] %vm3077, %v3076
    // Predicated region
    $region22: #{forward.1} parent=1 // pred_check
      _
    $region23: #{forward.1} parent=1 // pred_check_branch
      %3080 = sbr.rel (0) target = $region25
    $region24: #{forward.1} parent=1 // pred_region
      %s3082 = ssub.s32 16, 16
      %3083 = vsyncadd [#allocation3], %s3082
      %s3085 = sshll.u32 [#allocation5], 4
      %s3086 = int_to_ptr.vmem [resolvable:$true] %s3085
      %3088 = dma.vmem_to_hbm [thread:$0]  %s3086, 16, %s4, [#allocation3]
    $region25: #{forward.1} parent=1 // pred_fallthru
      _
    // Predicated region
    $region26: #{forward.1} parent=1 // pred_check
      _
    $region27: #{forward.1} parent=1 // pred_check_branch
      %3090 = sbr.rel (0) target = $region29
    $region28: #{forward.1} parent=1 // pred_region
      %3091 = dma.done [#allocation3], 16
    $region29: #{forward.1} parent=1 // pred_fallthru
      _
    %3092 = vsyncpa [#allocation3], 1
    %3093 = vsyncpa [#allocation4], 1

</llo_original>
